<compile_context>
chip_gen: v6e
topology: v6e:2x2x1
jax: 0.10.0
libtpu: 0.0.40
codegen_flags: <defaults>
</compile_context>

<pallas_src>
import functools

import jax
import jax.numpy as jnp
from jax.experimental import pallas as pl
from jax.experimental.pallas import tpu as pltpu


# ------------------------------ fused kernel --------------------------------

def _fused_net_kernel(x_ref, w1_ref, b1_ref, w2_ref, b2_ref,
                      wf1_ref, bf1_ref, wf2_ref, bf2_ref, o_ref):
    bt = x_ref.shape[1]
    x = x_ref[...]                                               # [28, bt, 28]

    # ---- conv1: 5 banded matmuls over the vertical taps -> [24*bt, 256] ----
    # column layout: dw*128 + pw*10 + c   (dw = horizontal pool offset)
    acc1 = jnp.zeros((24 * bt, 256), jnp.float32)
    for i in range(5):
        lhs = x[i:i + 24].reshape(24 * bt, 28)                   # rows = (oh, b)
        acc1 = acc1 + jnp.dot(lhs, w1_ref[i],
                              preferred_element_type=jnp.float32)
    a1 = acc1 + b1_ref[...]
    # 2x2 max-pool + ReLU: horizontal pool = max of the two 128-lane halves,
    # vertical pool = max over the dh axis of a tile-aligned row-group reshape.
    ew = jnp.maximum(a1[:, :128], a1[:, 128:]).reshape(12, 2, bt, 128)
    h1 = jnp.maximum(jnp.maximum(ew[:, 0], ew[:, 1]), 0.0)       # [12, bt, 128]

    # ---- conv2: same banded scheme, K = 128 (pw*10 + c, zero padded) -------
    acc2 = jnp.zeros((8 * bt, 256), jnp.float32)
    for i in range(5):
        lhs2 = h1[i:i + 8].reshape(8 * bt, 128)                  # rows = (oh2, b)
        acc2 = acc2 + jnp.dot(lhs2, w2_ref[i],
                              preferred_element_type=jnp.float32)
    a2 = acc2 + b2_ref[...]
    ew2 = jnp.maximum(a2[:, :128], a2[:, 128:]).reshape(4, 2, bt, 128)
    h2 = jnp.maximum(jnp.maximum(ew2[:, 0], ew2[:, 1]), 0.0)     # [4, bt, 128]
    # TODO(synk): Dropout2d / F.dropout are identity (inference semantics);
    # stochastic train-mode dropout is not reproduced here.

    # ---- fc1 + relu: sum of 4 per-row matmuls (weight pre-permuted) --------
    acc3 = jnp.zeros((bt, 128), jnp.float32)
    for p in range(4):
        acc3 = acc3 + jnp.dot(h2[p], wf1_ref[p],
                              preferred_element_type=jnp.float32)
    a3 = jnp.maximum(acc3 + bf1_ref[...], 0.0)                   # cols >= 50 are 0

    # ---- fc2 + log_softmax over the 10 real logits -------------------------
    logits = jnp.dot(a3, wf2_ref[...],
                     preferred_element_type=jnp.float32) + bf2_ref[...]
    lane = jax.lax.broadcasted_iota(jnp.int32, logits.shape, 1)
    masked = jnp.where(lane < 10, logits, jnp.float32(-1e30))
    m = jnp.max(masked, axis=-1, keepdims=True)
    lse = m + jnp.log(jnp.sum(jnp.exp(masked - m), axis=-1, keepdims=True))
    o_ref[...] = logits - lse                                    # cols >=10 discarded


# --------------------------- weight preparation ------------------------------

def prepare_params(params):
    """Build lane-dense banded / padded weights once, outside the kernel."""
    f32 = jnp.float32
    w1 = params["conv1_w"].astype(f32)        # [10, 1, 5, 5]
    b1 = params["conv1_b"].astype(f32)        # [10]
    w2 = params["conv2_w"].astype(f32)        # [20, 10, 5, 5]
    b2 = params["conv2_b"].astype(f32)        # [20]
    fw1 = params["fc1_w"].astype(f32)         # [50, 320]
    fb1 = params["fc1_b"].astype(f32)
    fw2 = params["fc2_w"].astype(f32)         # [10, 50]
    fb2 = params["fc2_b"].astype(f32)

    # conv1 band: [5, 28, 256]; band[i, w', dw*128 + pw*10 + c]
    #   = w1[c, 0, i, w' - (2*pw + dw)]  when the offset is in [0, 5).
    ow1 = 2 * jnp.arange(12)[None, :] + jnp.arange(2)[:, None]        # [2, 12]
    joff1 = jnp.arange(28)[:, None, None] - ow1[None]                 # [28, 2, 12]
    valid1 = ((joff1 >= 0) & (joff1 < 5)).astype(f32)
    j1 = jnp.clip(joff1, 0, 4)
    w1t = jnp.transpose(w1[:, 0], (1, 2, 0))                          # [i, j, c]
    g1 = w1t[:, j1, :] * valid1[None, :, :, :, None]                  # [5,28,2,12,10]
    g1 = g1.reshape(5, 28, 2, 120)
    band1 = jnp.pad(g1, ((0, 0), (0, 0), (0, 0), (0, 8))).reshape(5, 28, 256)
    bias1 = jnp.pad(jnp.tile(b1, 12), (0, 8))
    bias1 = jnp.concatenate([bias1, bias1]).reshape(1, 256)

    # conv2 band: [5, 128, 256]; rows = pw*10 + c (padded 120->128),
    #   cols = dw2*128 + pw2*20 + c2.
    ow2 = 2 * jnp.arange(4)[None, :] + jnp.arange(2)[:, None]         # [2, 4]
    joff2 = jnp.arange(12)[:, None, None] - ow2[None]                 # [12, 2, 4]
    valid2 = ((joff2 >= 0) & (joff2 < 5)).astype(f32)
    j2 = jnp.clip(joff2, 0, 4)
    w2t = jnp.transpose(w2, (2, 3, 1, 0))                             # [i, j, c, c2]
    g2 = w2t[:, j2, :, :] * valid2[None, :, :, :, None, None]         # [5,12,2,4,10,20]
    g2 = jnp.transpose(g2, (0, 1, 4, 2, 3, 5)).reshape(5, 120, 2, 80)
    g2 = jnp.pad(g2, ((0, 0), (0, 0), (0, 0), (0, 48))).reshape(5, 120, 256)
    band2 = jnp.pad(g2, ((0, 0), (0, 8), (0, 0)))                     # [5, 128, 256]
    bias2 = jnp.pad(jnp.tile(b2, 4), (0, 48))
    bias2 = jnp.concatenate([bias2, bias2]).reshape(1, 256)

    # fc1: permute the 320 input features from torch's NCHW flatten
    # (c2*16 + ph2*4 + pw2) to the kernel's (ph2, pw2*20 + c2) layout.
    wf1 = jnp.transpose(fw1.reshape(50, 20, 4, 4), (2, 3, 1, 0)).reshape(4, 80, 50)
    wf1 = jnp.pad(wf1, ((0, 0), (0, 48), (0, 78)))                    # [4, 128, 128]
    bf1 = jnp.pad(fb1, (0, 78)).reshape(1, 128)

    wf2 = jnp.pad(fw2.T, ((0, 78), (0, 118)))                         # [128, 128]
    bf2 = jnp.pad(fb2, (0, 118)).reshape(1, 128)

    return band1, bias1, band2, bias2, wf1, bf1, wf2, bf2


# ------------------------------ forward pass ---------------------------------

@functools.partial(jax.jit, static_argnames=("block_batch",))
def _net_forward_impl(params, x_nchw, block_batch):
    prep = prepare_params(params)
    B = x_nchw.shape[0]
    x = x_nchw.reshape(B, 28, 28).astype(jnp.float32)
    x = jnp.transpose(x, (1, 0, 2))                                   # [28, B, 28]
    Bp = ((B + block_batch - 1) // block_batch) * block_batch
    if Bp != B:
        x = jnp.pad(x, ((0, 0), (0, Bp - B), (0, 0)))

    out = pl.pallas_call(
        _fused_net_kernel,
        out_shape=jax.ShapeDtypeStruct((Bp, 128), jnp.float32),
        grid_spec=pltpu.PrefetchScalarGridSpec(
            num_scalar_prefetch=0,
            grid=(Bp // block_batch,),
            in_specs=[
                pl.BlockSpec((28, block_batch, 28), lambda g: (0, g, 0)),
                pl.BlockSpec((5, 28, 256), lambda g: (0, 0, 0)),
                pl.BlockSpec((1, 256), lambda g: (0, 0)),
                pl.BlockSpec((5, 128, 256), lambda g: (0, 0, 0)),
                pl.BlockSpec((1, 256), lambda g: (0, 0)),
                pl.BlockSpec((4, 128, 128), lambda g: (0, 0, 0)),
                pl.BlockSpec((1, 128), lambda g: (0, 0)),
                pl.BlockSpec((128, 128), lambda g: (0, 0)),
                pl.BlockSpec((1, 128), lambda g: (0, 0)),
            ],
            out_specs=pl.BlockSpec((block_batch, 128), lambda g: (g, 0)),
        ),
        compiler_params=pltpu.CompilerParams(
            dimension_semantics=("parallel",)),
    )(x, *prep)
    return out[:B, :10]


def net_forward(params, x_nchw):
    B = x_nchw.shape[0]
    # Larger batch tile for big batches (better MXU row utilization); 8 for
    # small batches to avoid excess padding.  VMEM stays well under the limit.
    block_batch = 32 if B >= 32 else 8
    return _net_forward_impl(params, x_nchw, block_batch)


# ------------------------------ reference ------------------------------------

def net_reference(params, x_nchw):
    hp = jax.lax.Precision.HIGHEST
    x = x_nchw.astype(jnp.float32)
    y = jax.lax.conv_general_dilated(
        x, params["conv1_w"], (1, 1), "VALID",
        dimension_numbers=("NCHW", "OIHW", "NCHW"), precision=hp)
    y = y + params["conv1_b"][None, :, None, None]
    y = jax.nn.relu(jax.lax.reduce_window(
        y, -jnp.inf, jax.lax.max, (1, 1, 2, 2), (1, 1, 2, 2), "VALID"))
    y = jax.lax.conv_general_dilated(
        y, params["conv2_w"], (1, 1), "VALID",
        dimension_numbers=("NCHW", "OIHW", "NCHW"), precision=hp)
    y = y + params["conv2_b"][None, :, None, None]
    y = jax.nn.relu(jax.lax.reduce_window(
        y, -jnp.inf, jax.lax.max, (1, 1, 2, 2), (1, 1, 2, 2), "VALID"))
    y = y.reshape(y.shape[0], -1)
    y = jax.nn.relu(jnp.matmul(y, params["fc1_w"].T, precision=hp) + params["fc1_b"])
    y = jnp.matmul(y, params["fc2_w"].T, precision=hp) + params["fc2_b"]
    return jax.nn.log_softmax(y, axis=-1)


def init_params(key):
    def uniform(k, shape, fan_in):
        bound = 1.0 / jnp.sqrt(jnp.float32(fan_in))
        return jax.random.uniform(k, shape, jnp.float32, -bound, bound)

    ks = jax.random.split(key, 8)
    return {
        "conv1_w": uniform(ks[0], (10, 1, 5, 5), 1 * 5 * 5),
        "conv1_b": uniform(ks[1], (10,), 1 * 5 * 5),
        "conv2_w": uniform(ks[2], (20, 10, 5, 5), 10 * 5 * 5),
        "conv2_b": uniform(ks[3], (20,), 10 * 5 * 5),
        "fc1_w": uniform(ks[4], (50, 320), 320),
        "fc1_b": uniform(ks[5], (50,), 320),
        "fc2_w": uniform(ks[6], (10, 50), 50),
        "fc2_b": uniform(ks[7], (10,), 50),
    }


if __name__ == "__main__":
    key = jax.random.PRNGKey(0)
    pkey, xkey = jax.random.split(key)
    params = init_params(pkey)

    batch = 2
    x = jax.random.normal(xkey, (batch, 1, 28, 28), dtype=jnp.float32)

    out = jax.block_until_ready(net_forward(params, x))
    assert out.shape == (batch, 10), out.shape

    ref = jax.block_until_ready(net_reference(params, x))
    err = float(jnp.max(jnp.abs(out - ref)))
    assert err < 2e-2, f"mismatch vs reference: {err}"

    print("KERNEL_OK")
</pallas_src>

<mosaic_0001>
module attributes {stable_mosaic.version = 11 : i64} {
  func.func @_fused_net_kernel(%arg0: i32, %arg1: memref<28x8x28xf32, #tpu.memory_space<vmem>>, %arg2: memref<5x28x256xf32, #tpu.memory_space<vmem>>, %arg3: memref<1x256xf32, #tpu.memory_space<vmem>>, %arg4: memref<5x128x256xf32, #tpu.memory_space<vmem>>, %arg5: memref<1x256xf32, #tpu.memory_space<vmem>>, %arg6: memref<4x128x128xf32, #tpu.memory_space<vmem>>, %arg7: memref<1x128xf32, #tpu.memory_space<vmem>>, %arg8: memref<128x128xf32, #tpu.memory_space<vmem>>, %arg9: memref<1x128xf32, #tpu.memory_space<vmem>>, %arg10: memref<8x128xf32, #tpu.memory_space<vmem>>) attributes {dimension_semantics = [#tpu.dimension_semantics<parallel>], iteration_bounds = array<i64: 1>, scalar_prefetch = 0 : i64, scratch_operands = 0 : i64, tpu.core_type = #tpu.core_type<tc>, window_params = [{transform_indices = @transform_0, window_bounds = array<i64: 28, 8, 28>}, {pipeline_mode = #tpu.pipeline_mode<synchronous>, transform_indices = @transform_1, window_bounds = array<i64: 5, 28, 256>}, {pipeline_mode = #tpu.pipeline_mode<synchronous>, transform_indices = @transform_2, window_bounds = array<i64: 1, 256>}, {pipeline_mode = #tpu.pipeline_mode<synchronous>, transform_indices = @transform_3, window_bounds = array<i64: 5, 128, 256>}, {pipeline_mode = #tpu.pipeline_mode<synchronous>, transform_indices = @transform_4, window_bounds = array<i64: 1, 256>}, {pipeline_mode = #tpu.pipeline_mode<synchronous>, transform_indices = @transform_5, window_bounds = array<i64: 4, 128, 128>}, {pipeline_mode = #tpu.pipeline_mode<synchronous>, transform_indices = @transform_6, window_bounds = array<i64: 1, 128>}, {pipeline_mode = #tpu.pipeline_mode<synchronous>, transform_indices = @transform_7, window_bounds = array<i64: 128, 128>}, {pipeline_mode = #tpu.pipeline_mode<synchronous>, transform_indices = @transform_8, window_bounds = array<i64: 1, 128>}, {transform_indices = @transform_9, window_bounds = array<i64: 8, 128>}]} {
    %c0 = arith.constant 0 : index
    %c0_0 = arith.constant 0 : index
    %c0_1 = arith.constant 0 : index
    %0 = vector.load %arg1[%c0, %c0_0, %c0_1] : memref<28x8x28xf32, #tpu.memory_space<vmem>>, vector<28x8x28xf32>
    %cst = arith.constant 0.000000e+00 : f32
    %1 = vector.broadcast %cst : f32 to vector<192x256xf32>
    %2 = vector.extract_strided_slice %0 {offsets = [0, 0, 0], sizes = [24, 8, 28], strides = [1, 1, 1]} : vector<28x8x28xf32> to vector<24x8x28xf32>
    %3 = vector.shape_cast %2 : vector<24x8x28xf32> to vector<192x28xf32>
    %c0_2 = arith.constant 0 : index
    %c0_3 = arith.constant 0 : index
    %c0_4 = arith.constant 0 : index
    %4 = vector.load %arg2[%c0_2, %c0_3, %c0_4] : memref<5x28x256xf32, #tpu.memory_space<vmem>>, vector<1x28x256xf32>
    %5 = vector.shape_cast %4 : vector<1x28x256xf32> to vector<28x256xf32>
    %cst_5 = arith.constant dense<0.000000e+00> : vector<192x256xf32>
    %6 = tpu.matmul %3, %5, %cst_5 {dimension_numbers = #tpu.dot_dimension_numbers<[1], [0], [0], [1], [0, 0, 1, 1], [], []>} : vector<192x28xf32>, vector<28x256xf32>, vector<192x256xf32> -> vector<192x256xf32>
    %7 = arith.addf %1, %6 : vector<192x256xf32>
    %8 = vector.extract_strided_slice %0 {offsets = [1, 0, 0], sizes = [24, 8, 28], strides = [1, 1, 1]} : vector<28x8x28xf32> to vector<24x8x28xf32>
    %9 = vector.shape_cast %8 : vector<24x8x28xf32> to vector<192x28xf32>
    %c1 = arith.constant 1 : index
    %c0_6 = arith.constant 0 : index
    %c0_7 = arith.constant 0 : index
    %10 = vector.load %arg2[%c1, %c0_6, %c0_7] : memref<5x28x256xf32, #tpu.memory_space<vmem>>, vector<1x28x256xf32>
    %11 = vector.shape_cast %10 : vector<1x28x256xf32> to vector<28x256xf32>
    %cst_8 = arith.constant dense<0.000000e+00> : vector<192x256xf32>
    %12 = tpu.matmul %9, %11, %cst_8 {dimension_numbers = #tpu.dot_dimension_numbers<[1], [0], [0], [1], [0, 0, 1, 1], [], []>} : vector<192x28xf32>, vector<28x256xf32>, vector<192x256xf32> -> vector<192x256xf32>
    %13 = arith.addf %7, %12 : vector<192x256xf32>
    %14 = vector.extract_strided_slice %0 {offsets = [2, 0, 0], sizes = [24, 8, 28], strides = [1, 1, 1]} : vector<28x8x28xf32> to vector<24x8x28xf32>
    %15 = vector.shape_cast %14 : vector<24x8x28xf32> to vector<192x28xf32>
    %c2 = arith.constant 2 : index
    %c0_9 = arith.constant 0 : index
    %c0_10 = arith.constant 0 : index
    %16 = vector.load %arg2[%c2, %c0_9, %c0_10] : memref<5x28x256xf32, #tpu.memory_space<vmem>>, vector<1x28x256xf32>
    %17 = vector.shape_cast %16 : vector<1x28x256xf32> to vector<28x256xf32>
    %cst_11 = arith.constant dense<0.000000e+00> : vector<192x256xf32>
    %18 = tpu.matmul %15, %17, %cst_11 {dimension_numbers = #tpu.dot_dimension_numbers<[1], [0], [0], [1], [0, 0, 1, 1], [], []>} : vector<192x28xf32>, vector<28x256xf32>, vector<192x256xf32> -> vector<192x256xf32>
    %19 = arith.addf %13, %18 : vector<192x256xf32>
    %20 = vector.extract_strided_slice %0 {offsets = [3, 0, 0], sizes = [24, 8, 28], strides = [1, 1, 1]} : vector<28x8x28xf32> to vector<24x8x28xf32>
    %21 = vector.shape_cast %20 : vector<24x8x28xf32> to vector<192x28xf32>
    %c3 = arith.constant 3 : index
    %c0_12 = arith.constant 0 : index
    %c0_13 = arith.constant 0 : index
    %22 = vector.load %arg2[%c3, %c0_12, %c0_13] : memref<5x28x256xf32, #tpu.memory_space<vmem>>, vector<1x28x256xf32>
    %23 = vector.shape_cast %22 : vector<1x28x256xf32> to vector<28x256xf32>
    %cst_14 = arith.constant dense<0.000000e+00> : vector<192x256xf32>
    %24 = tpu.matmul %21, %23, %cst_14 {dimension_numbers = #tpu.dot_dimension_numbers<[1], [0], [0], [1], [0, 0, 1, 1], [], []>} : vector<192x28xf32>, vector<28x256xf32>, vector<192x256xf32> -> vector<192x256xf32>
    %25 = arith.addf %19, %24 : vector<192x256xf32>
    %26 = vector.extract_strided_slice %0 {offsets = [4, 0, 0], sizes = [24, 8, 28], strides = [1, 1, 1]} : vector<28x8x28xf32> to vector<24x8x28xf32>
    %27 = vector.shape_cast %26 : vector<24x8x28xf32> to vector<192x28xf32>
    %c4 = arith.constant 4 : index
    %c0_15 = arith.constant 0 : index
    %c0_16 = arith.constant 0 : index
    %28 = vector.load %arg2[%c4, %c0_15, %c0_16] : memref<5x28x256xf32, #tpu.memory_space<vmem>>, vector<1x28x256xf32>
    %29 = vector.shape_cast %28 : vector<1x28x256xf32> to vector<28x256xf32>
    %cst_17 = arith.constant dense<0.000000e+00> : vector<192x256xf32>
    %30 = tpu.matmul %27, %29, %cst_17 {dimension_numbers = #tpu.dot_dimension_numbers<[1], [0], [0], [1], [0, 0, 1, 1], [], []>} : vector<192x28xf32>, vector<28x256xf32>, vector<192x256xf32> -> vector<192x256xf32>
    %31 = arith.addf %25, %30 : vector<192x256xf32>
    %c0_18 = arith.constant 0 : index
    %c0_19 = arith.constant 0 : index
    %32 = vector.load %arg3[%c0_18, %c0_19] : memref<1x256xf32, #tpu.memory_space<vmem>>, vector<1x256xf32>
    %33 = vector.broadcast %32 : vector<1x256xf32> to vector<192x256xf32>
    %34 = arith.addf %31, %33 : vector<192x256xf32>
    %35 = vector.extract_strided_slice %34 {offsets = [0, 0], sizes = [192, 128], strides = [1, 1]} : vector<192x256xf32> to vector<192x128xf32>
    %36 = vector.extract_strided_slice %34 {offsets = [0, 128], sizes = [192, 128], strides = [1, 1]} : vector<192x256xf32> to vector<192x128xf32>
    %37 = arith.maximumf %35, %36 : vector<192x128xf32>
    %38 = vector.shape_cast %37 : vector<192x128xf32> to vector<12x2x8x128xf32>
    %39 = vector.extract_strided_slice %38 {offsets = [0, 0, 0, 0], sizes = [12, 1, 8, 128], strides = [1, 1, 1, 1]} : vector<12x2x8x128xf32> to vector<12x1x8x128xf32>
    %40 = vector.shape_cast %39 : vector<12x1x8x128xf32> to vector<12x8x128xf32>
    %41 = vector.extract_strided_slice %38 {offsets = [0, 1, 0, 0], sizes = [12, 1, 8, 128], strides = [1, 1, 1, 1]} : vector<12x2x8x128xf32> to vector<12x1x8x128xf32>
    %42 = vector.shape_cast %41 : vector<12x1x8x128xf32> to vector<12x8x128xf32>
    %43 = arith.maximumf %40, %42 : vector<12x8x128xf32>
    %cst_20 = arith.constant 0.000000e+00 : f32
    %44 = vector.broadcast %cst_20 : f32 to vector<12x8x128xf32>
    %45 = arith.maximumf %43, %44 : vector<12x8x128xf32>
    %cst_21 = arith.constant 0.000000e+00 : f32
    %46 = vector.broadcast %cst_21 : f32 to vector<64x256xf32>
    %47 = vector.extract_strided_slice %45 {offsets = [0, 0, 0], sizes = [8, 8, 128], strides = [1, 1, 1]} : vector<12x8x128xf32> to vector<8x8x128xf32>
    %48 = vector.shape_cast %47 : vector<8x8x128xf32> to vector<64x128xf32>
    %c0_22 = arith.constant 0 : index
    %c0_23 = arith.constant 0 : index
    %c0_24 = arith.constant 0 : index
    %49 = vector.load %arg4[%c0_22, %c0_23, %c0_24] : memref<5x128x256xf32, #tpu.memory_space<vmem>>, vector<1x128x256xf32>
    %50 = vector.shape_cast %49 : vector<1x128x256xf32> to vector<128x256xf32>
    %cst_25 = arith.constant dense<0.000000e+00> : vector<64x256xf32>
    %51 = tpu.matmul %48, %50, %cst_25 {dimension_numbers = #tpu.dot_dimension_numbers<[1], [0], [0], [1], [0, 0, 1, 1], [], []>} : vector<64x128xf32>, vector<128x256xf32>, vector<64x256xf32> -> vector<64x256xf32>
    %52 = arith.addf %46, %51 : vector<64x256xf32>
    %53 = vector.extract_strided_slice %45 {offsets = [1, 0, 0], sizes = [8, 8, 128], strides = [1, 1, 1]} : vector<12x8x128xf32> to vector<8x8x128xf32>
    %54 = vector.shape_cast %53 : vector<8x8x128xf32> to vector<64x128xf32>
    %c1_26 = arith.constant 1 : index
    %c0_27 = arith.constant 0 : index
    %c0_28 = arith.constant 0 : index
    %55 = vector.load %arg4[%c1_26, %c0_27, %c0_28] : memref<5x128x256xf32, #tpu.memory_space<vmem>>, vector<1x128x256xf32>
    %56 = vector.shape_cast %55 : vector<1x128x256xf32> to vector<128x256xf32>
    %cst_29 = arith.constant dense<0.000000e+00> : vector<64x256xf32>
    %57 = tpu.matmul %54, %56, %cst_29 {dimension_numbers = #tpu.dot_dimension_numbers<[1], [0], [0], [1], [0, 0, 1, 1], [], []>} : vector<64x128xf32>, vector<128x256xf32>, vector<64x256xf32> -> vector<64x256xf32>
    %58 = arith.addf %52, %57 : vector<64x256xf32>
    %59 = vector.extract_strided_slice %45 {offsets = [2, 0, 0], sizes = [8, 8, 128], strides = [1, 1, 1]} : vector<12x8x128xf32> to vector<8x8x128xf32>
    %60 = vector.shape_cast %59 : vector<8x8x128xf32> to vector<64x128xf32>
    %c2_30 = arith.constant 2 : index
    %c0_31 = arith.constant 0 : index
    %c0_32 = arith.constant 0 : index
    %61 = vector.load %arg4[%c2_30, %c0_31, %c0_32] : memref<5x128x256xf32, #tpu.memory_space<vmem>>, vector<1x128x256xf32>
    %62 = vector.shape_cast %61 : vector<1x128x256xf32> to vector<128x256xf32>
    %cst_33 = arith.constant dense<0.000000e+00> : vector<64x256xf32>
    %63 = tpu.matmul %60, %62, %cst_33 {dimension_numbers = #tpu.dot_dimension_numbers<[1], [0], [0], [1], [0, 0, 1, 1], [], []>} : vector<64x128xf32>, vector<128x256xf32>, vector<64x256xf32> -> vector<64x256xf32>
    %64 = arith.addf %58, %63 : vector<64x256xf32>
    %65 = vector.extract_strided_slice %45 {offsets = [3, 0, 0], sizes = [8, 8, 128], strides = [1, 1, 1]} : vector<12x8x128xf32> to vector<8x8x128xf32>
    %66 = vector.shape_cast %65 : vector<8x8x128xf32> to vector<64x128xf32>
    %c3_34 = arith.constant 3 : index
    %c0_35 = arith.constant 0 : index
    %c0_36 = arith.constant 0 : index
    %67 = vector.load %arg4[%c3_34, %c0_35, %c0_36] : memref<5x128x256xf32, #tpu.memory_space<vmem>>, vector<1x128x256xf32>
    %68 = vector.shape_cast %67 : vector<1x128x256xf32> to vector<128x256xf32>
    %cst_37 = arith.constant dense<0.000000e+00> : vector<64x256xf32>
    %69 = tpu.matmul %66, %68, %cst_37 {dimension_numbers = #tpu.dot_dimension_numbers<[1], [0], [0], [1], [0, 0, 1, 1], [], []>} : vector<64x128xf32>, vector<128x256xf32>, vector<64x256xf32> -> vector<64x256xf32>
    %70 = arith.addf %64, %69 : vector<64x256xf32>
    %71 = vector.extract_strided_slice %45 {offsets = [4, 0, 0], sizes = [8, 8, 128], strides = [1, 1, 1]} : vector<12x8x128xf32> to vector<8x8x128xf32>
    %72 = vector.shape_cast %71 : vector<8x8x128xf32> to vector<64x128xf32>
    %c4_38 = arith.constant 4 : index
    %c0_39 = arith.constant 0 : index
    %c0_40 = arith.constant 0 : index
    %73 = vector.load %arg4[%c4_38, %c0_39, %c0_40] : memref<5x128x256xf32, #tpu.memory_space<vmem>>, vector<1x128x256xf32>
    %74 = vector.shape_cast %73 : vector<1x128x256xf32> to vector<128x256xf32>
    %cst_41 = arith.constant dense<0.000000e+00> : vector<64x256xf32>
    %75 = tpu.matmul %72, %74, %cst_41 {dimension_numbers = #tpu.dot_dimension_numbers<[1], [0], [0], [1], [0, 0, 1, 1], [], []>} : vector<64x128xf32>, vector<128x256xf32>, vector<64x256xf32> -> vector<64x256xf32>
    %76 = arith.addf %70, %75 : vector<64x256xf32>
    %c0_42 = arith.constant 0 : index
    %c0_43 = arith.constant 0 : index
    %77 = vector.load %arg5[%c0_42, %c0_43] : memref<1x256xf32, #tpu.memory_space<vmem>>, vector<1x256xf32>
    %78 = vector.broadcast %77 : vector<1x256xf32> to vector<64x256xf32>
    %79 = arith.addf %76, %78 : vector<64x256xf32>
    %80 = vector.extract_strided_slice %79 {offsets = [0, 0], sizes = [64, 128], strides = [1, 1]} : vector<64x256xf32> to vector<64x128xf32>
    %81 = vector.extract_strided_slice %79 {offsets = [0, 128], sizes = [64, 128], strides = [1, 1]} : vector<64x256xf32> to vector<64x128xf32>
    %82 = arith.maximumf %80, %81 : vector<64x128xf32>
    %83 = vector.shape_cast %82 : vector<64x128xf32> to vector<4x2x8x128xf32>
    %84 = vector.extract_strided_slice %83 {offsets = [0, 0, 0, 0], sizes = [4, 1, 8, 128], strides = [1, 1, 1, 1]} : vector<4x2x8x128xf32> to vector<4x1x8x128xf32>
    %85 = vector.shape_cast %84 : vector<4x1x8x128xf32> to vector<4x8x128xf32>
    %86 = vector.extract_strided_slice %83 {offsets = [0, 1, 0, 0], sizes = [4, 1, 8, 128], strides = [1, 1, 1, 1]} : vector<4x2x8x128xf32> to vector<4x1x8x128xf32>
    %87 = vector.shape_cast %86 : vector<4x1x8x128xf32> to vector<4x8x128xf32>
    %88 = arith.maximumf %85, %87 : vector<4x8x128xf32>
    %cst_44 = arith.constant 0.000000e+00 : f32
    %89 = vector.broadcast %cst_44 : f32 to vector<4x8x128xf32>
    %90 = arith.maximumf %88, %89 : vector<4x8x128xf32>
    %cst_45 = arith.constant 0.000000e+00 : f32
    %91 = vector.broadcast %cst_45 : f32 to vector<8x128xf32>
    %92 = vector.extract_strided_slice %90 {offsets = [0, 0, 0], sizes = [1, 8, 128], strides = [1, 1, 1]} : vector<4x8x128xf32> to vector<1x8x128xf32>
    %93 = vector.shape_cast %92 : vector<1x8x128xf32> to vector<8x128xf32>
    %c0_46 = arith.constant 0 : index
    %c0_47 = arith.constant 0 : index
    %c0_48 = arith.constant 0 : index
    %94 = vector.load %arg6[%c0_46, %c0_47, %c0_48] : memref<4x128x128xf32, #tpu.memory_space<vmem>>, vector<1x128x128xf32>
    %95 = vector.shape_cast %94 : vector<1x128x128xf32> to vector<128x128xf32>
    %cst_49 = arith.constant dense<0.000000e+00> : vector<8x128xf32>
    %96 = tpu.matmul %93, %95, %cst_49 {dimension_numbers = #tpu.dot_dimension_numbers<[1], [0], [0], [1], [0, 0, 1, 1], [], []>} : vector<8x128xf32>, vector<128x128xf32>, vector<8x128xf32> -> vector<8x128xf32>
    %97 = arith.addf %91, %96 : vector<8x128xf32>
    %98 = vector.extract_strided_slice %90 {offsets = [1, 0, 0], sizes = [1, 8, 128], strides = [1, 1, 1]} : vector<4x8x128xf32> to vector<1x8x128xf32>
    %99 = vector.shape_cast %98 : vector<1x8x128xf32> to vector<8x128xf32>
    %c1_50 = arith.constant 1 : index
    %c0_51 = arith.constant 0 : index
    %c0_52 = arith.constant 0 : index
    %100 = vector.load %arg6[%c1_50, %c0_51, %c0_52] : memref<4x128x128xf32, #tpu.memory_space<vmem>>, vector<1x128x128xf32>
    %101 = vector.shape_cast %100 : vector<1x128x128xf32> to vector<128x128xf32>
    %cst_53 = arith.constant dense<0.000000e+00> : vector<8x128xf32>
    %102 = tpu.matmul %99, %101, %cst_53 {dimension_numbers = #tpu.dot_dimension_numbers<[1], [0], [0], [1], [0, 0, 1, 1], [], []>} : vector<8x128xf32>, vector<128x128xf32>, vector<8x128xf32> -> vector<8x128xf32>
    %103 = arith.addf %97, %102 : vector<8x128xf32>
    %104 = vector.extract_strided_slice %90 {offsets = [2, 0, 0], sizes = [1, 8, 128], strides = [1, 1, 1]} : vector<4x8x128xf32> to vector<1x8x128xf32>
    %105 = vector.shape_cast %104 : vector<1x8x128xf32> to vector<8x128xf32>
    %c2_54 = arith.constant 2 : index
    %c0_55 = arith.constant 0 : index
    %c0_56 = arith.constant 0 : index
    %106 = vector.load %arg6[%c2_54, %c0_55, %c0_56] : memref<4x128x128xf32, #tpu.memory_space<vmem>>, vector<1x128x128xf32>
    %107 = vector.shape_cast %106 : vector<1x128x128xf32> to vector<128x128xf32>
    %cst_57 = arith.constant dense<0.000000e+00> : vector<8x128xf32>
    %108 = tpu.matmul %105, %107, %cst_57 {dimension_numbers = #tpu.dot_dimension_numbers<[1], [0], [0], [1], [0, 0, 1, 1], [], []>} : vector<8x128xf32>, vector<128x128xf32>, vector<8x128xf32> -> vector<8x128xf32>
    %109 = arith.addf %103, %108 : vector<8x128xf32>
    %110 = vector.extract_strided_slice %90 {offsets = [3, 0, 0], sizes = [1, 8, 128], strides = [1, 1, 1]} : vector<4x8x128xf32> to vector<1x8x128xf32>
    %111 = vector.shape_cast %110 : vector<1x8x128xf32> to vector<8x128xf32>
    %c3_58 = arith.constant 3 : index
    %c0_59 = arith.constant 0 : index
    %c0_60 = arith.constant 0 : index
    %112 = vector.load %arg6[%c3_58, %c0_59, %c0_60] : memref<4x128x128xf32, #tpu.memory_space<vmem>>, vector<1x128x128xf32>
    %113 = vector.shape_cast %112 : vector<1x128x128xf32> to vector<128x128xf32>
    %cst_61 = arith.constant dense<0.000000e+00> : vector<8x128xf32>
    %114 = tpu.matmul %111, %113, %cst_61 {dimension_numbers = #tpu.dot_dimension_numbers<[1], [0], [0], [1], [0, 0, 1, 1], [], []>} : vector<8x128xf32>, vector<128x128xf32>, vector<8x128xf32> -> vector<8x128xf32>
    %115 = arith.addf %109, %114 : vector<8x128xf32>
    %c0_62 = arith.constant 0 : index
    %c0_63 = arith.constant 0 : index
    %116 = vector.load %arg7[%c0_62, %c0_63] : memref<1x128xf32, #tpu.memory_space<vmem>>, vector<1x128xf32>
    %117 = vector.broadcast %116 : vector<1x128xf32> to vector<8x128xf32>
    %118 = arith.addf %115, %117 : vector<8x128xf32>
    %cst_64 = arith.constant 0.000000e+00 : f32
    %119 = vector.broadcast %cst_64 : f32 to vector<8x128xf32>
    %120 = arith.maximumf %118, %119 : vector<8x128xf32>
    %c0_65 = arith.constant 0 : index
    %c0_66 = arith.constant 0 : index
    %121 = vector.load %arg8[%c0_65, %c0_66] : memref<128x128xf32, #tpu.memory_space<vmem>>, vector<128x128xf32>
    %cst_67 = arith.constant dense<0.000000e+00> : vector<8x128xf32>
    %122 = tpu.matmul %120, %121, %cst_67 {dimension_numbers = #tpu.dot_dimension_numbers<[1], [0], [0], [1], [0, 0, 1, 1], [], []>} : vector<8x128xf32>, vector<128x128xf32>, vector<8x128xf32> -> vector<8x128xf32>
    %c0_68 = arith.constant 0 : index
    %c0_69 = arith.constant 0 : index
    %123 = vector.load %arg9[%c0_68, %c0_69] : memref<1x128xf32, #tpu.memory_space<vmem>>, vector<1x128xf32>
    %124 = vector.broadcast %123 : vector<1x128xf32> to vector<8x128xf32>
    %125 = arith.addf %122, %124 : vector<8x128xf32>
    %126 = tpu.iota {dimensions = array<i32: 1>} : vector<8x128xi32>
    %c10_i32 = arith.constant 10 : i32
    %127 = vector.broadcast %c10_i32 : i32 to vector<8x128xi32>
    %128 = arith.cmpi slt, %126, %127 : vector<8x128xi32>
    %cst_70 = arith.constant -1.000000e+30 : f32
    %129 = vector.broadcast %cst_70 : f32 to vector<8x128xf32>
    %130 = arith.select %128, %125, %129 : vector<8x128xi1>, vector<8x128xf32>
    %cst_71 = arith.constant dense<0xFF800000> : vector<8xf32>
    %131 = vector.multi_reduction <maximumf>, %130, %cst_71 [1] : vector<8x128xf32> to vector<8xf32>
    %132 = vector.shape_cast %131 : vector<8xf32> to vector<8x1xf32>
    %133 = vector.broadcast %132 : vector<8x1xf32> to vector<8x128xf32>
    %134 = arith.subf %130, %133 : vector<8x128xf32>
    %135 = math.exp %134 : vector<8x128xf32>
    %cst_72 = arith.constant dense<0.000000e+00> : vector<8xf32>
    %136 = vector.multi_reduction <add>, %135, %cst_72 [1] : vector<8x128xf32> to vector<8xf32>
    %137 = vector.shape_cast %136 : vector<8xf32> to vector<8x1xf32>
    %138 = math.log %137 : vector<8x1xf32>
    %139 = arith.addf %132, %138 : vector<8x1xf32>
    %140 = vector.broadcast %139 : vector<8x1xf32> to vector<8x128xf32>
    %141 = arith.subf %125, %140 : vector<8x128xf32>
    %c0_73 = arith.constant 0 : index
    %c0_74 = arith.constant 0 : index
    %142 = vector.load %arg10[%c0_73, %c0_74] : memref<8x128xf32, #tpu.memory_space<vmem>>, vector<8x128xf32>
    tpu.vector_store %arg10[%c0_73, %c0_74], %141 {strides = array<i32>} : memref<8x128xf32, #tpu.memory_space<vmem>>, vector<8x128xf32>,
    return
  }
  func.func @transform_0(%arg0: i32) -> (i32, i32, i32) {
    %c0_i32 = arith.constant 0 : i32
    %c0_i32_0 = arith.constant 0 : i32
    %c0_i32_1 = arith.constant 0 : i32
    return %c0_i32, %arg0, %c0_i32_0 : i32, i32, i32
  }
  func.func @transform_1(%arg0: i32) -> (i32, i32, i32) {
    %c0_i32 = arith.constant 0 : i32
    %c0_i32_0 = arith.constant 0 : i32
    %c0_i32_1 = arith.constant 0 : i32
    %c0_i32_2 = arith.constant 0 : i32
    return %c0_i32, %c0_i32_0, %c0_i32_1 : i32, i32, i32
  }
  func.func @transform_2(%arg0: i32) -> (i32, i32) {
    %c0_i32 = arith.constant 0 : i32
    %c0_i32_0 = arith.constant 0 : i32
    %c0_i32_1 = arith.constant 0 : i32
    return %c0_i32, %c0_i32_0 : i32, i32
  }
  func.func @transform_3(%arg0: i32) -> (i32, i32, i32) {
    %c0_i32 = arith.constant 0 : i32
    %c0_i32_0 = arith.constant 0 : i32
    %c0_i32_1 = arith.constant 0 : i32
    %c0_i32_2 = arith.constant 0 : i32
    return %c0_i32, %c0_i32_0, %c0_i32_1 : i32, i32, i32
  }
  func.func @transform_4(%arg0: i32) -> (i32, i32) {
    %c0_i32 = arith.constant 0 : i32
    %c0_i32_0 = arith.constant 0 : i32
    %c0_i32_1 = arith.constant 0 : i32
    return %c0_i32, %c0_i32_0 : i32, i32
  }
  func.func @transform_5(%arg0: i32) -> (i32, i32, i32) {
    %c0_i32 = arith.constant 0 : i32
    %c0_i32_0 = arith.constant 0 : i32
    %c0_i32_1 = arith.constant 0 : i32
    %c0_i32_2 = arith.constant 0 : i32
    return %c0_i32, %c0_i32_0, %c0_i32_1 : i32, i32, i32
  }
  func.func @transform_6(%arg0: i32) -> (i32, i32) {
    %c0_i32 = arith.constant 0 : i32
    %c0_i32_0 = arith.constant 0 : i32
    %c0_i32_1 = arith.constant 0 : i32
    return %c0_i32, %c0_i32_0 : i32, i32
  }
  func.func @transform_7(%arg0: i32) -> (i32, i32) {
    %c0_i32 = arith.constant 0 : i32
    %c0_i32_0 = arith.constant 0 : i32
    %c0_i32_1 = arith.constant 0 : i32
    return %c0_i32, %c0_i32_0 : i32, i32
  }
  func.func @transform_8(%arg0: i32) -> (i32, i32) {
    %c0_i32 = arith.constant 0 : i32
    %c0_i32_0 = arith.constant 0 : i32
    %c0_i32_1 = arith.constant 0 : i32
    return %c0_i32, %c0_i32_0 : i32, i32
  }
  func.func @transform_9(%arg0: i32) -> (i32, i32) {
    %c0_i32 = arith.constant 0 : i32
    %c0_i32_0 = arith.constant 0 : i32
    return %arg0, %c0_i32 : i32, i32
  }
}

</mosaic_0001>

<llo_original>
// kernel: tile.13
$region0: #{tile.13}
  #allocation0 [shape = 's32[1]{0}', space=sflag, size = 0x4, scoped, tag = 'scoped memory for tile.13']
  %s0 = inlined_call_operand.vmem [shape: f32[10], index: 0, kind: input, shape index: {}]
  %s1 = inlined_call_operand.vmem [shape: f32[12,10], index: 1, kind: output, shape index: {}]
  // Predicated region
  $region2: #{tile.13} parent=0 // pred_check
    _
  $region3: #{tile.13} parent=0 // pred_check_branch
    %3 = sbr.rel (0) target = $region5
  $region4: #{tile.13} parent=0 // pred_region
    _
  $region5: #{tile.13} parent=0 // pred_fallthru
    _
  %v4 = vld [vmem:[%s0] ss:$0 sm:$0xff]
  %5 = vst [vmem:[%s1] sm:$0xff] %v4
  %s6 = scalar_lea.vmem %s1, 8
  %7 = vst [vmem:[%s6] sm:$0xff] %v4

// kernel: tile.14
$region0: #{tile.14}
  %s0 = inlined_call_operand.vmem [shape: f32[12,10], index: 0, kind: input, shape index: {}]
  %s1 = inlined_call_operand.vmem [shape: f32[120], index: 1, kind: output, shape index: {}]
  $region1: #{tile.14} parent=0
    #allocation0 [shape = 'u8[4096]{0}', space=vmem, size = 0x1000, scoped, tag = 'scoped mem for output reshape']
    %v2 = vld [vmem:[%s0] sm:$0x1]
    %vm3 = vcmask 80896
    %4 = vst.msk [vmem:[#allocation0] sm:$0x1] %vm3, %v2
    %s5 = scalar_lea.vmem %s0, 11
    %v6 = vld [vmem:[%s5] sm:$0x1]
    %7 = vrot.lane.b32.xlu0 %v6, 110
    %v8 = vpop.permute.xlu0 %7
    %vm9 = vcmask 982896
    %10 = vst.msk [vmem:[#allocation0] sm:$0x1] %vm9, %v8
    %s11 = scalar_lea.vmem %s0, 10
    %v12 = vld [vmem:[%s11] sm:$0x1]
    %13 = vrot.lane.b32.xlu0 %v12, 100
    %v14 = vpop.permute.xlu0 %13
    %vm15 = vcmask 900896
    %16 = vst.msk [vmem:[#allocation0] sm:$0x1] %vm15, %v14
    %s17 = scalar_lea.vmem %s0, 9
    %v18 = vld [vmem:[%s17] sm:$0x1]
    %19 = vrot.lane.b32.xlu0 %v18, 90
    %v20 = vpop.permute.xlu0 %19
    %vm21 = vcmask 818896
    %22 = vst.msk [vmem:[#allocation0] sm:$0x1] %vm21, %v20
    %s23 = scalar_lea.vmem %s0, 8
    %v24 = vld [vmem:[%s23] sm:$0x1]
    %25 = vrot.lane.b32.xlu0 %v24, 80
    %v26 = vpop.permute.xlu0 %25
    %vm27 = vcmask 736896
    %28 = vst.msk [vmem:[#allocation0] sm:$0x1] %vm27, %v26
    %s29 = scalar_lea.vmem %s0, 7
    %v30 = vld [vmem:[%s29] sm:$0x1]
    %31 = vrot.lane.b32.xlu0 %v30, 70
    %v32 = vpop.permute.xlu0 %31
    %vm33 = vcmask 654896
    %34 = vst.msk [vmem:[#allocation0] sm:$0x1] %vm33, %v32
    %s35 = scalar_lea.vmem %s0, 6
    %v36 = vld [vmem:[%s35] sm:$0x1]
    %37 = vrot.lane.b32.xlu0 %v36, 60
    %v38 = vpop.permute.xlu0 %37
    %vm39 = vcmask 572896
    %40 = vst.msk [vmem:[#allocation0] sm:$0x1] %vm39, %v38
    %s41 = scalar_lea.vmem %s0, 5
    %v42 = vld [vmem:[%s41] sm:$0x1]
    %43 = vrot.lane.b32.xlu0 %v42, 50
    %v44 = vpop.permute.xlu0 %43
    %vm45 = vcmask 490896
    %46 = vst.msk [vmem:[#allocation0] sm:$0x1] %vm45, %v44
    %s47 = scalar_lea.vmem %s0, 4
    %v48 = vld [vmem:[%s47] sm:$0x1]
    %49 = vrot.lane.b32.xlu0 %v48, 40
    %v50 = vpop.permute.xlu0 %49
    %vm51 = vcmask 408896
    %52 = vst.msk [vmem:[#allocation0] sm:$0x1] %vm51, %v50
    %s53 = scalar_lea.vmem %s0, 3
    %v54 = vld [vmem:[%s53] sm:$0x1]
    %55 = vrot.lane.b32.xlu0 %v54, 30
    %v56 = vpop.permute.xlu0 %55
    %vm57 = vcmask 326896
    %58 = vst.msk [vmem:[#allocation0] sm:$0x1] %vm57, %v56
    %s59 = scalar_lea.vmem %s0, 2
    %v60 = vld [vmem:[%s59] sm:$0x1]
    %61 = vrot.lane.b32.xlu0 %v60, 20
    %v62 = vpop.permute.xlu0 %61
    %vm63 = vcmask 244896
    %64 = vst.msk [vmem:[#allocation0] sm:$0x1] %vm63, %v62
    %s65 = scalar_lea.vmem %s0, 1
    %v66 = vld [vmem:[%s65] sm:$0x1]
    %67 = vrot.lane.b32.xlu0 %v66, 10
    %v68 = vpop.permute.xlu0 %67
    %vm69 = vcmask 162896
    %70 = vst.msk [vmem:[#allocation0] sm:$0x1] %vm69, %v68
    %s72 = sshll.u32 1, 1
    %s73 = ssub.s32 %s72, 1
    %v75 = vld [vmem:[#allocation0] sm:%s73]
    %s76 = sshll.u32 1, 1
    %s77 = ssub.s32 %s76, 1
    %78 = vst [vmem:[%s1] sm:%s77] %v75

// kernel: tile.18
$region0: #{tile.18}
  #allocation0 [shape = 's32[1]{0}', space=sflag, size = 0x4, scoped, tag = 'scoped memory for tile.18']
  %s0 = inlined_call_operand.vmem [shape: f32[20], index: 0, kind: input, shape index: {}]
  %s1 = inlined_call_operand.vmem [shape: f32[4,20], index: 1, kind: output, shape index: {}]
  // Predicated region
  $region2: #{tile.18} parent=0 // pred_check
    _
  $region3: #{tile.18} parent=0 // pred_check_branch
    %3 = sbr.rel (0) target = $region5
  $region4: #{tile.18} parent=0 // pred_region
    _
  $region5: #{tile.18} parent=0 // pred_fallthru
    _
  %v4 = vld [vmem:[%s0] ss:$0 sm:$0xff]
  %5 = vst [vmem:[%s1] sm:$0xf] %v4

// kernel: tile.19
$region0: #{tile.19}
  %s0 = inlined_call_operand.vmem [shape: f32[4,20], index: 0, kind: input, shape index: {}]
  %s1 = inlined_call_operand.vmem [shape: f32[80], index: 1, kind: output, shape index: {}]
  $region1: #{tile.19} parent=0
    #allocation0 [shape = 'u8[4096]{0}', space=vmem, size = 0x1000, scoped, tag = 'scoped mem for output reshape']
    #allocation1 [shape = 'u8[4096]{0}', space=vmem, size = 0x1000, scoped, tag = 'scoped mem for input reshape']
    %s3 = sshll.u32 1, 4
    %s4 = ssub.s32 %s3, 1
    %v5 = vld [vmem:[%s0] sm:%s4]
    %6 = vst [vmem:[#allocation1] sm:%s4] %v5
    %v7 = vld [vmem:[#allocation1] sm:$0x1]
    %vm8 = vcmask 162816
    %9 = vst.msk [vmem:[#allocation0] sm:$0x1] %vm8, %v7
    %s10 = scalar_lea.vmem [#allocation1], 3
    %v11 = vld [vmem:[%s10] sm:$0x1]
    %12 = vrot.lane.b32.xlu0 %v11, 60
    %v13 = vpop.permute.xlu0 %12
    %vm14 = vcmask 654816
    %15 = vst.msk [vmem:[#allocation0] sm:$0x1] %vm14, %v13
    %s16 = scalar_lea.vmem [#allocation1], 2
    %v17 = vld [vmem:[%s16] sm:$0x1]
    %18 = vrot.lane.b32.xlu0 %v17, 40
    %v19 = vpop.permute.xlu0 %18
    %vm20 = vcmask 490816
    %21 = vst.msk [vmem:[#allocation0] sm:$0x1] %vm20, %v19
    %s22 = scalar_lea.vmem [#allocation1], 1
    %v23 = vld [vmem:[%s22] sm:$0x1]
    %24 = vrot.lane.b32.xlu0 %v23, 20
    %v25 = vpop.permute.xlu0 %24
    %vm26 = vcmask 326816
    %27 = vst.msk [vmem:[#allocation0] sm:$0x1] %vm26, %v25
    %s29 = sshll.u32 1, 1
    %s30 = ssub.s32 %s29, 1
    %v32 = vld [vmem:[#allocation0] sm:%s30]
    %s33 = sshll.u32 1, 1
    %s34 = ssub.s32 %s33, 1
    %35 = vst [vmem:[%s1] sm:%s34] %v32

// kernel: _net_forward_impl.1
$region0: #{_net_forward_impl.1}
  #allocation0 [shape = 'u32[]', space=smem, size = 0x4, offset = 0x4, fixed_abs, tag = 'smem constant byte address 0x4 - core index']
  #allocation1 [shape = 'u32[144,128]{1,0:T(1,128)}', space=vmem, size = 0x12000, scoped, tag = 'internal scratch']
  %s0 = inlined_call_operand.vmem [shape: f32[28,8,28], index: 0, kind: input, shape index: {}]
  %s1 = inlined_call_operand.vmem [shape: f32[5,28,256], index: 1, kind: input, shape index: {}]
  %s2 = inlined_call_operand.vmem [shape: f32[1,256], index: 2, kind: input, shape index: {}]
  %s3 = inlined_call_operand.vmem [shape: f32[5,128,256], index: 3, kind: input, shape index: {}]
  %s4 = inlined_call_operand.vmem [shape: f32[1,256], index: 4, kind: input, shape index: {}]
  %s5 = inlined_call_operand.vmem [shape: f32[4,128,128], index: 5, kind: input, shape index: {}]
  %s6 = inlined_call_operand.vmem [shape: f32[1,128], index: 6, kind: input, shape index: {}]
  %s7 = inlined_call_operand.vmem [shape: f32[128,128], index: 7, kind: input, shape index: {}]
  %s8 = inlined_call_operand.vmem [shape: f32[1,128], index: 8, kind: input, shape index: {}]
  %s9 = inlined_call_operand.vmem [shape: f32[8,128], index: 9, kind: output, shape index: {}]
  %s10 = sld [smem:[#allocation0]]
  $region46: #{_net_forward_impl.1} parent=0
    _
  %s12 = ssub.s32 1, %s10
  %s13 = scalar_select 0, %s12, %s10
  // Predicated region
  $region2: #{_net_forward_impl.1} parent=0 // pred_check
    _
  $region3: #{_net_forward_impl.1} parent=0 // pred_check_branch
    %15 = sbr.rel (0) target = $region5
  $region4: #{_net_forward_impl.1} parent=0 // pred_region
    _
  $region5: #{_net_forward_impl.1} parent=0 // pred_fallthru
    _
  // Predicated region
  $region6: #{_net_forward_impl.1} parent=0 // pred_check
    _
  $region7: #{_net_forward_impl.1} parent=0 // pred_check_branch
    %17 = sbr.rel (0) target = $region9
  $region8: #{_net_forward_impl.1} parent=0 // pred_region
    _
  $region9: #{_net_forward_impl.1} parent=0 // pred_fallthru
    _
  // Predicated region
  $region10: #{_net_forward_impl.1} parent=0 // pred_check
    _
  $region11: #{_net_forward_impl.1} parent=0 // pred_check_branch
    %19 = sbr.rel (0) target = $region13
  $region12: #{_net_forward_impl.1} parent=0 // pred_region
    _
  $region13: #{_net_forward_impl.1} parent=0 // pred_fallthru
    _
  // Predicated region
  $region14: #{_net_forward_impl.1} parent=0 // pred_check
    _
  $region15: #{_net_forward_impl.1} parent=0 // pred_check_branch
    %21 = sbr.rel (0) target = $region17
  $region16: #{_net_forward_impl.1} parent=0 // pred_region
    _
  $region17: #{_net_forward_impl.1} parent=0 // pred_fallthru
    _
  // Predicated region
  $region18: #{_net_forward_impl.1} parent=0 // pred_check
    _
  $region19: #{_net_forward_impl.1} parent=0 // pred_check_branch
    %23 = sbr.rel (0) target = $region21
  $region20: #{_net_forward_impl.1} parent=0 // pred_region
    _
  $region21: #{_net_forward_impl.1} parent=0 // pred_fallthru
    _
  // Predicated region
  $region22: #{_net_forward_impl.1} parent=0 // pred_check
    _
  $region23: #{_net_forward_impl.1} parent=0 // pred_check_branch
    %25 = sbr.rel (0) target = $region25
  $region24: #{_net_forward_impl.1} parent=0 // pred_region
    _
  $region25: #{_net_forward_impl.1} parent=0 // pred_fallthru
    _
  // Predicated region
  $region26: #{_net_forward_impl.1} parent=0 // pred_check
    _
  $region27: #{_net_forward_impl.1} parent=0 // pred_check_branch
    %27 = sbr.rel (0) target = $region29
  $region28: #{_net_forward_impl.1} parent=0 // pred_region
    _
  $region29: #{_net_forward_impl.1} parent=0 // pred_fallthru
    _
  // Predicated region
  $region30: #{_net_forward_impl.1} parent=0 // pred_check
    _
  $region31: #{_net_forward_impl.1} parent=0 // pred_check_branch
    %29 = sbr.rel (0) target = $region33
  $region32: #{_net_forward_impl.1} parent=0 // pred_region
    _
  $region33: #{_net_forward_impl.1} parent=0 // pred_fallthru
    _
  // Predicated region
  $region34: #{_net_forward_impl.1} parent=0 // pred_check
    _
  $region35: #{_net_forward_impl.1} parent=0 // pred_check_branch
    %31 = sbr.rel (0) target = $region37
  $region36: #{_net_forward_impl.1} parent=0 // pred_region
    _
  $region37: #{_net_forward_impl.1} parent=0 // pred_fallthru
    _
  %v32 = vld [vmem:[%s0] sm:$0xff]
  %v33 = vld [vmem:[%s0 + $0x8] sm:$0xff]
  %v34 = vld [vmem:[%s0 + $0x10] sm:$0xff]
  %v35 = vld [vmem:[%s0 + $0x18] sm:$0xff]
  %v36 = vld [vmem:[%s0 + $0x20] sm:$0xff]
  %v37 = vld [vmem:[%s0 + $0x28] sm:$0xff]
  %v38 = vld [vmem:[%s0 + $0x30] sm:$0xff]
  %v39 = vld [vmem:[%s0 + $0x38] sm:$0xff]
  %v40 = vld [vmem:[%s0 + $0x40] sm:$0xff]
  %v41 = vld [vmem:[%s0 + $0x48] sm:$0xff]
  %v42 = vld [vmem:[%s0 + $0x50] sm:$0xff]
  %v43 = vld [vmem:[%s0 + $0x58] sm:$0xff]
  %v44 = vld [vmem:[%s0 + $0x60] sm:$0xff]
  %v45 = vld [vmem:[%s0 + $0x68] sm:$0xff]
  %v46 = vld [vmem:[%s0 + $0x70] sm:$0xff]
  %v47 = vld [vmem:[%s0 + $0x78] sm:$0xff]
  %v48 = vld [vmem:[%s0 + $0x80] sm:$0xff]
  %v49 = vld [vmem:[%s0 + $0x88] sm:$0xff]
  %v50 = vld [vmem:[%s0 + $0x90] sm:$0xff]
  %v51 = vld [vmem:[%s0 + $0x98] sm:$0xff]
  %v52 = vld [vmem:[%s0 + $0xa0] sm:$0xff]
  %v53 = vld [vmem:[%s0 + $0xa8] sm:$0xff]
  %v54 = vld [vmem:[%s0 + $0xb0] sm:$0xff]
  %v55 = vld [vmem:[%s0 + $0xb8] sm:$0xff]
  %v56 = vld [vmem:[%s0 + $0xc0] sm:$0xff]
  %v57 = vld [vmem:[%s0 + $0xc8] sm:$0xff]
  %v58 = vld [vmem:[%s0 + $0xd0] sm:$0xff]
  %v59 = vld [vmem:[%s0 + $0xd8] sm:$0xff]
  %v60 = vld [vmem:[%s1] sm:$0xff]
  %v61 = vld [vmem:[%s1 + $0x8] sm:$0xff]
  %v62 = vld [vmem:[%s1 + $0x10] sm:$0xff]
  %v63 = vld [vmem:[%s1 + $0x18] sm:$0xff]
  %v64 = vld [vmem:[%s1 + $0x20] sm:$0xff]
  %v65 = vld [vmem:[%s1 + $0x28] sm:$0xff]
  %v66 = vld [vmem:[%s1 + $0x30] sm:$0xf]
  %v67 = vld [vmem:[%s1 + $0x38] sm:$0xf]
  %s68 = scalar_lea.vmem %s1, 64
  %v69 = vld [vmem:[%s68] sm:$0xff]
  %v70 = vld [vmem:[%s68 + $0x8] sm:$0xff]
  %v71 = vld [vmem:[%s68 + $0x10] sm:$0xff]
  %v72 = vld [vmem:[%s68 + $0x18] sm:$0xff]
  %v73 = vld [vmem:[%s68 + $0x20] sm:$0xff]
  %v74 = vld [vmem:[%s68 + $0x28] sm:$0xff]
  %v75 = vld [vmem:[%s68 + $0x30] sm:$0xf]
  %v76 = vld [vmem:[%s68 + $0x38] sm:$0xf]
  %vm77 = vcmask 228352
  %v79 = vsel %vm77, %v33, 0
  %v82 = vsel %vm77, %v34, 0
  %v85 = vsel %vm77, %v35, 0
  %v88 = vsel %vm77, %v36, 0
  %v91 = vsel %vm77, %v37, 0
  %v94 = vsel %vm77, %v38, 0
  %v97 = vsel %vm77, %v39, 0
  %v100 = vsel %vm77, %v40, 0
  %v103 = vsel %vm77, %v41, 0
  %v106 = vsel %vm77, %v42, 0
  %v109 = vsel %vm77, %v43, 0
  %v112 = vsel %vm77, %v44, 0
  %v115 = vsel %vm77, %v45, 0
  %v118 = vsel %vm77, %v46, 0
  %v121 = vsel %vm77, %v47, 0
  %v124 = vsel %vm77, %v48, 0
  %v127 = vsel %vm77, %v49, 0
  %v130 = vsel %vm77, %v50, 0
  %v133 = vsel %vm77, %v51, 0
  %v136 = vsel %vm77, %v52, 0
  %v139 = vsel %vm77, %v53, 0
  %v142 = vsel %vm77, %v54, 0
  %v145 = vsel %vm77, %v55, 0
  %v148 = vsel %vm77, %v56, 0
  %vm150 = vcmask 1043456
  %v152 = vsel %vm150, %v75, 0
  %v155 = vsel %vm150, %v76, 0
  %157 = vmatprep.subr.mxu0 0.0
  %158 = vmatpush1.msra.mxu0 0.0
  %159 = vmatprep.subr.mxu0 0.0
  %160 = vmatpush1.msra.mxu0 0.0
  %161 = vmatprep.subr.mxu0 0.0
  %162 = vmatpush1.msra.mxu0 0.0
  %163 = vmatprep.subr.mxu0 0.0
  %164 = vmatpush1.msra.mxu0 0.0
  %165 = vmatprep.subr.mxu0 0.0
  %166 = vmatpush1.msra.mxu0 0.0
  %167 = vmatprep.subr.mxu0 0.0
  %168 = vmatpush1.msra.mxu0 0.0
  %169 = vmatprep.subr.mxu0 0.0
  %170 = vmatpush1.msra.mxu0 0.0
  %171 = vmatprep.subr.mxu0 0.0
  %172 = vmatpush1.msra.mxu0 0.0
  %173 = vmatprep.subr.mxu0 0.0
  %174 = vmatpush1.msra.mxu0 0.0
  %175 = vmatprep.subr.mxu0 0.0
  %176 = vmatpush1.msra.mxu0 0.0
  %177 = vmatprep.subr.mxu0 0.0
  %178 = vmatpush1.msra.mxu0 0.0
  %179 = vmatprep.subr.mxu0 0.0
  %180 = vmatpush1.msra.mxu0 0.0
  %181 = vmatprep.subr.mxu0 %v155
  %182 = vmatpush1.msra.mxu0 %v152
  %183 = vmatprep.subr.mxu0 %v74
  %184 = vmatpush1.msra.mxu0 %v73
  %185 = vmatprep.subr.mxu0 %v72
  %186 = vmatpush1.msra.mxu0 %v71
  %187 = vmatprep.subr.mxu0 %v70
  %188 = vmatpush1.msra.mxu0 %v69
  %189 = vmatprep.subr.mxu0 0.0
  %190 = vmatpush2.msra.mxu0 0.0
  %191 = vmatprep.subr.mxu0 0.0
  %192 = vmatpush2.msra.mxu0 0.0
  %193 = vmatprep.subr.mxu0 0.0
  %194 = vmatpush2.msra.mxu0 0.0
  %195 = vmatprep.subr.mxu0 0.0
  %196 = vmatpush2.msra.mxu0 0.0
  %197 = vmatprep.subr.mxu0 0.0
  %198 = vmatpush2.msra.mxu0 0.0
  %199 = vmatprep.subr.mxu0 0.0
  %200 = vmatpush2.msra.mxu0 0.0
  %201 = vmatprep.subr.mxu0 0.0
  %202 = vmatpush2.msra.mxu0 0.0
  %203 = vmatprep.subr.mxu0 0.0
  %204 = vmatpush2.msra.mxu0 0.0
  %205 = vmatprep.subr.mxu0 0.0
  %206 = vmatpush2.msra.mxu0 0.0
  %207 = vmatprep.subr.mxu0 0.0
  %208 = vmatpush2.msra.mxu0 0.0
  %209 = vmatprep.subr.mxu0 0.0
  %210 = vmatpush2.msra.mxu0 0.0
  %211 = vmatprep.subr.mxu0 0.0
  %212 = vmatpush2.msra.mxu0 0.0
  %213 = vmatprep.subr.mxu0 0.0
  %214 = vmatpush2.msra.mxu0 0.0
  %215 = vmatprep.subr.mxu0 0.0
  %216 = vmatpush2.msra.mxu0 0.0
  %217 = vmatprep.subr.mxu0 0.0
  %218 = vmatpush2.msra.mxu0 0.0
  %219 = vmatprep.subr.mxu0 0.0
  %220 = vmatpush2.msra.mxu0 0.0
  %221 = vmatprep.mubr.f32.mxu0 0.0
  %222 = vmatmul.mubr.f32.gmra.mxu0 %v79
  %v223 = vpop.f32.mrf.mxu0
  %v224 = vadd.f32 0.0, %v223
  %v225 = vpop.f32.mrf.mxu0
  %v226 = vadd.f32 0.0, %v225
  %227 = vmatprep.mubr.f32.mxu0 0.0
  %228 = vmatmul.mubr.f32.gmra.mxu0 %v82
  %v229 = vpop.f32.mrf.mxu0
  %v230 = vadd.f32 0.0, %v229
  %v231 = vpop.f32.mrf.mxu0
  %v232 = vadd.f32 0.0, %v231
  %233 = vmatprep.mubr.f32.mxu0 0.0
  %234 = vmatmul.mubr.f32.gmra.mxu0 %v85
  %v235 = vpop.f32.mrf.mxu0
  %v236 = vadd.f32 0.0, %v235
  %v237 = vpop.f32.mrf.mxu0
  %v238 = vadd.f32 0.0, %v237
  %239 = vmatprep.mubr.f32.mxu0 0.0
  %240 = vmatmul.mubr.f32.gmra.mxu0 %v88
  %v241 = vpop.f32.mrf.mxu0
  %v242 = vadd.f32 0.0, %v241
  %v243 = vpop.f32.mrf.mxu0
  %v244 = vadd.f32 0.0, %v243
  %245 = vmatprep.mubr.f32.mxu0 0.0
  %246 = vmatmul.mubr.f32.gmra.mxu0 %v91
  %v247 = vpop.f32.mrf.mxu0
  %v248 = vadd.f32 0.0, %v247
  %v249 = vpop.f32.mrf.mxu0
  %v250 = vadd.f32 0.0, %v249
  %251 = vmatprep.mubr.f32.mxu0 0.0
  %252 = vmatmul.mubr.f32.gmra.mxu0 %v94
  %v253 = vpop.f32.mrf.mxu0
  %v254 = vadd.f32 0.0, %v253
  %v255 = vpop.f32.mrf.mxu0
  %v256 = vadd.f32 0.0, %v255
  %257 = vmatprep.mubr.f32.mxu0 0.0
  %258 = vmatmul.mubr.f32.gmra.mxu0 %v97
  %v259 = vpop.f32.mrf.mxu0
  %v260 = vadd.f32 0.0, %v259
  %v261 = vpop.f32.mrf.mxu0
  %v262 = vadd.f32 0.0, %v261
  %263 = vmatprep.mubr.f32.mxu0 0.0
  %264 = vmatmul.mubr.f32.gmra.mxu0 %v100
  %v265 = vpop.f32.mrf.mxu0
  %v266 = vadd.f32 0.0, %v265
  %v267 = vpop.f32.mrf.mxu0
  %v268 = vadd.f32 0.0, %v267
  %269 = vmatprep.mubr.f32.mxu0 0.0
  %270 = vmatmul.mubr.f32.gmra.mxu0 %v103
  %v271 = vpop.f32.mrf.mxu0
  %v272 = vadd.f32 0.0, %v271
  %v273 = vpop.f32.mrf.mxu0
  %v274 = vadd.f32 0.0, %v273
  %275 = vmatprep.mubr.f32.mxu0 0.0
  %276 = vmatmul.mubr.f32.gmra.mxu0 %v106
  %v277 = vpop.f32.mrf.mxu0
  %v278 = vadd.f32 0.0, %v277
  %v279 = vpop.f32.mrf.mxu0
  %v280 = vadd.f32 0.0, %v279
  %281 = vmatprep.mubr.f32.mxu0 0.0
  %282 = vmatmul.mubr.f32.gmra.mxu0 %v109
  %v283 = vpop.f32.mrf.mxu0
  %v284 = vadd.f32 0.0, %v283
  %v285 = vpop.f32.mrf.mxu0
  %v286 = vadd.f32 0.0, %v285
  %287 = vmatprep.mubr.f32.mxu0 0.0
  %288 = vmatmul.mubr.f32.gmra.mxu0 %v112
  %v289 = vpop.f32.mrf.mxu0
  %v290 = vadd.f32 0.0, %v289
  %v291 = vpop.f32.mrf.mxu0
  %v292 = vadd.f32 0.0, %v291
  %293 = vmatprep.mubr.f32.mxu0 0.0
  %294 = vmatmul.mubr.f32.gmra.mxu0 %v115
  %v295 = vpop.f32.mrf.mxu0
  %v296 = vadd.f32 0.0, %v295
  %v297 = vpop.f32.mrf.mxu0
  %v298 = vadd.f32 0.0, %v297
  %299 = vmatprep.mubr.f32.mxu0 0.0
  %300 = vmatmul.mubr.f32.gmra.mxu0 %v118
  %v301 = vpop.f32.mrf.mxu0
  %v302 = vadd.f32 0.0, %v301
  %v303 = vpop.f32.mrf.mxu0
  %v304 = vadd.f32 0.0, %v303
  %305 = vmatprep.mubr.f32.mxu0 0.0
  %306 = vmatmul.mubr.f32.gmra.mxu0 %v121
  %v307 = vpop.f32.mrf.mxu0
  %v308 = vadd.f32 0.0, %v307
  %v309 = vpop.f32.mrf.mxu0
  %v310 = vadd.f32 0.0, %v309
  %311 = vmatprep.mubr.f32.mxu0 0.0
  %312 = vmatmul.mubr.f32.gmra.mxu0 %v124
  %v313 = vpop.f32.mrf.mxu0
  %v314 = vadd.f32 0.0, %v313
  %v315 = vpop.f32.mrf.mxu0
  %v316 = vadd.f32 0.0, %v315
  %317 = vmatprep.mubr.f32.mxu0 0.0
  %318 = vmatmul.mubr.f32.gmra.mxu0 %v127
  %v319 = vpop.f32.mrf.mxu0
  %v320 = vadd.f32 0.0, %v319
  %v321 = vpop.f32.mrf.mxu0
  %v322 = vadd.f32 0.0, %v321
  %323 = vmatprep.mubr.f32.mxu0 0.0
  %324 = vmatmul.mubr.f32.gmra.mxu0 %v130
  %v325 = vpop.f32.mrf.mxu0
  %v326 = vadd.f32 0.0, %v325
  %v327 = vpop.f32.mrf.mxu0
  %v328 = vadd.f32 0.0, %v327
  %329 = vmatprep.mubr.f32.mxu0 0.0
  %330 = vmatmul.mubr.f32.gmra.mxu0 %v133
  %v331 = vpop.f32.mrf.mxu0
  %v332 = vadd.f32 0.0, %v331
  %v333 = vpop.f32.mrf.mxu0
  %v334 = vadd.f32 0.0, %v333
  %335 = vmatprep.mubr.f32.mxu0 0.0
  %336 = vmatmul.mubr.f32.gmra.mxu0 %v136
  %v337 = vpop.f32.mrf.mxu0
  %v338 = vadd.f32 0.0, %v337
  %v339 = vpop.f32.mrf.mxu0
  %v340 = vadd.f32 0.0, %v339
  %341 = vmatprep.mubr.f32.mxu0 0.0
  %342 = vmatmul.mubr.f32.gmra.mxu0 %v139
  %v343 = vpop.f32.mrf.mxu0
  %v344 = vadd.f32 0.0, %v343
  %v345 = vpop.f32.mrf.mxu0
  %v346 = vadd.f32 0.0, %v345
  %347 = vmatprep.mubr.f32.mxu0 0.0
  %348 = vmatmul.mubr.f32.gmra.mxu0 %v142
  %v349 = vpop.f32.mrf.mxu0
  %v350 = vadd.f32 0.0, %v349
  %v351 = vpop.f32.mrf.mxu0
  %v352 = vadd.f32 0.0, %v351
  %353 = vmatprep.mubr.f32.mxu0 0.0
  %354 = vmatmul.mubr.f32.gmra.mxu0 %v145
  %v355 = vpop.f32.mrf.mxu0
  %v356 = vadd.f32 0.0, %v355
  %v357 = vpop.f32.mrf.mxu0
  %v358 = vadd.f32 0.0, %v357
  %359 = vmatprep.mubr.f32.mxu0 0.0
  %360 = vmatmul.mubr.f32.gmra.mxu0 %v148
  %v361 = vpop.f32.mrf.mxu0
  %v362 = vadd.f32 0.0, %v361
  %v363 = vpop.f32.mrf.mxu0
  %v364 = vadd.f32 0.0, %v363
  %365 = vdwg.mxu0
  %v367 = vsel %vm77, %v32, 0
  %v370 = vsel %vm150, %v66, 0
  %v373 = vsel %vm150, %v67, 0
  %375 = vmatprep.subr.mxu0 0.0
  %376 = vmatpush1.msra.mxu0 0.0
  %377 = vmatprep.subr.mxu0 0.0
  %378 = vmatpush1.msra.mxu0 0.0
  %379 = vmatprep.subr.mxu0 0.0
  %380 = vmatpush1.msra.mxu0 0.0
  %381 = vmatprep.subr.mxu0 0.0
  %382 = vmatpush1.msra.mxu0 0.0
  %383 = vmatprep.subr.mxu0 0.0
  %384 = vmatpush1.msra.mxu0 0.0
  %385 = vmatprep.subr.mxu0 0.0
  %386 = vmatpush1.msra.mxu0 0.0
  %387 = vmatprep.subr.mxu0 0.0
  %388 = vmatpush1.msra.mxu0 0.0
  %389 = vmatprep.subr.mxu0 0.0
  %390 = vmatpush1.msra.mxu0 0.0
  %391 = vmatprep.subr.mxu0 0.0
  %392 = vmatpush1.msra.mxu0 0.0
  %393 = vmatprep.subr.mxu0 0.0
  %394 = vmatpush1.msra.mxu0 0.0
  %395 = vmatprep.subr.mxu0 0.0
  %396 = vmatpush1.msra.mxu0 0.0
  %397 = vmatprep.subr.mxu0 0.0
  %398 = vmatpush1.msra.mxu0 0.0
  %399 = vmatprep.subr.mxu0 %v373
  %400 = vmatpush1.msra.mxu0 %v370
  %401 = vmatprep.subr.mxu0 %v65
  %402 = vmatpush1.msra.mxu0 %v64
  %403 = vmatprep.subr.mxu0 %v63
  %404 = vmatpush1.msra.mxu0 %v62
  %405 = vmatprep.subr.mxu0 %v61
  %406 = vmatpush1.msra.mxu0 %v60
  %407 = vmatprep.subr.mxu0 0.0
  %408 = vmatpush2.msra.mxu0 0.0
  %409 = vmatprep.subr.mxu0 0.0
  %410 = vmatpush2.msra.mxu0 0.0
  %411 = vmatprep.subr.mxu0 0.0
  %412 = vmatpush2.msra.mxu0 0.0
  %413 = vmatprep.subr.mxu0 0.0
  %414 = vmatpush2.msra.mxu0 0.0
  %415 = vmatprep.subr.mxu0 0.0
  %416 = vmatpush2.msra.mxu0 0.0
  %417 = vmatprep.subr.mxu0 0.0
  %418 = vmatpush2.msra.mxu0 0.0
  %419 = vmatprep.subr.mxu0 0.0
  %420 = vmatpush2.msra.mxu0 0.0
  %421 = vmatprep.subr.mxu0 0.0
  %422 = vmatpush2.msra.mxu0 0.0
  %423 = vmatprep.subr.mxu0 0.0
  %424 = vmatpush2.msra.mxu0 0.0
  %425 = vmatprep.subr.mxu0 0.0
  %426 = vmatpush2.msra.mxu0 0.0
  %427 = vmatprep.subr.mxu0 0.0
  %428 = vmatpush2.msra.mxu0 0.0
  %429 = vmatprep.subr.mxu0 0.0
  %430 = vmatpush2.msra.mxu0 0.0
  %431 = vmatprep.subr.mxu0 0.0
  %432 = vmatpush2.msra.mxu0 0.0
  %433 = vmatprep.subr.mxu0 0.0
  %434 = vmatpush2.msra.mxu0 0.0
  %435 = vmatprep.subr.mxu0 0.0
  %436 = vmatpush2.msra.mxu0 0.0
  %437 = vmatprep.subr.mxu0 0.0
  %438 = vmatpush2.msra.mxu0 0.0
  %439 = vmatprep.mubr.f32.mxu0 0.0
  %440 = vmatmul.mubr.f32.gmra.mxu0 %v367
  %v441 = vpop.f32.mrf.mxu0
  %v442 = vadd.f32 %v224, %v441
  %v443 = vpop.f32.mrf.mxu0
  %v444 = vadd.f32 %v226, %v443
  %445 = vmatprep.mubr.f32.mxu0 0.0
  %446 = vmatmul.mubr.f32.gmra.mxu0 %v79
  %v447 = vpop.f32.mrf.mxu0
  %v448 = vadd.f32 %v230, %v447
  %v449 = vpop.f32.mrf.mxu0
  %v450 = vadd.f32 %v232, %v449
  %451 = vmatprep.mubr.f32.mxu0 0.0
  %452 = vmatmul.mubr.f32.gmra.mxu0 %v82
  %v453 = vpop.f32.mrf.mxu0
  %v454 = vadd.f32 %v236, %v453
  %v455 = vpop.f32.mrf.mxu0
  %v456 = vadd.f32 %v238, %v455
  %457 = vmatprep.mubr.f32.mxu0 0.0
  %458 = vmatmul.mubr.f32.gmra.mxu0 %v85
  %v459 = vpop.f32.mrf.mxu0
  %v460 = vadd.f32 %v242, %v459
  %v461 = vpop.f32.mrf.mxu0
  %v462 = vadd.f32 %v244, %v461
  %463 = vmatprep.mubr.f32.mxu0 0.0
  %464 = vmatmul.mubr.f32.gmra.mxu0 %v88
  %v465 = vpop.f32.mrf.mxu0
  %v466 = vadd.f32 %v248, %v465
  %v467 = vpop.f32.mrf.mxu0
  %v468 = vadd.f32 %v250, %v467
  %469 = vmatprep.mubr.f32.mxu0 0.0
  %470 = vmatmul.mubr.f32.gmra.mxu0 %v91
  %v471 = vpop.f32.mrf.mxu0
  %v472 = vadd.f32 %v254, %v471
  %v473 = vpop.f32.mrf.mxu0
  %v474 = vadd.f32 %v256, %v473
  %475 = vmatprep.mubr.f32.mxu0 0.0
  %476 = vmatmul.mubr.f32.gmra.mxu0 %v94
  %v477 = vpop.f32.mrf.mxu0
  %v478 = vadd.f32 %v260, %v477
  %v479 = vpop.f32.mrf.mxu0
  %v480 = vadd.f32 %v262, %v479
  %481 = vmatprep.mubr.f32.mxu0 0.0
  %482 = vmatmul.mubr.f32.gmra.mxu0 %v97
  %v483 = vpop.f32.mrf.mxu0
  %v484 = vadd.f32 %v266, %v483
  %v485 = vpop.f32.mrf.mxu0
  %v486 = vadd.f32 %v268, %v485
  %487 = vmatprep.mubr.f32.mxu0 0.0
  %488 = vmatmul.mubr.f32.gmra.mxu0 %v100
  %v489 = vpop.f32.mrf.mxu0
  %v490 = vadd.f32 %v272, %v489
  %v491 = vpop.f32.mrf.mxu0
  %v492 = vadd.f32 %v274, %v491
  %493 = vmatprep.mubr.f32.mxu0 0.0
  %494 = vmatmul.mubr.f32.gmra.mxu0 %v103
  %v495 = vpop.f32.mrf.mxu0
  %v496 = vadd.f32 %v278, %v495
  %v497 = vpop.f32.mrf.mxu0
  %v498 = vadd.f32 %v280, %v497
  %499 = vmatprep.mubr.f32.mxu0 0.0
  %500 = vmatmul.mubr.f32.gmra.mxu0 %v106
  %v501 = vpop.f32.mrf.mxu0
  %v502 = vadd.f32 %v284, %v501
  %v503 = vpop.f32.mrf.mxu0
  %v504 = vadd.f32 %v286, %v503
  %505 = vmatprep.mubr.f32.mxu0 0.0
  %506 = vmatmul.mubr.f32.gmra.mxu0 %v109
  %v507 = vpop.f32.mrf.mxu0
  %v508 = vadd.f32 %v290, %v507
  %v509 = vpop.f32.mrf.mxu0
  %v510 = vadd.f32 %v292, %v509
  %511 = vmatprep.mubr.f32.mxu0 0.0
  %512 = vmatmul.mubr.f32.gmra.mxu0 %v112
  %v513 = vpop.f32.mrf.mxu0
  %v514 = vadd.f32 %v296, %v513
  %v515 = vpop.f32.mrf.mxu0
  %v516 = vadd.f32 %v298, %v515
  %517 = vmatprep.mubr.f32.mxu0 0.0
  %518 = vmatmul.mubr.f32.gmra.mxu0 %v115
  %v519 = vpop.f32.mrf.mxu0
  %v520 = vadd.f32 %v302, %v519
  %v521 = vpop.f32.mrf.mxu0
  %v522 = vadd.f32 %v304, %v521
  %523 = vmatprep.mubr.f32.mxu0 0.0
  %524 = vmatmul.mubr.f32.gmra.mxu0 %v118
  %v525 = vpop.f32.mrf.mxu0
  %v526 = vadd.f32 %v308, %v525
  %v527 = vpop.f32.mrf.mxu0
  %v528 = vadd.f32 %v310, %v527
  %529 = vmatprep.mubr.f32.mxu0 0.0
  %530 = vmatmul.mubr.f32.gmra.mxu0 %v121
  %v531 = vpop.f32.mrf.mxu0
  %v532 = vadd.f32 %v314, %v531
  %v533 = vpop.f32.mrf.mxu0
  %v534 = vadd.f32 %v316, %v533
  %535 = vmatprep.mubr.f32.mxu0 0.0
  %536 = vmatmul.mubr.f32.gmra.mxu0 %v124
  %v537 = vpop.f32.mrf.mxu0
  %v538 = vadd.f32 %v320, %v537
  %v539 = vpop.f32.mrf.mxu0
  %v540 = vadd.f32 %v322, %v539
  %541 = vmatprep.mubr.f32.mxu0 0.0
  %542 = vmatmul.mubr.f32.gmra.mxu0 %v127
  %v543 = vpop.f32.mrf.mxu0
  %v544 = vadd.f32 %v326, %v543
  %v545 = vpop.f32.mrf.mxu0
  %v546 = vadd.f32 %v328, %v545
  %547 = vmatprep.mubr.f32.mxu0 0.0
  %548 = vmatmul.mubr.f32.gmra.mxu0 %v130
  %v549 = vpop.f32.mrf.mxu0
  %v550 = vadd.f32 %v332, %v549
  %v551 = vpop.f32.mrf.mxu0
  %v552 = vadd.f32 %v334, %v551
  %553 = vmatprep.mubr.f32.mxu0 0.0
  %554 = vmatmul.mubr.f32.gmra.mxu0 %v133
  %v555 = vpop.f32.mrf.mxu0
  %v556 = vadd.f32 %v338, %v555
  %v557 = vpop.f32.mrf.mxu0
  %v558 = vadd.f32 %v340, %v557
  %559 = vmatprep.mubr.f32.mxu0 0.0
  %560 = vmatmul.mubr.f32.gmra.mxu0 %v136
  %v561 = vpop.f32.mrf.mxu0
  %v562 = vadd.f32 %v344, %v561
  %v563 = vpop.f32.mrf.mxu0
  %v564 = vadd.f32 %v346, %v563
  %565 = vmatprep.mubr.f32.mxu0 0.0
  %566 = vmatmul.mubr.f32.gmra.mxu0 %v139
  %v567 = vpop.f32.mrf.mxu0
  %v568 = vadd.f32 %v350, %v567
  %v569 = vpop.f32.mrf.mxu0
  %v570 = vadd.f32 %v352, %v569
  %571 = vmatprep.mubr.f32.mxu0 0.0
  %572 = vmatmul.mubr.f32.gmra.mxu0 %v142
  %v573 = vpop.f32.mrf.mxu0
  %v574 = vadd.f32 %v356, %v573
  %v575 = vpop.f32.mrf.mxu0
  %v576 = vadd.f32 %v358, %v575
  %577 = vmatprep.mubr.f32.mxu0 0.0
  %578 = vmatmul.mubr.f32.gmra.mxu0 %v145
  %v579 = vpop.f32.mrf.mxu0
  %v580 = vadd.f32 %v362, %v579
  %v581 = vpop.f32.mrf.mxu0
  %v582 = vadd.f32 %v364, %v581
  %583 = vdwg.mxu0
  %s584 = scalar_lea.vmem %s1, 128
  %v585 = vld [vmem:[%s584] sm:$0xff]
  %v586 = vld [vmem:[%s584 + $0x8] sm:$0xff]
  %v587 = vld [vmem:[%s584 + $0x10] sm:$0xff]
  %v588 = vld [vmem:[%s584 + $0x18] sm:$0xff]
  %v589 = vld [vmem:[%s584 + $0x20] sm:$0xff]
  %v590 = vld [vmem:[%s584 + $0x28] sm:$0xff]
  %v591 = vld [vmem:[%s584 + $0x30] sm:$0xf]
  %v592 = vld [vmem:[%s584 + $0x38] sm:$0xf]
  %v594 = vsel %vm77, %v57, 0
  %v597 = vsel %vm150, %v591, 0
  %v600 = vsel %vm150, %v592, 0
  %602 = vmatprep.subr.mxu0 0.0
  %603 = vmatpush1.msra.mxu0 0.0
  %604 = vmatprep.subr.mxu0 0.0
  %605 = vmatpush1.msra.mxu0 0.0
  %606 = vmatprep.subr.mxu0 0.0
  %607 = vmatpush1.msra.mxu0 0.0
  %608 = vmatprep.subr.mxu0 0.0
  %609 = vmatpush1.msra.mxu0 0.0
  %610 = vmatprep.subr.mxu0 0.0
  %611 = vmatpush1.msra.mxu0 0.0
  %612 = vmatprep.subr.mxu0 0.0
  %613 = vmatpush1.msra.mxu0 0.0
  %614 = vmatprep.subr.mxu0 0.0
  %615 = vmatpush1.msra.mxu0 0.0
  %616 = vmatprep.subr.mxu0 0.0
  %617 = vmatpush1.msra.mxu0 0.0
  %618 = vmatprep.subr.mxu0 0.0
  %619 = vmatpush1.msra.mxu0 0.0
  %620 = vmatprep.subr.mxu0 0.0
  %621 = vmatpush1.msra.mxu0 0.0
  %622 = vmatprep.subr.mxu0 0.0
  %623 = vmatpush1.msra.mxu0 0.0
  %624 = vmatprep.subr.mxu0 0.0
  %625 = vmatpush1.msra.mxu0 0.0
  %626 = vmatprep.subr.mxu0 %v600
  %627 = vmatpush1.msra.mxu0 %v597
  %628 = vmatprep.subr.mxu0 %v590
  %629 = vmatpush1.msra.mxu0 %v589
  %630 = vmatprep.subr.mxu0 %v588
  %631 = vmatpush1.msra.mxu0 %v587
  %632 = vmatprep.subr.mxu0 %v586
  %633 = vmatpush1.msra.mxu0 %v585
  %634 = vmatprep.subr.mxu0 0.0
  %635 = vmatpush2.msra.mxu0 0.0
  %636 = vmatprep.subr.mxu0 0.0
  %637 = vmatpush2.msra.mxu0 0.0
  %638 = vmatprep.subr.mxu0 0.0
  %639 = vmatpush2.msra.mxu0 0.0
  %640 = vmatprep.subr.mxu0 0.0
  %641 = vmatpush2.msra.mxu0 0.0
  %642 = vmatprep.subr.mxu0 0.0
  %643 = vmatpush2.msra.mxu0 0.0
  %644 = vmatprep.subr.mxu0 0.0
  %645 = vmatpush2.msra.mxu0 0.0
  %646 = vmatprep.subr.mxu0 0.0
  %647 = vmatpush2.msra.mxu0 0.0
  %648 = vmatprep.subr.mxu0 0.0
  %649 = vmatpush2.msra.mxu0 0.0
  %650 = vmatprep.subr.mxu0 0.0
  %651 = vmatpush2.msra.mxu0 0.0
  %652 = vmatprep.subr.mxu0 0.0
  %653 = vmatpush2.msra.mxu0 0.0
  %654 = vmatprep.subr.mxu0 0.0
  %655 = vmatpush2.msra.mxu0 0.0
  %656 = vmatprep.subr.mxu0 0.0
  %657 = vmatpush2.msra.mxu0 0.0
  %658 = vmatprep.subr.mxu0 0.0
  %659 = vmatpush2.msra.mxu0 0.0
  %660 = vmatprep.subr.mxu0 0.0
  %661 = vmatpush2.msra.mxu0 0.0
  %662 = vmatprep.subr.mxu0 0.0
  %663 = vmatpush2.msra.mxu0 0.0
  %664 = vmatprep.subr.mxu0 0.0
  %665 = vmatpush2.msra.mxu0 0.0
  %666 = vmatprep.mubr.f32.mxu0 0.0
  %667 = vmatmul.mubr.f32.gmra.mxu0 %v82
  %v668 = vpop.f32.mrf.mxu0
  %v669 = vadd.f32 0.0, %v668
  %v670 = vpop.f32.mrf.mxu0
  %v671 = vadd.f32 0.0, %v670
  %672 = vmatprep.mubr.f32.mxu0 0.0
  %673 = vmatmul.mubr.f32.gmra.mxu0 %v85
  %v674 = vpop.f32.mrf.mxu0
  %v675 = vadd.f32 0.0, %v674
  %v676 = vpop.f32.mrf.mxu0
  %v677 = vadd.f32 0.0, %v676
  %678 = vmatprep.mubr.f32.mxu0 0.0
  %679 = vmatmul.mubr.f32.gmra.mxu0 %v88
  %v680 = vpop.f32.mrf.mxu0
  %v681 = vadd.f32 0.0, %v680
  %v682 = vpop.f32.mrf.mxu0
  %v683 = vadd.f32 0.0, %v682
  %684 = vmatprep.mubr.f32.mxu0 0.0
  %685 = vmatmul.mubr.f32.gmra.mxu0 %v91
  %v686 = vpop.f32.mrf.mxu0
  %v687 = vadd.f32 0.0, %v686
  %v688 = vpop.f32.mrf.mxu0
  %v689 = vadd.f32 0.0, %v688
  %690 = vmatprep.mubr.f32.mxu0 0.0
  %691 = vmatmul.mubr.f32.gmra.mxu0 %v94
  %v692 = vpop.f32.mrf.mxu0
  %v693 = vadd.f32 0.0, %v692
  %v694 = vpop.f32.mrf.mxu0
  %v695 = vadd.f32 0.0, %v694
  %696 = vmatprep.mubr.f32.mxu0 0.0
  %697 = vmatmul.mubr.f32.gmra.mxu0 %v97
  %v698 = vpop.f32.mrf.mxu0
  %v699 = vadd.f32 0.0, %v698
  %v700 = vpop.f32.mrf.mxu0
  %v701 = vadd.f32 0.0, %v700
  %702 = vmatprep.mubr.f32.mxu0 0.0
  %703 = vmatmul.mubr.f32.gmra.mxu0 %v100
  %v704 = vpop.f32.mrf.mxu0
  %v705 = vadd.f32 0.0, %v704
  %v706 = vpop.f32.mrf.mxu0
  %v707 = vadd.f32 0.0, %v706
  %708 = vmatprep.mubr.f32.mxu0 0.0
  %709 = vmatmul.mubr.f32.gmra.mxu0 %v103
  %v710 = vpop.f32.mrf.mxu0
  %v711 = vadd.f32 0.0, %v710
  %v712 = vpop.f32.mrf.mxu0
  %v713 = vadd.f32 0.0, %v712
  %714 = vmatprep.mubr.f32.mxu0 0.0
  %715 = vmatmul.mubr.f32.gmra.mxu0 %v106
  %v716 = vpop.f32.mrf.mxu0
  %v717 = vadd.f32 0.0, %v716
  %v718 = vpop.f32.mrf.mxu0
  %v719 = vadd.f32 0.0, %v718
  %720 = vmatprep.mubr.f32.mxu0 0.0
  %721 = vmatmul.mubr.f32.gmra.mxu0 %v109
  %v722 = vpop.f32.mrf.mxu0
  %v723 = vadd.f32 0.0, %v722
  %v724 = vpop.f32.mrf.mxu0
  %v725 = vadd.f32 0.0, %v724
  %726 = vmatprep.mubr.f32.mxu0 0.0
  %727 = vmatmul.mubr.f32.gmra.mxu0 %v112
  %v728 = vpop.f32.mrf.mxu0
  %v729 = vadd.f32 0.0, %v728
  %v730 = vpop.f32.mrf.mxu0
  %v731 = vadd.f32 0.0, %v730
  %732 = vmatprep.mubr.f32.mxu0 0.0
  %733 = vmatmul.mubr.f32.gmra.mxu0 %v115
  %v734 = vpop.f32.mrf.mxu0
  %v735 = vadd.f32 0.0, %v734
  %v736 = vpop.f32.mrf.mxu0
  %v737 = vadd.f32 0.0, %v736
  %738 = vmatprep.mubr.f32.mxu0 0.0
  %739 = vmatmul.mubr.f32.gmra.mxu0 %v118
  %v740 = vpop.f32.mrf.mxu0
  %v741 = vadd.f32 0.0, %v740
  %v742 = vpop.f32.mrf.mxu0
  %v743 = vadd.f32 0.0, %v742
  %744 = vmatprep.mubr.f32.mxu0 0.0
  %745 = vmatmul.mubr.f32.gmra.mxu0 %v121
  %v746 = vpop.f32.mrf.mxu0
  %v747 = vadd.f32 0.0, %v746
  %v748 = vpop.f32.mrf.mxu0
  %v749 = vadd.f32 0.0, %v748
  %750 = vmatprep.mubr.f32.mxu0 0.0
  %751 = vmatmul.mubr.f32.gmra.mxu0 %v124
  %v752 = vpop.f32.mrf.mxu0
  %v753 = vadd.f32 0.0, %v752
  %v754 = vpop.f32.mrf.mxu0
  %v755 = vadd.f32 0.0, %v754
  %756 = vmatprep.mubr.f32.mxu0 0.0
  %757 = vmatmul.mubr.f32.gmra.mxu0 %v127
  %v758 = vpop.f32.mrf.mxu0
  %v759 = vadd.f32 0.0, %v758
  %v760 = vpop.f32.mrf.mxu0
  %v761 = vadd.f32 0.0, %v760
  %762 = vmatprep.mubr.f32.mxu0 0.0
  %763 = vmatmul.mubr.f32.gmra.mxu0 %v130
  %v764 = vpop.f32.mrf.mxu0
  %v765 = vadd.f32 0.0, %v764
  %v766 = vpop.f32.mrf.mxu0
  %v767 = vadd.f32 0.0, %v766
  %768 = vmatprep.mubr.f32.mxu0 0.0
  %769 = vmatmul.mubr.f32.gmra.mxu0 %v133
  %v770 = vpop.f32.mrf.mxu0
  %v771 = vadd.f32 0.0, %v770
  %v772 = vpop.f32.mrf.mxu0
  %v773 = vadd.f32 0.0, %v772
  %774 = vmatprep.mubr.f32.mxu0 0.0
  %775 = vmatmul.mubr.f32.gmra.mxu0 %v136
  %v776 = vpop.f32.mrf.mxu0
  %v777 = vadd.f32 0.0, %v776
  %v778 = vpop.f32.mrf.mxu0
  %v779 = vadd.f32 0.0, %v778
  %780 = vmatprep.mubr.f32.mxu0 0.0
  %781 = vmatmul.mubr.f32.gmra.mxu0 %v139
  %v782 = vpop.f32.mrf.mxu0
  %v783 = vadd.f32 0.0, %v782
  %v784 = vpop.f32.mrf.mxu0
  %v785 = vadd.f32 0.0, %v784
  %786 = vmatprep.mubr.f32.mxu0 0.0
  %787 = vmatmul.mubr.f32.gmra.mxu0 %v142
  %v788 = vpop.f32.mrf.mxu0
  %v789 = vadd.f32 0.0, %v788
  %v790 = vpop.f32.mrf.mxu0
  %v791 = vadd.f32 0.0, %v790
  %792 = vmatprep.mubr.f32.mxu0 0.0
  %793 = vmatmul.mubr.f32.gmra.mxu0 %v145
  %v794 = vpop.f32.mrf.mxu0
  %v795 = vadd.f32 0.0, %v794
  %v796 = vpop.f32.mrf.mxu0
  %v797 = vadd.f32 0.0, %v796
  %798 = vmatprep.mubr.f32.mxu0 0.0
  %799 = vmatmul.mubr.f32.gmra.mxu0 %v148
  %v800 = vpop.f32.mrf.mxu0
  %v801 = vadd.f32 0.0, %v800
  %v802 = vpop.f32.mrf.mxu0
  %v803 = vadd.f32 0.0, %v802
  %804 = vmatprep.mubr.f32.mxu0 0.0
  %805 = vmatmul.mubr.f32.gmra.mxu0 %v594
  %v806 = vpop.f32.mrf.mxu0
  %v807 = vadd.f32 0.0, %v806
  %v808 = vpop.f32.mrf.mxu0
  %v809 = vadd.f32 0.0, %v808
  %810 = vdwg.mxu0
  %v811 = vadd.f32 %v442, %v669
  %v812 = vadd.f32 %v444, %v671
  %v813 = vadd.f32 %v448, %v675
  %v814 = vadd.f32 %v450, %v677
  %v815 = vadd.f32 %v454, %v681
  %v816 = vadd.f32 %v456, %v683
  %v817 = vadd.f32 %v460, %v687
  %v818 = vadd.f32 %v462, %v689
  %v819 = vadd.f32 %v466, %v693
  %v820 = vadd.f32 %v468, %v695
  %v821 = vadd.f32 %v472, %v699
  %v822 = vadd.f32 %v474, %v701
  %v823 = vadd.f32 %v478, %v705
  %v824 = vadd.f32 %v480, %v707
  %v825 = vadd.f32 %v484, %v711
  %v826 = vadd.f32 %v486, %v713
  %v827 = vadd.f32 %v490, %v717
  %v828 = vadd.f32 %v492, %v719
  %v829 = vadd.f32 %v496, %v723
  %v830 = vadd.f32 %v498, %v725
  %v831 = vadd.f32 %v502, %v729
  %v832 = vadd.f32 %v504, %v731
  %v833 = vadd.f32 %v508, %v735
  %v834 = vadd.f32 %v510, %v737
  %v835 = vadd.f32 %v514, %v741
  %v836 = vadd.f32 %v516, %v743
  %v837 = vadd.f32 %v520, %v747
  %v838 = vadd.f32 %v522, %v749
  %v839 = vadd.f32 %v526, %v753
  %v840 = vadd.f32 %v528, %v755
  %v841 = vadd.f32 %v532, %v759
  %v842 = vadd.f32 %v534, %v761
  %v843 = vadd.f32 %v538, %v765
  %v844 = vadd.f32 %v540, %v767
  %v845 = vadd.f32 %v544, %v771
  %v846 = vadd.f32 %v546, %v773
  %v847 = vadd.f32 %v550, %v777
  %v848 = vadd.f32 %v552, %v779
  %v849 = vadd.f32 %v556, %v783
  %v850 = vadd.f32 %v558, %v785
  %v851 = vadd.f32 %v562, %v789
  %v852 = vadd.f32 %v564, %v791
  %v853 = vadd.f32 %v568, %v795
  %v854 = vadd.f32 %v570, %v797
  %v855 = vadd.f32 %v574, %v801
  %v856 = vadd.f32 %v576, %v803
  %v857 = vadd.f32 %v580, %v807
  %v858 = vadd.f32 %v582, %v809
  %s859 = scalar_lea.vmem %s1, 192
  %v860 = vld [vmem:[%s859] sm:$0xff]
  %v861 = vld [vmem:[%s859 + $0x8] sm:$0xff]
  %v862 = vld [vmem:[%s859 + $0x10] sm:$0xff]
  %v863 = vld [vmem:[%s859 + $0x18] sm:$0xff]
  %v864 = vld [vmem:[%s859 + $0x20] sm:$0xff]
  %v865 = vld [vmem:[%s859 + $0x28] sm:$0xff]
  %v866 = vld [vmem:[%s859 + $0x30] sm:$0xf]
  %v867 = vld [vmem:[%s859 + $0x38] sm:$0xf]
  %v869 = vsel %vm77, %v58, 0
  %v872 = vsel %vm150, %v866, 0
  %v875 = vsel %vm150, %v867, 0
  %877 = vmatprep.subr.mxu0 0.0
  %878 = vmatpush1.msra.mxu0 0.0
  %879 = vmatprep.subr.mxu0 0.0
  %880 = vmatpush1.msra.mxu0 0.0
  %881 = vmatprep.subr.mxu0 0.0
  %882 = vmatpush1.msra.mxu0 0.0
  %883 = vmatprep.subr.mxu0 0.0
  %884 = vmatpush1.msra.mxu0 0.0
  %885 = vmatprep.subr.mxu0 0.0
  %886 = vmatpush1.msra.mxu0 0.0
  %887 = vmatprep.subr.mxu0 0.0
  %888 = vmatpush1.msra.mxu0 0.0
  %889 = vmatprep.subr.mxu0 0.0
  %890 = vmatpush1.msra.mxu0 0.0
  %891 = vmatprep.subr.mxu0 0.0
  %892 = vmatpush1.msra.mxu0 0.0
  %893 = vmatprep.subr.mxu0 0.0
  %894 = vmatpush1.msra.mxu0 0.0
  %895 = vmatprep.subr.mxu0 0.0
  %896 = vmatpush1.msra.mxu0 0.0
  %897 = vmatprep.subr.mxu0 0.0
  %898 = vmatpush1.msra.mxu0 0.0
  %899 = vmatprep.subr.mxu0 0.0
  %900 = vmatpush1.msra.mxu0 0.0
  %901 = vmatprep.subr.mxu0 %v875
  %902 = vmatpush1.msra.mxu0 %v872
  %903 = vmatprep.subr.mxu0 %v865
  %904 = vmatpush1.msra.mxu0 %v864
  %905 = vmatprep.subr.mxu0 %v863
  %906 = vmatpush1.msra.mxu0 %v862
  %907 = vmatprep.subr.mxu0 %v861
  %908 = vmatpush1.msra.mxu0 %v860
  %909 = vmatprep.subr.mxu0 0.0
  %910 = vmatpush2.msra.mxu0 0.0
  %911 = vmatprep.subr.mxu0 0.0
  %912 = vmatpush2.msra.mxu0 0.0
  %913 = vmatprep.subr.mxu0 0.0
  %914 = vmatpush2.msra.mxu0 0.0
  %915 = vmatprep.subr.mxu0 0.0
  %916 = vmatpush2.msra.mxu0 0.0
  %917 = vmatprep.subr.mxu0 0.0
  %918 = vmatpush2.msra.mxu0 0.0
  %919 = vmatprep.subr.mxu0 0.0
  %920 = vmatpush2.msra.mxu0 0.0
  %921 = vmatprep.subr.mxu0 0.0
  %922 = vmatpush2.msra.mxu0 0.0
  %923 = vmatprep.subr.mxu0 0.0
  %924 = vmatpush2.msra.mxu0 0.0
  %925 = vmatprep.subr.mxu0 0.0
  %926 = vmatpush2.msra.mxu0 0.0
  %927 = vmatprep.subr.mxu0 0.0
  %928 = vmatpush2.msra.mxu0 0.0
  %929 = vmatprep.subr.mxu0 0.0
  %930 = vmatpush2.msra.mxu0 0.0
  %931 = vmatprep.subr.mxu0 0.0
  %932 = vmatpush2.msra.mxu0 0.0
  %933 = vmatprep.subr.mxu0 0.0
  %934 = vmatpush2.msra.mxu0 0.0
  %935 = vmatprep.subr.mxu0 0.0
  %936 = vmatpush2.msra.mxu0 0.0
  %937 = vmatprep.subr.mxu0 0.0
  %938 = vmatpush2.msra.mxu0 0.0
  %939 = vmatprep.subr.mxu0 0.0
  %940 = vmatpush2.msra.mxu0 0.0
  %941 = vmatprep.mubr.f32.mxu0 0.0
  %942 = vmatmul.mubr.f32.gmra.mxu0 %v85
  %v943 = vpop.f32.mrf.mxu0
  %v944 = vadd.f32 0.0, %v943
  %v945 = vpop.f32.mrf.mxu0
  %v946 = vadd.f32 0.0, %v945
  %947 = vmatprep.mubr.f32.mxu0 0.0
  %948 = vmatmul.mubr.f32.gmra.mxu0 %v88
  %v949 = vpop.f32.mrf.mxu0
  %v950 = vadd.f32 0.0, %v949
  %v951 = vpop.f32.mrf.mxu0
  %v952 = vadd.f32 0.0, %v951
  %953 = vmatprep.mubr.f32.mxu0 0.0
  %954 = vmatmul.mubr.f32.gmra.mxu0 %v91
  %v955 = vpop.f32.mrf.mxu0
  %v956 = vadd.f32 0.0, %v955
  %v957 = vpop.f32.mrf.mxu0
  %v958 = vadd.f32 0.0, %v957
  %959 = vmatprep.mubr.f32.mxu0 0.0
  %960 = vmatmul.mubr.f32.gmra.mxu0 %v94
  %v961 = vpop.f32.mrf.mxu0
  %v962 = vadd.f32 0.0, %v961
  %v963 = vpop.f32.mrf.mxu0
  %v964 = vadd.f32 0.0, %v963
  %965 = vmatprep.mubr.f32.mxu0 0.0
  %966 = vmatmul.mubr.f32.gmra.mxu0 %v97
  %v967 = vpop.f32.mrf.mxu0
  %v968 = vadd.f32 0.0, %v967
  %v969 = vpop.f32.mrf.mxu0
  %v970 = vadd.f32 0.0, %v969
  %971 = vmatprep.mubr.f32.mxu0 0.0
  %972 = vmatmul.mubr.f32.gmra.mxu0 %v100
  %v973 = vpop.f32.mrf.mxu0
  %v974 = vadd.f32 0.0, %v973
  %v975 = vpop.f32.mrf.mxu0
  %v976 = vadd.f32 0.0, %v975
  %977 = vmatprep.mubr.f32.mxu0 0.0
  %978 = vmatmul.mubr.f32.gmra.mxu0 %v103
  %v979 = vpop.f32.mrf.mxu0
  %v980 = vadd.f32 0.0, %v979
  %v981 = vpop.f32.mrf.mxu0
  %v982 = vadd.f32 0.0, %v981
  %983 = vmatprep.mubr.f32.mxu0 0.0
  %984 = vmatmul.mubr.f32.gmra.mxu0 %v106
  %v985 = vpop.f32.mrf.mxu0
  %v986 = vadd.f32 0.0, %v985
  %v987 = vpop.f32.mrf.mxu0
  %v988 = vadd.f32 0.0, %v987
  %989 = vmatprep.mubr.f32.mxu0 0.0
  %990 = vmatmul.mubr.f32.gmra.mxu0 %v109
  %v991 = vpop.f32.mrf.mxu0
  %v992 = vadd.f32 0.0, %v991
  %v993 = vpop.f32.mrf.mxu0
  %v994 = vadd.f32 0.0, %v993
  %995 = vmatprep.mubr.f32.mxu0 0.0
  %996 = vmatmul.mubr.f32.gmra.mxu0 %v112
  %v997 = vpop.f32.mrf.mxu0
  %v998 = vadd.f32 0.0, %v997
  %v999 = vpop.f32.mrf.mxu0
  %v1000 = vadd.f32 0.0, %v999
  %1001 = vmatprep.mubr.f32.mxu0 0.0
  %1002 = vmatmul.mubr.f32.gmra.mxu0 %v115
  %v1003 = vpop.f32.mrf.mxu0
  %v1004 = vadd.f32 0.0, %v1003
  %v1005 = vpop.f32.mrf.mxu0
  %v1006 = vadd.f32 0.0, %v1005
  %1007 = vmatprep.mubr.f32.mxu0 0.0
  %1008 = vmatmul.mubr.f32.gmra.mxu0 %v118
  %v1009 = vpop.f32.mrf.mxu0
  %v1010 = vadd.f32 0.0, %v1009
  %v1011 = vpop.f32.mrf.mxu0
  %v1012 = vadd.f32 0.0, %v1011
  %1013 = vmatprep.mubr.f32.mxu0 0.0
  %1014 = vmatmul.mubr.f32.gmra.mxu0 %v121
  %v1015 = vpop.f32.mrf.mxu0
  %v1016 = vadd.f32 0.0, %v1015
  %v1017 = vpop.f32.mrf.mxu0
  %v1018 = vadd.f32 0.0, %v1017
  %1019 = vmatprep.mubr.f32.mxu0 0.0
  %1020 = vmatmul.mubr.f32.gmra.mxu0 %v124
  %v1021 = vpop.f32.mrf.mxu0
  %v1022 = vadd.f32 0.0, %v1021
  %v1023 = vpop.f32.mrf.mxu0
  %v1024 = vadd.f32 0.0, %v1023
  %1025 = vmatprep.mubr.f32.mxu0 0.0
  %1026 = vmatmul.mubr.f32.gmra.mxu0 %v127
  %v1027 = vpop.f32.mrf.mxu0
  %v1028 = vadd.f32 0.0, %v1027
  %v1029 = vpop.f32.mrf.mxu0
  %v1030 = vadd.f32 0.0, %v1029
  %1031 = vmatprep.mubr.f32.mxu0 0.0
  %1032 = vmatmul.mubr.f32.gmra.mxu0 %v130
  %v1033 = vpop.f32.mrf.mxu0
  %v1034 = vadd.f32 0.0, %v1033
  %v1035 = vpop.f32.mrf.mxu0
  %v1036 = vadd.f32 0.0, %v1035
  %1037 = vmatprep.mubr.f32.mxu0 0.0
  %1038 = vmatmul.mubr.f32.gmra.mxu0 %v133
  %v1039 = vpop.f32.mrf.mxu0
  %v1040 = vadd.f32 0.0, %v1039
  %v1041 = vpop.f32.mrf.mxu0
  %v1042 = vadd.f32 0.0, %v1041
  %1043 = vmatprep.mubr.f32.mxu0 0.0
  %1044 = vmatmul.mubr.f32.gmra.mxu0 %v136
  %v1045 = vpop.f32.mrf.mxu0
  %v1046 = vadd.f32 0.0, %v1045
  %v1047 = vpop.f32.mrf.mxu0
  %v1048 = vadd.f32 0.0, %v1047
  %1049 = vmatprep.mubr.f32.mxu0 0.0
  %1050 = vmatmul.mubr.f32.gmra.mxu0 %v139
  %v1051 = vpop.f32.mrf.mxu0
  %v1052 = vadd.f32 0.0, %v1051
  %v1053 = vpop.f32.mrf.mxu0
  %v1054 = vadd.f32 0.0, %v1053
  %1055 = vmatprep.mubr.f32.mxu0 0.0
  %1056 = vmatmul.mubr.f32.gmra.mxu0 %v142
  %v1057 = vpop.f32.mrf.mxu0
  %v1058 = vadd.f32 0.0, %v1057
  %v1059 = vpop.f32.mrf.mxu0
  %v1060 = vadd.f32 0.0, %v1059
  %1061 = vmatprep.mubr.f32.mxu0 0.0
  %1062 = vmatmul.mubr.f32.gmra.mxu0 %v145
  %v1063 = vpop.f32.mrf.mxu0
  %v1064 = vadd.f32 0.0, %v1063
  %v1065 = vpop.f32.mrf.mxu0
  %v1066 = vadd.f32 0.0, %v1065
  %1067 = vmatprep.mubr.f32.mxu0 0.0
  %1068 = vmatmul.mubr.f32.gmra.mxu0 %v148
  %v1069 = vpop.f32.mrf.mxu0
  %v1070 = vadd.f32 0.0, %v1069
  %v1071 = vpop.f32.mrf.mxu0
  %v1072 = vadd.f32 0.0, %v1071
  %1073 = vmatprep.mubr.f32.mxu0 0.0
  %1074 = vmatmul.mubr.f32.gmra.mxu0 %v594
  %v1075 = vpop.f32.mrf.mxu0
  %v1076 = vadd.f32 0.0, %v1075
  %v1077 = vpop.f32.mrf.mxu0
  %v1078 = vadd.f32 0.0, %v1077
  %1079 = vmatprep.mubr.f32.mxu0 0.0
  %1080 = vmatmul.mubr.f32.gmra.mxu0 %v869
  %v1081 = vpop.f32.mrf.mxu0
  %v1082 = vadd.f32 0.0, %v1081
  %v1083 = vpop.f32.mrf.mxu0
  %v1084 = vadd.f32 0.0, %v1083
  %1085 = vdwg.mxu0
  %v1086 = vadd.f32 %v811, %v944
  %v1087 = vadd.f32 %v812, %v946
  %v1088 = vadd.f32 %v813, %v950
  %v1089 = vadd.f32 %v814, %v952
  %v1090 = vadd.f32 %v815, %v956
  %v1091 = vadd.f32 %v816, %v958
  %v1092 = vadd.f32 %v817, %v962
  %v1093 = vadd.f32 %v818, %v964
  %v1094 = vadd.f32 %v819, %v968
  %v1095 = vadd.f32 %v820, %v970
  %v1096 = vadd.f32 %v821, %v974
  %v1097 = vadd.f32 %v822, %v976
  %v1098 = vadd.f32 %v823, %v980
  %v1099 = vadd.f32 %v824, %v982
  %v1100 = vadd.f32 %v825, %v986
  %v1101 = vadd.f32 %v826, %v988
  %v1102 = vadd.f32 %v827, %v992
  %v1103 = vadd.f32 %v828, %v994
  %v1104 = vadd.f32 %v829, %v998
  %v1105 = vadd.f32 %v830, %v1000
  %v1106 = vadd.f32 %v831, %v1004
  %v1107 = vadd.f32 %v832, %v1006
  %v1108 = vadd.f32 %v833, %v1010
  %v1109 = vadd.f32 %v834, %v1012
  %v1110 = vadd.f32 %v835, %v1016
  %v1111 = vadd.f32 %v836, %v1018
  %v1112 = vadd.f32 %v837, %v1022
  %v1113 = vadd.f32 %v838, %v1024
  %v1114 = vadd.f32 %v839, %v1028
  %v1115 = vadd.f32 %v840, %v1030
  %v1116 = vadd.f32 %v841, %v1034
  %v1117 = vadd.f32 %v842, %v1036
  %v1118 = vadd.f32 %v843, %v1040
  %v1119 = vadd.f32 %v844, %v1042
  %v1120 = vadd.f32 %v845, %v1046
  %v1121 = vadd.f32 %v846, %v1048
  %v1122 = vadd.f32 %v847, %v1052
  %v1123 = vadd.f32 %v848, %v1054
  %v1124 = vadd.f32 %v849, %v1058
  %v1125 = vadd.f32 %v850, %v1060
  %v1126 = vadd.f32 %v851, %v1064
  %v1127 = vadd.f32 %v852, %v1066
  %v1128 = vadd.f32 %v853, %v1070
  %v1129 = vadd.f32 %v854, %v1072
  %v1130 = vadd.f32 %v855, %v1076
  %v1131 = vadd.f32 %v856, %v1078
  %v1132 = vadd.f32 %v857, %v1082
  %v1133 = vadd.f32 %v858, %v1084
  %s1134 = scalar_lea.vmem %s1, 256
  %v1135 = vld [vmem:[%s1134] sm:$0xff]
  %v1136 = vld [vmem:[%s1134 + $0x8] sm:$0xff]
  %v1137 = vld [vmem:[%s1134 + $0x10] sm:$0xff]
  %v1138 = vld [vmem:[%s1134 + $0x18] sm:$0xff]
  %v1139 = vld [vmem:[%s1134 + $0x20] sm:$0xff]
  %v1140 = vld [vmem:[%s1134 + $0x28] sm:$0xff]
  %v1141 = vld [vmem:[%s1134 + $0x30] sm:$0xf]
  %v1142 = vld [vmem:[%s1134 + $0x38] sm:$0xf]
  %v1144 = vsel %vm77, %v59, 0
  %v1147 = vsel %vm150, %v1141, 0
  %v1150 = vsel %vm150, %v1142, 0
  %1152 = vmatprep.subr.mxu0 0.0
  %1153 = vmatpush1.msra.mxu0 0.0
  %1154 = vmatprep.subr.mxu0 0.0
  %1155 = vmatpush1.msra.mxu0 0.0
  %1156 = vmatprep.subr.mxu0 0.0
  %1157 = vmatpush1.msra.mxu0 0.0
  %1158 = vmatprep.subr.mxu0 0.0
  %1159 = vmatpush1.msra.mxu0 0.0
  %1160 = vmatprep.subr.mxu0 0.0
  %1161 = vmatpush1.msra.mxu0 0.0
  %1162 = vmatprep.subr.mxu0 0.0
  %1163 = vmatpush1.msra.mxu0 0.0
  %1164 = vmatprep.subr.mxu0 0.0
  %1165 = vmatpush1.msra.mxu0 0.0
  %1166 = vmatprep.subr.mxu0 0.0
  %1167 = vmatpush1.msra.mxu0 0.0
  %1168 = vmatprep.subr.mxu0 0.0
  %1169 = vmatpush1.msra.mxu0 0.0
  %1170 = vmatprep.subr.mxu0 0.0
  %1171 = vmatpush1.msra.mxu0 0.0
  %1172 = vmatprep.subr.mxu0 0.0
  %1173 = vmatpush1.msra.mxu0 0.0
  %1174 = vmatprep.subr.mxu0 0.0
  %1175 = vmatpush1.msra.mxu0 0.0
  %1176 = vmatprep.subr.mxu0 %v1150
  %1177 = vmatpush1.msra.mxu0 %v1147
  %1178 = vmatprep.subr.mxu0 %v1140
  %1179 = vmatpush1.msra.mxu0 %v1139
  %1180 = vmatprep.subr.mxu0 %v1138
  %1181 = vmatpush1.msra.mxu0 %v1137
  %1182 = vmatprep.subr.mxu0 %v1136
  %1183 = vmatpush1.msra.mxu0 %v1135
  %1184 = vmatprep.subr.mxu0 0.0
  %1185 = vmatpush2.msra.mxu0 0.0
  %1186 = vmatprep.subr.mxu0 0.0
  %1187 = vmatpush2.msra.mxu0 0.0
  %1188 = vmatprep.subr.mxu0 0.0
  %1189 = vmatpush2.msra.mxu0 0.0
  %1190 = vmatprep.subr.mxu0 0.0
  %1191 = vmatpush2.msra.mxu0 0.0
  %1192 = vmatprep.subr.mxu0 0.0
  %1193 = vmatpush2.msra.mxu0 0.0
  %1194 = vmatprep.subr.mxu0 0.0
  %1195 = vmatpush2.msra.mxu0 0.0
  %1196 = vmatprep.subr.mxu0 0.0
  %1197 = vmatpush2.msra.mxu0 0.0
  %1198 = vmatprep.subr.mxu0 0.0
  %1199 = vmatpush2.msra.mxu0 0.0
  %1200 = vmatprep.subr.mxu0 0.0
  %1201 = vmatpush2.msra.mxu0 0.0
  %1202 = vmatprep.subr.mxu0 0.0
  %1203 = vmatpush2.msra.mxu0 0.0
  %1204 = vmatprep.subr.mxu0 0.0
  %1205 = vmatpush2.msra.mxu0 0.0
  %1206 = vmatprep.subr.mxu0 0.0
  %1207 = vmatpush2.msra.mxu0 0.0
  %1208 = vmatprep.subr.mxu0 0.0
  %1209 = vmatpush2.msra.mxu0 0.0
  %1210 = vmatprep.subr.mxu0 0.0
  %1211 = vmatpush2.msra.mxu0 0.0
  %1212 = vmatprep.subr.mxu0 0.0
  %1213 = vmatpush2.msra.mxu0 0.0
  %1214 = vmatprep.subr.mxu0 0.0
  %1215 = vmatpush2.msra.mxu0 0.0
  %1216 = vmatprep.mubr.f32.mxu0 0.0
  %1217 = vmatmul.mubr.f32.gmra.mxu0 %v88
  %v1218 = vpop.f32.mrf.mxu0
  %v1219 = vadd.f32 0.0, %v1218
  %v1220 = vpop.f32.mrf.mxu0
  %v1221 = vadd.f32 0.0, %v1220
  %1222 = vmatprep.mubr.f32.mxu0 0.0
  %1223 = vmatmul.mubr.f32.gmra.mxu0 %v91
  %v1224 = vpop.f32.mrf.mxu0
  %v1225 = vadd.f32 0.0, %v1224
  %v1226 = vpop.f32.mrf.mxu0
  %v1227 = vadd.f32 0.0, %v1226
  %1228 = vmatprep.mubr.f32.mxu0 0.0
  %1229 = vmatmul.mubr.f32.gmra.mxu0 %v94
  %v1230 = vpop.f32.mrf.mxu0
  %v1231 = vadd.f32 0.0, %v1230
  %v1232 = vpop.f32.mrf.mxu0
  %v1233 = vadd.f32 0.0, %v1232
  %1234 = vmatprep.mubr.f32.mxu0 0.0
  %1235 = vmatmul.mubr.f32.gmra.mxu0 %v97
  %v1236 = vpop.f32.mrf.mxu0
  %v1237 = vadd.f32 0.0, %v1236
  %v1238 = vpop.f32.mrf.mxu0
  %v1239 = vadd.f32 0.0, %v1238
  %1240 = vmatprep.mubr.f32.mxu0 0.0
  %1241 = vmatmul.mubr.f32.gmra.mxu0 %v100
  %v1242 = vpop.f32.mrf.mxu0
  %v1243 = vadd.f32 0.0, %v1242
  %v1244 = vpop.f32.mrf.mxu0
  %v1245 = vadd.f32 0.0, %v1244
  %1246 = vmatprep.mubr.f32.mxu0 0.0
  %1247 = vmatmul.mubr.f32.gmra.mxu0 %v103
  %v1248 = vpop.f32.mrf.mxu0
  %v1249 = vadd.f32 0.0, %v1248
  %v1250 = vpop.f32.mrf.mxu0
  %v1251 = vadd.f32 0.0, %v1250
  %1252 = vmatprep.mubr.f32.mxu0 0.0
  %1253 = vmatmul.mubr.f32.gmra.mxu0 %v106
  %v1254 = vpop.f32.mrf.mxu0
  %v1255 = vadd.f32 0.0, %v1254
  %v1256 = vpop.f32.mrf.mxu0
  %v1257 = vadd.f32 0.0, %v1256
  %1258 = vmatprep.mubr.f32.mxu0 0.0
  %1259 = vmatmul.mubr.f32.gmra.mxu0 %v109
  %v1260 = vpop.f32.mrf.mxu0
  %v1261 = vadd.f32 0.0, %v1260
  %v1262 = vpop.f32.mrf.mxu0
  %v1263 = vadd.f32 0.0, %v1262
  %1264 = vmatprep.mubr.f32.mxu0 0.0
  %1265 = vmatmul.mubr.f32.gmra.mxu0 %v112
  %v1266 = vpop.f32.mrf.mxu0
  %v1267 = vadd.f32 0.0, %v1266
  %v1268 = vpop.f32.mrf.mxu0
  %v1269 = vadd.f32 0.0, %v1268
  %1270 = vmatprep.mubr.f32.mxu0 0.0
  %1271 = vmatmul.mubr.f32.gmra.mxu0 %v115
  %v1272 = vpop.f32.mrf.mxu0
  %v1273 = vadd.f32 0.0, %v1272
  %v1274 = vpop.f32.mrf.mxu0
  %v1275 = vadd.f32 0.0, %v1274
  %1276 = vmatprep.mubr.f32.mxu0 0.0
  %1277 = vmatmul.mubr.f32.gmra.mxu0 %v118
  %v1278 = vpop.f32.mrf.mxu0
  %v1279 = vadd.f32 0.0, %v1278
  %v1280 = vpop.f32.mrf.mxu0
  %v1281 = vadd.f32 0.0, %v1280
  %1282 = vmatprep.mubr.f32.mxu0 0.0
  %1283 = vmatmul.mubr.f32.gmra.mxu0 %v121
  %v1284 = vpop.f32.mrf.mxu0
  %v1285 = vadd.f32 0.0, %v1284
  %v1286 = vpop.f32.mrf.mxu0
  %v1287 = vadd.f32 0.0, %v1286
  %1288 = vmatprep.mubr.f32.mxu0 0.0
  %1289 = vmatmul.mubr.f32.gmra.mxu0 %v124
  %v1290 = vpop.f32.mrf.mxu0
  %v1291 = vadd.f32 0.0, %v1290
  %v1292 = vpop.f32.mrf.mxu0
  %v1293 = vadd.f32 0.0, %v1292
  %1294 = vmatprep.mubr.f32.mxu0 0.0
  %1295 = vmatmul.mubr.f32.gmra.mxu0 %v127
  %v1296 = vpop.f32.mrf.mxu0
  %v1297 = vadd.f32 0.0, %v1296
  %v1298 = vpop.f32.mrf.mxu0
  %v1299 = vadd.f32 0.0, %v1298
  %1300 = vmatprep.mubr.f32.mxu0 0.0
  %1301 = vmatmul.mubr.f32.gmra.mxu0 %v130
  %v1302 = vpop.f32.mrf.mxu0
  %v1303 = vadd.f32 0.0, %v1302
  %v1304 = vpop.f32.mrf.mxu0
  %v1305 = vadd.f32 0.0, %v1304
  %1306 = vmatprep.mubr.f32.mxu0 0.0
  %1307 = vmatmul.mubr.f32.gmra.mxu0 %v133
  %v1308 = vpop.f32.mrf.mxu0
  %v1309 = vadd.f32 0.0, %v1308
  %v1310 = vpop.f32.mrf.mxu0
  %v1311 = vadd.f32 0.0, %v1310
  %1312 = vmatprep.mubr.f32.mxu0 0.0
  %1313 = vmatmul.mubr.f32.gmra.mxu0 %v136
  %v1314 = vpop.f32.mrf.mxu0
  %v1315 = vadd.f32 0.0, %v1314
  %v1316 = vpop.f32.mrf.mxu0
  %v1317 = vadd.f32 0.0, %v1316
  %1318 = vmatprep.mubr.f32.mxu0 0.0
  %1319 = vmatmul.mubr.f32.gmra.mxu0 %v139
  %v1320 = vpop.f32.mrf.mxu0
  %v1321 = vadd.f32 0.0, %v1320
  %v1322 = vpop.f32.mrf.mxu0
  %v1323 = vadd.f32 0.0, %v1322
  %1324 = vmatprep.mubr.f32.mxu0 0.0
  %1325 = vmatmul.mubr.f32.gmra.mxu0 %v142
  %v1326 = vpop.f32.mrf.mxu0
  %v1327 = vadd.f32 0.0, %v1326
  %v1328 = vpop.f32.mrf.mxu0
  %v1329 = vadd.f32 0.0, %v1328
  %1330 = vmatprep.mubr.f32.mxu0 0.0
  %1331 = vmatmul.mubr.f32.gmra.mxu0 %v145
  %v1332 = vpop.f32.mrf.mxu0
  %v1333 = vadd.f32 0.0, %v1332
  %v1334 = vpop.f32.mrf.mxu0
  %v1335 = vadd.f32 0.0, %v1334
  %1336 = vmatprep.mubr.f32.mxu0 0.0
  %1337 = vmatmul.mubr.f32.gmra.mxu0 %v148
  %v1338 = vpop.f32.mrf.mxu0
  %v1339 = vadd.f32 0.0, %v1338
  %v1340 = vpop.f32.mrf.mxu0
  %v1341 = vadd.f32 0.0, %v1340
  %1342 = vmatprep.mubr.f32.mxu0 0.0
  %1343 = vmatmul.mubr.f32.gmra.mxu0 %v594
  %v1344 = vpop.f32.mrf.mxu0
  %v1345 = vadd.f32 0.0, %v1344
  %v1346 = vpop.f32.mrf.mxu0
  %v1347 = vadd.f32 0.0, %v1346
  %1348 = vmatprep.mubr.f32.mxu0 0.0
  %1349 = vmatmul.mubr.f32.gmra.mxu0 %v869
  %v1350 = vpop.f32.mrf.mxu0
  %v1351 = vadd.f32 0.0, %v1350
  %v1352 = vpop.f32.mrf.mxu0
  %v1353 = vadd.f32 0.0, %v1352
  %1354 = vmatprep.mubr.f32.mxu0 0.0
  %1355 = vmatmul.mubr.f32.gmra.mxu0 %v1144
  %v1356 = vpop.f32.mrf.mxu0
  %v1357 = vadd.f32 0.0, %v1356
  %v1358 = vpop.f32.mrf.mxu0
  %v1359 = vadd.f32 0.0, %v1358
  %1360 = vdwg.mxu0
  %v1361 = vadd.f32 %v1086, %v1219
  %v1362 = vadd.f32 %v1087, %v1221
  %v1363 = vadd.f32 %v1088, %v1225
  %v1364 = vadd.f32 %v1089, %v1227
  %v1365 = vadd.f32 %v1090, %v1231
  %v1366 = vadd.f32 %v1091, %v1233
  %v1367 = vadd.f32 %v1092, %v1237
  %v1368 = vadd.f32 %v1093, %v1239
  %v1369 = vadd.f32 %v1094, %v1243
  %v1370 = vadd.f32 %v1095, %v1245
  %v1371 = vadd.f32 %v1096, %v1249
  %v1372 = vadd.f32 %v1097, %v1251
  %v1373 = vadd.f32 %v1098, %v1255
  %v1374 = vadd.f32 %v1099, %v1257
  %v1375 = vadd.f32 %v1100, %v1261
  %v1376 = vadd.f32 %v1101, %v1263
  %v1377 = vadd.f32 %v1102, %v1267
  %v1378 = vadd.f32 %v1103, %v1269
  %v1379 = vadd.f32 %v1104, %v1273
  %v1380 = vadd.f32 %v1105, %v1275
  %v1381 = vadd.f32 %v1106, %v1279
  %v1382 = vadd.f32 %v1107, %v1281
  %v1383 = vadd.f32 %v1108, %v1285
  %v1384 = vadd.f32 %v1109, %v1287
  %v1385 = vadd.f32 %v1110, %v1291
  %v1386 = vadd.f32 %v1111, %v1293
  %v1387 = vadd.f32 %v1112, %v1297
  %v1388 = vadd.f32 %v1113, %v1299
  %v1389 = vadd.f32 %v1114, %v1303
  %v1390 = vadd.f32 %v1115, %v1305
  %v1391 = vadd.f32 %v1116, %v1309
  %v1392 = vadd.f32 %v1117, %v1311
  %v1393 = vadd.f32 %v1118, %v1315
  %v1394 = vadd.f32 %v1119, %v1317
  %v1395 = vadd.f32 %v1120, %v1321
  %v1396 = vadd.f32 %v1121, %v1323
  %v1397 = vadd.f32 %v1122, %v1327
  %v1398 = vadd.f32 %v1123, %v1329
  %v1399 = vadd.f32 %v1124, %v1333
  %v1400 = vadd.f32 %v1125, %v1335
  %v1401 = vadd.f32 %v1126, %v1339
  %v1402 = vadd.f32 %v1127, %v1341
  %v1403 = vadd.f32 %v1128, %v1345
  %v1404 = vadd.f32 %v1129, %v1347
  %v1405 = vadd.f32 %v1130, %v1351
  %v1406 = vadd.f32 %v1131, %v1353
  %v1407 = vadd.f32 %v1132, %v1357
  %v1408 = vadd.f32 %v1133, %v1359
  %v1409 = vld [vmem:[%s2] sm:$0x3]
  %v1411 = vlaneseq
  %v1412 = vshrl.u32 %v1411, 7
  %v1413 = vsub.s32 0, %v1412
  %v1414 = vrot.slane %v1409, %v1413
  %v1415 = vlaneseq
  %v1416 = vshrl.u32 %v1415, 7
  %v1417 = vsub.s32 1, %v1416
  %v1418 = vrot.slane %v1409, %v1417
  %v1421 = vadd.f32 %v1361, %v1414
  %v1422 = vadd.f32 %v1362, %v1418
  %v1423 = vadd.f32 %v1363, %v1414
  %v1424 = vadd.f32 %v1364, %v1418
  %v1425 = vadd.f32 %v1365, %v1414
  %v1426 = vadd.f32 %v1366, %v1418
  %v1427 = vadd.f32 %v1367, %v1414
  %v1428 = vadd.f32 %v1368, %v1418
  %v1429 = vadd.f32 %v1369, %v1414
  %v1430 = vadd.f32 %v1370, %v1418
  %v1431 = vadd.f32 %v1371, %v1414
  %v1432 = vadd.f32 %v1372, %v1418
  %v1433 = vadd.f32 %v1373, %v1414
  %v1434 = vadd.f32 %v1374, %v1418
  %v1435 = vadd.f32 %v1375, %v1414
  %v1436 = vadd.f32 %v1376, %v1418
  %v1437 = vadd.f32 %v1377, %v1414
  %v1438 = vadd.f32 %v1378, %v1418
  %v1439 = vadd.f32 %v1379, %v1414
  %v1440 = vadd.f32 %v1380, %v1418
  %v1441 = vadd.f32 %v1381, %v1414
  %v1442 = vadd.f32 %v1382, %v1418
  %v1443 = vadd.f32 %v1383, %v1414
  %v1444 = vadd.f32 %v1384, %v1418
  %v1445 = vadd.f32 %v1385, %v1414
  %v1446 = vadd.f32 %v1386, %v1418
  %v1447 = vadd.f32 %v1387, %v1414
  %v1448 = vadd.f32 %v1388, %v1418
  %v1449 = vadd.f32 %v1389, %v1414
  %v1450 = vadd.f32 %v1390, %v1418
  %v1451 = vadd.f32 %v1391, %v1414
  %v1452 = vadd.f32 %v1392, %v1418
  %v1453 = vadd.f32 %v1393, %v1414
  %v1454 = vadd.f32 %v1394, %v1418
  %v1455 = vadd.f32 %v1395, %v1414
  %v1456 = vadd.f32 %v1396, %v1418
  %v1457 = vadd.f32 %v1397, %v1414
  %v1458 = vadd.f32 %v1398, %v1418
  %v1459 = vadd.f32 %v1399, %v1414
  %v1460 = vadd.f32 %v1400, %v1418
  %v1461 = vadd.f32 %v1401, %v1414
  %v1462 = vadd.f32 %v1402, %v1418
  %v1463 = vadd.f32 %v1403, %v1414
  %v1464 = vadd.f32 %v1404, %v1418
  %v1465 = vadd.f32 %v1405, %v1414
  %v1466 = vadd.f32 %v1406, %v1418
  %v1467 = vadd.f32 %v1407, %v1414
  %v1468 = vadd.f32 %v1408, %v1418
  %v1469 = vmax.f32 %v1421, %v1422
  %v1470 = vmax.f32 %v1423, %v1424
  %v1471 = vmax.f32 %v1425, %v1426
  %v1472 = vmax.f32 %v1427, %v1428
  %v1473 = vmax.f32 %v1429, %v1430
  %v1474 = vmax.f32 %v1431, %v1432
  %v1475 = vmax.f32 %v1433, %v1434
  %v1476 = vmax.f32 %v1435, %v1436
  %v1477 = vmax.f32 %v1437, %v1438
  %v1478 = vmax.f32 %v1439, %v1440
  %v1479 = vmax.f32 %v1441, %v1442
  %v1480 = vmax.f32 %v1443, %v1444
  %v1481 = vmax.f32 %v1445, %v1446
  %v1482 = vmax.f32 %v1447, %v1448
  %v1483 = vmax.f32 %v1449, %v1450
  %v1484 = vmax.f32 %v1451, %v1452
  %v1485 = vmax.f32 %v1453, %v1454
  %v1486 = vmax.f32 %v1455, %v1456
  %v1487 = vmax.f32 %v1457, %v1458
  %v1488 = vmax.f32 %v1459, %v1460
  %v1489 = vmax.f32 %v1461, %v1462
  %v1490 = vmax.f32 %v1463, %v1464
  %v1491 = vmax.f32 %v1465, %v1466
  %v1492 = vmax.f32 %v1467, %v1468
  %v1493 = vmax.f32 %v1469, %v1470
  %v1494 = vmax.f32 %v1471, %v1472
  %v1495 = vmax.f32 %v1473, %v1474
  %v1496 = vmax.f32 %v1475, %v1476
  %v1497 = vmax.f32 %v1477, %v1478
  %v1498 = vmax.f32 %v1479, %v1480
  %v1499 = vmax.f32 %v1481, %v1482
  %v1500 = vmax.f32 %v1483, %v1484
  %v1501 = vmax.f32 %v1485, %v1486
  %v1502 = vmax.f32 %v1487, %v1488
  %v1503 = vmax.f32 %v1489, %v1490
  %v1504 = vmax.f32 %v1491, %v1492
  %v1505 = vmax.f32 %v1493, 0.0
  %v1506 = vmax.f32 %v1494, 0.0
  %v1507 = vmax.f32 %v1495, 0.0
  %v1508 = vmax.f32 %v1496, 0.0
  %v1509 = vmax.f32 %v1497, 0.0
  %v1510 = vmax.f32 %v1498, 0.0
  %v1511 = vmax.f32 %v1499, 0.0
  %v1512 = vmax.f32 %v1500, 0.0
  %v1513 = vmax.f32 %v1501, 0.0
  %v1514 = vmax.f32 %v1502, 0.0
  %v1515 = vmax.f32 %v1503, 0.0
  %v1516 = vmax.f32 %v1504, 0.0
  %v1517 = vld [vmem:[%s3] sm:$0xff]
  %v1518 = vld [vmem:[%s3 + $0x8] sm:$0xff]
  %v1519 = vld [vmem:[%s3 + $0x10] sm:$0xff]
  %v1520 = vld [vmem:[%s3 + $0x18] sm:$0xff]
  %v1521 = vld [vmem:[%s3 + $0x20] sm:$0xff]
  %v1522 = vld [vmem:[%s3 + $0x28] sm:$0xff]
  %v1523 = vld [vmem:[%s3 + $0x30] sm:$0xff]
  %v1524 = vld [vmem:[%s3 + $0x38] sm:$0xff]
  %v1525 = vld [vmem:[%s3 + $0x40] sm:$0xff]
  %v1526 = vld [vmem:[%s3 + $0x48] sm:$0xff]
  %v1527 = vld [vmem:[%s3 + $0x50] sm:$0xff]
  %v1528 = vld [vmem:[%s3 + $0x58] sm:$0xff]
  %v1529 = vld [vmem:[%s3 + $0x60] sm:$0xff]
  %v1530 = vld [vmem:[%s3 + $0x68] sm:$0xff]
  %v1531 = vld [vmem:[%s3 + $0x70] sm:$0xff]
  %v1532 = vld [vmem:[%s3 + $0x78] sm:$0xff]
  %v1533 = vld [vmem:[%s3 + $0x80] sm:$0xff]
  %v1534 = vld [vmem:[%s3 + $0x88] sm:$0xff]
  %v1535 = vld [vmem:[%s3 + $0x90] sm:$0xff]
  %v1536 = vld [vmem:[%s3 + $0x98] sm:$0xff]
  %v1537 = vld [vmem:[%s3 + $0xa0] sm:$0xff]
  %v1538 = vld [vmem:[%s3 + $0xa8] sm:$0xff]
  %v1539 = vld [vmem:[%s3 + $0xb0] sm:$0xff]
  %v1540 = vld [vmem:[%s3 + $0xb8] sm:$0xff]
  %v1541 = vld [vmem:[%s3 + $0xc0] sm:$0xff]
  %v1542 = vld [vmem:[%s3 + $0xc8] sm:$0xff]
  %v1543 = vld [vmem:[%s3 + $0xd0] sm:$0xff]
  %v1544 = vld [vmem:[%s3 + $0xd8] sm:$0xff]
  %v1545 = vld [vmem:[%s3 + $0xe0] sm:$0xff]
  %v1546 = vld [vmem:[%s3 + $0xe8] sm:$0xff]
  %v1547 = vld [vmem:[%s3 + $0xf0] sm:$0xff]
  %v1548 = vld [vmem:[%s3 + $0xf8] sm:$0xff]
  %s1549 = scalar_lea.vmem %s3, 256
  %v1550 = vld [vmem:[%s1549] sm:$0xff]
  %v1551 = vld [vmem:[%s1549 + $0x8] sm:$0xff]
  %v1552 = vld [vmem:[%s1549 + $0x10] sm:$0xff]
  %v1553 = vld [vmem:[%s1549 + $0x18] sm:$0xff]
  %v1554 = vld [vmem:[%s1549 + $0x20] sm:$0xff]
  %v1555 = vld [vmem:[%s1549 + $0x28] sm:$0xff]
  %v1556 = vld [vmem:[%s1549 + $0x30] sm:$0xff]
  %v1557 = vld [vmem:[%s1549 + $0x38] sm:$0xff]
  %v1558 = vld [vmem:[%s1549 + $0x40] sm:$0xff]
  %v1559 = vld [vmem:[%s1549 + $0x48] sm:$0xff]
  %v1560 = vld [vmem:[%s1549 + $0x50] sm:$0xff]
  %v1561 = vld [vmem:[%s1549 + $0x58] sm:$0xff]
  %v1562 = vld [vmem:[%s1549 + $0x60] sm:$0xff]
  %v1563 = vld [vmem:[%s1549 + $0x68] sm:$0xff]
  %v1564 = vld [vmem:[%s1549 + $0x70] sm:$0xff]
  %v1565 = vld [vmem:[%s1549 + $0x78] sm:$0xff]
  %v1566 = vld [vmem:[%s1549 + $0x80] sm:$0xff]
  %v1567 = vld [vmem:[%s1549 + $0x88] sm:$0xff]
  %v1568 = vld [vmem:[%s1549 + $0x90] sm:$0xff]
  %v1569 = vld [vmem:[%s1549 + $0x98] sm:$0xff]
  %v1570 = vld [vmem:[%s1549 + $0xa0] sm:$0xff]
  %v1571 = vld [vmem:[%s1549 + $0xa8] sm:$0xff]
  %v1572 = vld [vmem:[%s1549 + $0xb0] sm:$0xff]
  %v1573 = vld [vmem:[%s1549 + $0xb8] sm:$0xff]
  %v1574 = vld [vmem:[%s1549 + $0xc0] sm:$0xff]
  %v1575 = vld [vmem:[%s1549 + $0xc8] sm:$0xff]
  %v1576 = vld [vmem:[%s1549 + $0xd0] sm:$0xff]
  %v1577 = vld [vmem:[%s1549 + $0xd8] sm:$0xff]
  %v1578 = vld [vmem:[%s1549 + $0xe0] sm:$0xff]
  %v1579 = vld [vmem:[%s1549 + $0xe8] sm:$0xff]
  %v1580 = vld [vmem:[%s1549 + $0xf0] sm:$0xff]
  %v1581 = vld [vmem:[%s1549 + $0xf8] sm:$0xff]
  %1582 = vmatprep.subr.mxu0 %v1581
  %1583 = vmatpush1.msra.mxu0 %v1580
  %1584 = vmatprep.subr.mxu0 %v1579
  %1585 = vmatpush1.msra.mxu0 %v1578
  %1586 = vmatprep.subr.mxu0 %v1577
  %1587 = vmatpush1.msra.mxu0 %v1576
  %1588 = vmatprep.subr.mxu0 %v1575
  %1589 = vmatpush1.msra.mxu0 %v1574
  %1590 = vmatprep.subr.mxu0 %v1573
  %1591 = vmatpush1.msra.mxu0 %v1572
  %1592 = vmatprep.subr.mxu0 %v1571
  %1593 = vmatpush1.msra.mxu0 %v1570
  %1594 = vmatprep.subr.mxu0 %v1569
  %1595 = vmatpush1.msra.mxu0 %v1568
  %1596 = vmatprep.subr.mxu0 %v1567
  %1597 = vmatpush1.msra.mxu0 %v1566
  %1598 = vmatprep.subr.mxu0 %v1565
  %1599 = vmatpush1.msra.mxu0 %v1564
  %1600 = vmatprep.subr.mxu0 %v1563
  %1601 = vmatpush1.msra.mxu0 %v1562
  %1602 = vmatprep.subr.mxu0 %v1561
  %1603 = vmatpush1.msra.mxu0 %v1560
  %1604 = vmatprep.subr.mxu0 %v1559
  %1605 = vmatpush1.msra.mxu0 %v1558
  %1606 = vmatprep.subr.mxu0 %v1557
  %1607 = vmatpush1.msra.mxu0 %v1556
  %1608 = vmatprep.subr.mxu0 %v1555
  %1609 = vmatpush1.msra.mxu0 %v1554
  %1610 = vmatprep.subr.mxu0 %v1553
  %1611 = vmatpush1.msra.mxu0 %v1552
  %1612 = vmatprep.subr.mxu0 %v1551
  %1613 = vmatpush1.msra.mxu0 %v1550
  %1614 = vmatprep.subr.mxu0 0.0
  %1615 = vmatpush2.msra.mxu0 0.0
  %1616 = vmatprep.subr.mxu0 0.0
  %1617 = vmatpush2.msra.mxu0 0.0
  %1618 = vmatprep.subr.mxu0 0.0
  %1619 = vmatpush2.msra.mxu0 0.0
  %1620 = vmatprep.subr.mxu0 0.0
  %1621 = vmatpush2.msra.mxu0 0.0
  %1622 = vmatprep.subr.mxu0 0.0
  %1623 = vmatpush2.msra.mxu0 0.0
  %1624 = vmatprep.subr.mxu0 0.0
  %1625 = vmatpush2.msra.mxu0 0.0
  %1626 = vmatprep.subr.mxu0 0.0
  %1627 = vmatpush2.msra.mxu0 0.0
  %1628 = vmatprep.subr.mxu0 0.0
  %1629 = vmatpush2.msra.mxu0 0.0
  %1630 = vmatprep.subr.mxu0 0.0
  %1631 = vmatpush2.msra.mxu0 0.0
  %1632 = vmatprep.subr.mxu0 0.0
  %1633 = vmatpush2.msra.mxu0 0.0
  %1634 = vmatprep.subr.mxu0 0.0
  %1635 = vmatpush2.msra.mxu0 0.0
  %1636 = vmatprep.subr.mxu0 0.0
  %1637 = vmatpush2.msra.mxu0 0.0
  %1638 = vmatprep.subr.mxu0 0.0
  %1639 = vmatpush2.msra.mxu0 0.0
  %1640 = vmatprep.subr.mxu0 0.0
  %1641 = vmatpush2.msra.mxu0 0.0
  %1642 = vmatprep.subr.mxu0 0.0
  %1643 = vmatpush2.msra.mxu0 0.0
  %1644 = vmatprep.subr.mxu0 0.0
  %1645 = vmatpush2.msra.mxu0 0.0
  %1646 = vmatprep.mubr.f32.mxu0 0.0
  %1647 = vmatmul.mubr.f32.gmra.mxu0 %v1506
  %v1648 = vpop.f32.mrf.mxu0
  %v1649 = vadd.f32 0.0, %v1648
  %v1650 = vpop.f32.mrf.mxu0
  %v1651 = vadd.f32 0.0, %v1650
  %1652 = vmatprep.mubr.f32.mxu0 0.0
  %1653 = vmatmul.mubr.f32.gmra.mxu0 %v1507
  %v1654 = vpop.f32.mrf.mxu0
  %v1655 = vadd.f32 0.0, %v1654
  %v1656 = vpop.f32.mrf.mxu0
  %v1657 = vadd.f32 0.0, %v1656
  %1658 = vmatprep.mubr.f32.mxu0 0.0
  %1659 = vmatmul.mubr.f32.gmra.mxu0 %v1508
  %v1660 = vpop.f32.mrf.mxu0
  %v1661 = vadd.f32 0.0, %v1660
  %v1662 = vpop.f32.mrf.mxu0
  %v1663 = vadd.f32 0.0, %v1662
  %1664 = vmatprep.mubr.f32.mxu0 0.0
  %1665 = vmatmul.mubr.f32.gmra.mxu0 %v1509
  %v1666 = vpop.f32.mrf.mxu0
  %v1667 = vadd.f32 0.0, %v1666
  %v1668 = vpop.f32.mrf.mxu0
  %v1669 = vadd.f32 0.0, %v1668
  %1670 = vmatprep.mubr.f32.mxu0 0.0
  %1671 = vmatmul.mubr.f32.gmra.mxu0 %v1510
  %v1672 = vpop.f32.mrf.mxu0
  %v1673 = vadd.f32 0.0, %v1672
  %v1674 = vpop.f32.mrf.mxu0
  %v1675 = vadd.f32 0.0, %v1674
  %1676 = vmatprep.mubr.f32.mxu0 0.0
  %1677 = vmatmul.mubr.f32.gmra.mxu0 %v1511
  %v1678 = vpop.f32.mrf.mxu0
  %v1679 = vadd.f32 0.0, %v1678
  %v1680 = vpop.f32.mrf.mxu0
  %v1681 = vadd.f32 0.0, %v1680
  %1682 = vmatprep.mubr.f32.mxu0 0.0
  %1683 = vmatmul.mubr.f32.gmra.mxu0 %v1512
  %v1684 = vpop.f32.mrf.mxu0
  %v1685 = vadd.f32 0.0, %v1684
  %v1686 = vpop.f32.mrf.mxu0
  %v1687 = vadd.f32 0.0, %v1686
  %1688 = vmatprep.mubr.f32.mxu0 0.0
  %1689 = vmatmul.mubr.f32.gmra.mxu0 %v1513
  %v1690 = vpop.f32.mrf.mxu0
  %v1691 = vadd.f32 0.0, %v1690
  %v1692 = vpop.f32.mrf.mxu0
  %v1693 = vadd.f32 0.0, %v1692
  %1694 = vdwg.mxu0
  %1695 = vmatprep.subr.mxu0 %v1548
  %1696 = vmatpush1.msra.mxu0 %v1547
  %1697 = vmatprep.subr.mxu0 %v1546
  %1698 = vmatpush1.msra.mxu0 %v1545
  %1699 = vmatprep.subr.mxu0 %v1544
  %1700 = vmatpush1.msra.mxu0 %v1543
  %1701 = vmatprep.subr.mxu0 %v1542
  %1702 = vmatpush1.msra.mxu0 %v1541
  %1703 = vmatprep.subr.mxu0 %v1540
  %1704 = vmatpush1.msra.mxu0 %v1539
  %1705 = vmatprep.subr.mxu0 %v1538
  %1706 = vmatpush1.msra.mxu0 %v1537
  %1707 = vmatprep.subr.mxu0 %v1536
  %1708 = vmatpush1.msra.mxu0 %v1535
  %1709 = vmatprep.subr.mxu0 %v1534
  %1710 = vmatpush1.msra.mxu0 %v1533
  %1711 = vmatprep.subr.mxu0 %v1532
  %1712 = vmatpush1.msra.mxu0 %v1531
  %1713 = vmatprep.subr.mxu0 %v1530
  %1714 = vmatpush1.msra.mxu0 %v1529
  %1715 = vmatprep.subr.mxu0 %v1528
  %1716 = vmatpush1.msra.mxu0 %v1527
  %1717 = vmatprep.subr.mxu0 %v1526
  %1718 = vmatpush1.msra.mxu0 %v1525
  %1719 = vmatprep.subr.mxu0 %v1524
  %1720 = vmatpush1.msra.mxu0 %v1523
  %1721 = vmatprep.subr.mxu0 %v1522
  %1722 = vmatpush1.msra.mxu0 %v1521
  %1723 = vmatprep.subr.mxu0 %v1520
  %1724 = vmatpush1.msra.mxu0 %v1519
  %1725 = vmatprep.subr.mxu0 %v1518
  %1726 = vmatpush1.msra.mxu0 %v1517
  %1727 = vmatprep.subr.mxu0 0.0
  %1728 = vmatpush2.msra.mxu0 0.0
  %1729 = vmatprep.subr.mxu0 0.0
  %1730 = vmatpush2.msra.mxu0 0.0
  %1731 = vmatprep.subr.mxu0 0.0
  %1732 = vmatpush2.msra.mxu0 0.0
  %1733 = vmatprep.subr.mxu0 0.0
  %1734 = vmatpush2.msra.mxu0 0.0
  %1735 = vmatprep.subr.mxu0 0.0
  %1736 = vmatpush2.msra.mxu0 0.0
  %1737 = vmatprep.subr.mxu0 0.0
  %1738 = vmatpush2.msra.mxu0 0.0
  %1739 = vmatprep.subr.mxu0 0.0
  %1740 = vmatpush2.msra.mxu0 0.0
  %1741 = vmatprep.subr.mxu0 0.0
  %1742 = vmatpush2.msra.mxu0 0.0
  %1743 = vmatprep.subr.mxu0 0.0
  %1744 = vmatpush2.msra.mxu0 0.0
  %1745 = vmatprep.subr.mxu0 0.0
  %1746 = vmatpush2.msra.mxu0 0.0
  %1747 = vmatprep.subr.mxu0 0.0
  %1748 = vmatpush2.msra.mxu0 0.0
  %1749 = vmatprep.subr.mxu0 0.0
  %1750 = vmatpush2.msra.mxu0 0.0
  %1751 = vmatprep.subr.mxu0 0.0
  %1752 = vmatpush2.msra.mxu0 0.0
  %1753 = vmatprep.subr.mxu0 0.0
  %1754 = vmatpush2.msra.mxu0 0.0
  %1755 = vmatprep.subr.mxu0 0.0
  %1756 = vmatpush2.msra.mxu0 0.0
  %1757 = vmatprep.subr.mxu0 0.0
  %1758 = vmatpush2.msra.mxu0 0.0
  %1759 = vmatprep.mubr.f32.mxu0 0.0
  %1760 = vmatmul.mubr.f32.gmra.mxu0 %v1505
  %v1761 = vpop.f32.mrf.mxu0
  %v1762 = vadd.f32 %v1649, %v1761
  %v1763 = vpop.f32.mrf.mxu0
  %v1764 = vadd.f32 %v1651, %v1763
  %1765 = vmatprep.mubr.f32.mxu0 0.0
  %1766 = vmatmul.mubr.f32.gmra.mxu0 %v1506
  %v1767 = vpop.f32.mrf.mxu0
  %v1768 = vadd.f32 %v1655, %v1767
  %v1769 = vpop.f32.mrf.mxu0
  %v1770 = vadd.f32 %v1657, %v1769
  %1771 = vmatprep.mubr.f32.mxu0 0.0
  %1772 = vmatmul.mubr.f32.gmra.mxu0 %v1507
  %v1773 = vpop.f32.mrf.mxu0
  %v1774 = vadd.f32 %v1661, %v1773
  %v1775 = vpop.f32.mrf.mxu0
  %v1776 = vadd.f32 %v1663, %v1775
  %1777 = vmatprep.mubr.f32.mxu0 0.0
  %1778 = vmatmul.mubr.f32.gmra.mxu0 %v1508
  %v1779 = vpop.f32.mrf.mxu0
  %v1780 = vadd.f32 %v1667, %v1779
  %v1781 = vpop.f32.mrf.mxu0
  %v1782 = vadd.f32 %v1669, %v1781
  %1783 = vmatprep.mubr.f32.mxu0 0.0
  %1784 = vmatmul.mubr.f32.gmra.mxu0 %v1509
  %v1785 = vpop.f32.mrf.mxu0
  %v1786 = vadd.f32 %v1673, %v1785
  %v1787 = vpop.f32.mrf.mxu0
  %v1788 = vadd.f32 %v1675, %v1787
  %1789 = vmatprep.mubr.f32.mxu0 0.0
  %1790 = vmatmul.mubr.f32.gmra.mxu0 %v1510
  %v1791 = vpop.f32.mrf.mxu0
  %v1792 = vadd.f32 %v1679, %v1791
  %v1793 = vpop.f32.mrf.mxu0
  %v1794 = vadd.f32 %v1681, %v1793
  %1795 = vmatprep.mubr.f32.mxu0 0.0
  %1796 = vmatmul.mubr.f32.gmra.mxu0 %v1511
  %v1797 = vpop.f32.mrf.mxu0
  %v1798 = vadd.f32 %v1685, %v1797
  %v1799 = vpop.f32.mrf.mxu0
  %v1800 = vadd.f32 %v1687, %v1799
  %1801 = vmatprep.mubr.f32.mxu0 0.0
  %1802 = vmatmul.mubr.f32.gmra.mxu0 %v1512
  %v1803 = vpop.f32.mrf.mxu0
  %v1804 = vadd.f32 %v1691, %v1803
  %v1805 = vpop.f32.mrf.mxu0
  %v1806 = vadd.f32 %v1693, %v1805
  %1807 = vdwg.mxu0
  %s1808 = scalar_lea.vmem %s3, 512
  %v1809 = vld [vmem:[%s1808] sm:$0xff]
  %v1810 = vld [vmem:[%s1808 + $0x8] sm:$0xff]
  %v1811 = vld [vmem:[%s1808 + $0x10] sm:$0xff]
  %v1812 = vld [vmem:[%s1808 + $0x18] sm:$0xff]
  %v1813 = vld [vmem:[%s1808 + $0x20] sm:$0xff]
  %v1814 = vld [vmem:[%s1808 + $0x28] sm:$0xff]
  %v1815 = vld [vmem:[%s1808 + $0x30] sm:$0xff]
  %v1816 = vld [vmem:[%s1808 + $0x38] sm:$0xff]
  %v1817 = vld [vmem:[%s1808 + $0x40] sm:$0xff]
  %v1818 = vld [vmem:[%s1808 + $0x48] sm:$0xff]
  %v1819 = vld [vmem:[%s1808 + $0x50] sm:$0xff]
  %v1820 = vld [vmem:[%s1808 + $0x58] sm:$0xff]
  %v1821 = vld [vmem:[%s1808 + $0x60] sm:$0xff]
  %v1822 = vld [vmem:[%s1808 + $0x68] sm:$0xff]
  %v1823 = vld [vmem:[%s1808 + $0x70] sm:$0xff]
  %v1824 = vld [vmem:[%s1808 + $0x78] sm:$0xff]
  %v1825 = vld [vmem:[%s1808 + $0x80] sm:$0xff]
  %v1826 = vld [vmem:[%s1808 + $0x88] sm:$0xff]
  %v1827 = vld [vmem:[%s1808 + $0x90] sm:$0xff]
  %v1828 = vld [vmem:[%s1808 + $0x98] sm:$0xff]
  %v1829 = vld [vmem:[%s1808 + $0xa0] sm:$0xff]
  %v1830 = vld [vmem:[%s1808 + $0xa8] sm:$0xff]
  %v1831 = vld [vmem:[%s1808 + $0xb0] sm:$0xff]
  %v1832 = vld [vmem:[%s1808 + $0xb8] sm:$0xff]
  %v1833 = vld [vmem:[%s1808 + $0xc0] sm:$0xff]
  %v1834 = vld [vmem:[%s1808 + $0xc8] sm:$0xff]
  %v1835 = vld [vmem:[%s1808 + $0xd0] sm:$0xff]
  %v1836 = vld [vmem:[%s1808 + $0xd8] sm:$0xff]
  %v1837 = vld [vmem:[%s1808 + $0xe0] sm:$0xff]
  %v1838 = vld [vmem:[%s1808 + $0xe8] sm:$0xff]
  %v1839 = vld [vmem:[%s1808 + $0xf0] sm:$0xff]
  %v1840 = vld [vmem:[%s1808 + $0xf8] sm:$0xff]
  %1841 = vmatprep.subr.mxu0 %v1840
  %1842 = vmatpush1.msra.mxu0 %v1839
  %1843 = vmatprep.subr.mxu0 %v1838
  %1844 = vmatpush1.msra.mxu0 %v1837
  %1845 = vmatprep.subr.mxu0 %v1836
  %1846 = vmatpush1.msra.mxu0 %v1835
  %1847 = vmatprep.subr.mxu0 %v1834
  %1848 = vmatpush1.msra.mxu0 %v1833
  %1849 = vmatprep.subr.mxu0 %v1832
  %1850 = vmatpush1.msra.mxu0 %v1831
  %1851 = vmatprep.subr.mxu0 %v1830
  %1852 = vmatpush1.msra.mxu0 %v1829
  %1853 = vmatprep.subr.mxu0 %v1828
  %1854 = vmatpush1.msra.mxu0 %v1827
  %1855 = vmatprep.subr.mxu0 %v1826
  %1856 = vmatpush1.msra.mxu0 %v1825
  %1857 = vmatprep.subr.mxu0 %v1824
  %1858 = vmatpush1.msra.mxu0 %v1823
  %1859 = vmatprep.subr.mxu0 %v1822
  %1860 = vmatpush1.msra.mxu0 %v1821
  %1861 = vmatprep.subr.mxu0 %v1820
  %1862 = vmatpush1.msra.mxu0 %v1819
  %1863 = vmatprep.subr.mxu0 %v1818
  %1864 = vmatpush1.msra.mxu0 %v1817
  %1865 = vmatprep.subr.mxu0 %v1816
  %1866 = vmatpush1.msra.mxu0 %v1815
  %1867 = vmatprep.subr.mxu0 %v1814
  %1868 = vmatpush1.msra.mxu0 %v1813
  %1869 = vmatprep.subr.mxu0 %v1812
  %1870 = vmatpush1.msra.mxu0 %v1811
  %1871 = vmatprep.subr.mxu0 %v1810
  %1872 = vmatpush1.msra.mxu0 %v1809
  %1873 = vmatprep.subr.mxu0 0.0
  %1874 = vmatpush2.msra.mxu0 0.0
  %1875 = vmatprep.subr.mxu0 0.0
  %1876 = vmatpush2.msra.mxu0 0.0
  %1877 = vmatprep.subr.mxu0 0.0
  %1878 = vmatpush2.msra.mxu0 0.0
  %1879 = vmatprep.subr.mxu0 0.0
  %1880 = vmatpush2.msra.mxu0 0.0
  %1881 = vmatprep.subr.mxu0 0.0
  %1882 = vmatpush2.msra.mxu0 0.0
  %1883 = vmatprep.subr.mxu0 0.0
  %1884 = vmatpush2.msra.mxu0 0.0
  %1885 = vmatprep.subr.mxu0 0.0
  %1886 = vmatpush2.msra.mxu0 0.0
  %1887 = vmatprep.subr.mxu0 0.0
  %1888 = vmatpush2.msra.mxu0 0.0
  %1889 = vmatprep.subr.mxu0 0.0
  %1890 = vmatpush2.msra.mxu0 0.0
  %1891 = vmatprep.subr.mxu0 0.0
  %1892 = vmatpush2.msra.mxu0 0.0
  %1893 = vmatprep.subr.mxu0 0.0
  %1894 = vmatpush2.msra.mxu0 0.0
  %1895 = vmatprep.subr.mxu0 0.0
  %1896 = vmatpush2.msra.mxu0 0.0
  %1897 = vmatprep.subr.mxu0 0.0
  %1898 = vmatpush2.msra.mxu0 0.0
  %1899 = vmatprep.subr.mxu0 0.0
  %1900 = vmatpush2.msra.mxu0 0.0
  %1901 = vmatprep.subr.mxu0 0.0
  %1902 = vmatpush2.msra.mxu0 0.0
  %1903 = vmatprep.subr.mxu0 0.0
  %1904 = vmatpush2.msra.mxu0 0.0
  %1905 = vmatprep.mubr.f32.mxu0 0.0
  %1906 = vmatmul.mubr.f32.gmra.mxu0 %v1507
  %v1907 = vpop.f32.mrf.mxu0
  %v1908 = vadd.f32 0.0, %v1907
  %v1909 = vpop.f32.mrf.mxu0
  %v1910 = vadd.f32 0.0, %v1909
  %1911 = vmatprep.mubr.f32.mxu0 0.0
  %1912 = vmatmul.mubr.f32.gmra.mxu0 %v1508
  %v1913 = vpop.f32.mrf.mxu0
  %v1914 = vadd.f32 0.0, %v1913
  %v1915 = vpop.f32.mrf.mxu0
  %v1916 = vadd.f32 0.0, %v1915
  %1917 = vmatprep.mubr.f32.mxu0 0.0
  %1918 = vmatmul.mubr.f32.gmra.mxu0 %v1509
  %v1919 = vpop.f32.mrf.mxu0
  %v1920 = vadd.f32 0.0, %v1919
  %v1921 = vpop.f32.mrf.mxu0
  %v1922 = vadd.f32 0.0, %v1921
  %1923 = vmatprep.mubr.f32.mxu0 0.0
  %1924 = vmatmul.mubr.f32.gmra.mxu0 %v1510
  %v1925 = vpop.f32.mrf.mxu0
  %v1926 = vadd.f32 0.0, %v1925
  %v1927 = vpop.f32.mrf.mxu0
  %v1928 = vadd.f32 0.0, %v1927
  %1929 = vmatprep.mubr.f32.mxu0 0.0
  %1930 = vmatmul.mubr.f32.gmra.mxu0 %v1511
  %v1931 = vpop.f32.mrf.mxu0
  %v1932 = vadd.f32 0.0, %v1931
  %v1933 = vpop.f32.mrf.mxu0
  %v1934 = vadd.f32 0.0, %v1933
  %1935 = vmatprep.mubr.f32.mxu0 0.0
  %1936 = vmatmul.mubr.f32.gmra.mxu0 %v1512
  %v1937 = vpop.f32.mrf.mxu0
  %v1938 = vadd.f32 0.0, %v1937
  %v1939 = vpop.f32.mrf.mxu0
  %v1940 = vadd.f32 0.0, %v1939
  %1941 = vmatprep.mubr.f32.mxu0 0.0
  %1942 = vmatmul.mubr.f32.gmra.mxu0 %v1513
  %v1943 = vpop.f32.mrf.mxu0
  %v1944 = vadd.f32 0.0, %v1943
  %v1945 = vpop.f32.mrf.mxu0
  %v1946 = vadd.f32 0.0, %v1945
  %1947 = vmatprep.mubr.f32.mxu0 0.0
  %1948 = vmatmul.mubr.f32.gmra.mxu0 %v1514
  %v1949 = vpop.f32.mrf.mxu0
  %v1950 = vadd.f32 0.0, %v1949
  %v1951 = vpop.f32.mrf.mxu0
  %v1952 = vadd.f32 0.0, %v1951
  %1953 = vdwg.mxu0
  %v1954 = vadd.f32 %v1762, %v1908
  %v1955 = vadd.f32 %v1764, %v1910
  %v1956 = vadd.f32 %v1768, %v1914
  %v1957 = vadd.f32 %v1770, %v1916
  %v1958 = vadd.f32 %v1774, %v1920
  %v1959 = vadd.f32 %v1776, %v1922
  %v1960 = vadd.f32 %v1780, %v1926
  %v1961 = vadd.f32 %v1782, %v1928
  %v1962 = vadd.f32 %v1786, %v1932
  %v1963 = vadd.f32 %v1788, %v1934
  %v1964 = vadd.f32 %v1792, %v1938
  %v1965 = vadd.f32 %v1794, %v1940
  %v1966 = vadd.f32 %v1798, %v1944
  %v1967 = vadd.f32 %v1800, %v1946
  %v1968 = vadd.f32 %v1804, %v1950
  %v1969 = vadd.f32 %v1806, %v1952
  %s1970 = scalar_lea.vmem %s3, 768
  %v1971 = vld [vmem:[%s1970] sm:$0xff]
  %v1972 = vld [vmem:[%s1970 + $0x8] sm:$0xff]
  %v1973 = vld [vmem:[%s1970 + $0x10] sm:$0xff]
  %v1974 = vld [vmem:[%s1970 + $0x18] sm:$0xff]
  %v1975 = vld [vmem:[%s1970 + $0x20] sm:$0xff]
  %v1976 = vld [vmem:[%s1970 + $0x28] sm:$0xff]
  %v1977 = vld [vmem:[%s1970 + $0x30] sm:$0xff]
  %v1978 = vld [vmem:[%s1970 + $0x38] sm:$0xff]
  %v1979 = vld [vmem:[%s1970 + $0x40] sm:$0xff]
  %v1980 = vld [vmem:[%s1970 + $0x48] sm:$0xff]
  %v1981 = vld [vmem:[%s1970 + $0x50] sm:$0xff]
  %v1982 = vld [vmem:[%s1970 + $0x58] sm:$0xff]
  %v1983 = vld [vmem:[%s1970 + $0x60] sm:$0xff]
  %v1984 = vld [vmem:[%s1970 + $0x68] sm:$0xff]
  %v1985 = vld [vmem:[%s1970 + $0x70] sm:$0xff]
  %v1986 = vld [vmem:[%s1970 + $0x78] sm:$0xff]
  %v1987 = vld [vmem:[%s1970 + $0x80] sm:$0xff]
  %v1988 = vld [vmem:[%s1970 + $0x88] sm:$0xff]
  %v1989 = vld [vmem:[%s1970 + $0x90] sm:$0xff]
  %v1990 = vld [vmem:[%s1970 + $0x98] sm:$0xff]
  %v1991 = vld [vmem:[%s1970 + $0xa0] sm:$0xff]
  %v1992 = vld [vmem:[%s1970 + $0xa8] sm:$0xff]
  %v1993 = vld [vmem:[%s1970 + $0xb0] sm:$0xff]
  %v1994 = vld [vmem:[%s1970 + $0xb8] sm:$0xff]
  %v1995 = vld [vmem:[%s1970 + $0xc0] sm:$0xff]
  %v1996 = vld [vmem:[%s1970 + $0xc8] sm:$0xff]
  %v1997 = vld [vmem:[%s1970 + $0xd0] sm:$0xff]
  %v1998 = vld [vmem:[%s1970 + $0xd8] sm:$0xff]
  %v1999 = vld [vmem:[%s1970 + $0xe0] sm:$0xff]
  %v2000 = vld [vmem:[%s1970 + $0xe8] sm:$0xff]
  %v2001 = vld [vmem:[%s1970 + $0xf0] sm:$0xff]
  %v2002 = vld [vmem:[%s1970 + $0xf8] sm:$0xff]
  %2003 = vmatprep.subr.mxu0 %v2002
  %2004 = vmatpush1.msra.mxu0 %v2001
  %2005 = vmatprep.subr.mxu0 %v2000
  %2006 = vmatpush1.msra.mxu0 %v1999
  %2007 = vmatprep.subr.mxu0 %v1998
  %2008 = vmatpush1.msra.mxu0 %v1997
  %2009 = vmatprep.subr.mxu0 %v1996
  %2010 = vmatpush1.msra.mxu0 %v1995
  %2011 = vmatprep.subr.mxu0 %v1994
  %2012 = vmatpush1.msra.mxu0 %v1993
  %2013 = vmatprep.subr.mxu0 %v1992
  %2014 = vmatpush1.msra.mxu0 %v1991
  %2015 = vmatprep.subr.mxu0 %v1990
  %2016 = vmatpush1.msra.mxu0 %v1989
  %2017 = vmatprep.subr.mxu0 %v1988
  %2018 = vmatpush1.msra.mxu0 %v1987
  %2019 = vmatprep.subr.mxu0 %v1986
  %2020 = vmatpush1.msra.mxu0 %v1985
  %2021 = vmatprep.subr.mxu0 %v1984
  %2022 = vmatpush1.msra.mxu0 %v1983
  %2023 = vmatprep.subr.mxu0 %v1982
  %2024 = vmatpush1.msra.mxu0 %v1981
  %2025 = vmatprep.subr.mxu0 %v1980
  %2026 = vmatpush1.msra.mxu0 %v1979
  %2027 = vmatprep.subr.mxu0 %v1978
  %2028 = vmatpush1.msra.mxu0 %v1977
  %2029 = vmatprep.subr.mxu0 %v1976
  %2030 = vmatpush1.msra.mxu0 %v1975
  %2031 = vmatprep.subr.mxu0 %v1974
  %2032 = vmatpush1.msra.mxu0 %v1973
  %2033 = vmatprep.subr.mxu0 %v1972
  %2034 = vmatpush1.msra.mxu0 %v1971
  %2035 = vmatprep.subr.mxu0 0.0
  %2036 = vmatpush2.msra.mxu0 0.0
  %2037 = vmatprep.subr.mxu0 0.0
  %2038 = vmatpush2.msra.mxu0 0.0
  %2039 = vmatprep.subr.mxu0 0.0
  %2040 = vmatpush2.msra.mxu0 0.0
  %2041 = vmatprep.subr.mxu0 0.0
  %2042 = vmatpush2.msra.mxu0 0.0
  %2043 = vmatprep.subr.mxu0 0.0
  %2044 = vmatpush2.msra.mxu0 0.0
  %2045 = vmatprep.subr.mxu0 0.0
  %2046 = vmatpush2.msra.mxu0 0.0
  %2047 = vmatprep.subr.mxu0 0.0
  %2048 = vmatpush2.msra.mxu0 0.0
  %2049 = vmatprep.subr.mxu0 0.0
  %2050 = vmatpush2.msra.mxu0 0.0
  %2051 = vmatprep.subr.mxu0 0.0
  %2052 = vmatpush2.msra.mxu0 0.0
  %2053 = vmatprep.subr.mxu0 0.0
  %2054 = vmatpush2.msra.mxu0 0.0
  %2055 = vmatprep.subr.mxu0 0.0
  %2056 = vmatpush2.msra.mxu0 0.0
  %2057 = vmatprep.subr.mxu0 0.0
  %2058 = vmatpush2.msra.mxu0 0.0
  %2059 = vmatprep.subr.mxu0 0.0
  %2060 = vmatpush2.msra.mxu0 0.0
  %2061 = vmatprep.subr.mxu0 0.0
  %2062 = vmatpush2.msra.mxu0 0.0
  %2063 = vmatprep.subr.mxu0 0.0
  %2064 = vmatpush2.msra.mxu0 0.0
  %2065 = vmatprep.subr.mxu0 0.0
  %2066 = vmatpush2.msra.mxu0 0.0
  %2067 = vmatprep.mubr.f32.mxu0 0.0
  %2068 = vmatmul.mubr.f32.gmra.mxu0 %v1508
  %v2069 = vpop.f32.mrf.mxu0
  %v2070 = vadd.f32 0.0, %v2069
  %v2071 = vpop.f32.mrf.mxu0
  %v2072 = vadd.f32 0.0, %v2071
  %2073 = vmatprep.mubr.f32.mxu0 0.0
  %2074 = vmatmul.mubr.f32.gmra.mxu0 %v1509
  %v2075 = vpop.f32.mrf.mxu0
  %v2076 = vadd.f32 0.0, %v2075
  %v2077 = vpop.f32.mrf.mxu0
  %v2078 = vadd.f32 0.0, %v2077
  %2079 = vmatprep.mubr.f32.mxu0 0.0
  %2080 = vmatmul.mubr.f32.gmra.mxu0 %v1510
  %v2081 = vpop.f32.mrf.mxu0
  %v2082 = vadd.f32 0.0, %v2081
  %v2083 = vpop.f32.mrf.mxu0
  %v2084 = vadd.f32 0.0, %v2083
  %2085 = vmatprep.mubr.f32.mxu0 0.0
  %2086 = vmatmul.mubr.f32.gmra.mxu0 %v1511
  %v2087 = vpop.f32.mrf.mxu0
  %v2088 = vadd.f32 0.0, %v2087
  %v2089 = vpop.f32.mrf.mxu0
  %v2090 = vadd.f32 0.0, %v2089
  %2091 = vmatprep.mubr.f32.mxu0 0.0
  %2092 = vmatmul.mubr.f32.gmra.mxu0 %v1512
  %v2093 = vpop.f32.mrf.mxu0
  %v2094 = vadd.f32 0.0, %v2093
  %v2095 = vpop.f32.mrf.mxu0
  %v2096 = vadd.f32 0.0, %v2095
  %2097 = vmatprep.mubr.f32.mxu0 0.0
  %2098 = vmatmul.mubr.f32.gmra.mxu0 %v1513
  %v2099 = vpop.f32.mrf.mxu0
  %v2100 = vadd.f32 0.0, %v2099
  %v2101 = vpop.f32.mrf.mxu0
  %v2102 = vadd.f32 0.0, %v2101
  %2103 = vmatprep.mubr.f32.mxu0 0.0
  %2104 = vmatmul.mubr.f32.gmra.mxu0 %v1514
  %v2105 = vpop.f32.mrf.mxu0
  %v2106 = vadd.f32 0.0, %v2105
  %v2107 = vpop.f32.mrf.mxu0
  %v2108 = vadd.f32 0.0, %v2107
  %2109 = vmatprep.mubr.f32.mxu0 0.0
  %2110 = vmatmul.mubr.f32.gmra.mxu0 %v1515
  %v2111 = vpop.f32.mrf.mxu0
  %v2112 = vadd.f32 0.0, %v2111
  %v2113 = vpop.f32.mrf.mxu0
  %v2114 = vadd.f32 0.0, %v2113
  %2115 = vdwg.mxu0
  %v2116 = vadd.f32 %v1954, %v2070
  %v2117 = vadd.f32 %v1955, %v2072
  %v2118 = vadd.f32 %v1956, %v2076
  %v2119 = vadd.f32 %v1957, %v2078
  %v2120 = vadd.f32 %v1958, %v2082
  %v2121 = vadd.f32 %v1959, %v2084
  %v2122 = vadd.f32 %v1960, %v2088
  %v2123 = vadd.f32 %v1961, %v2090
  %v2124 = vadd.f32 %v1962, %v2094
  %v2125 = vadd.f32 %v1963, %v2096
  %v2126 = vadd.f32 %v1964, %v2100
  %v2127 = vadd.f32 %v1965, %v2102
  %v2128 = vadd.f32 %v1966, %v2106
  %v2129 = vadd.f32 %v1967, %v2108
  %v2130 = vadd.f32 %v1968, %v2112
  %v2131 = vadd.f32 %v1969, %v2114
  %s2132 = scalar_lea.vmem %s3, 1024
  %v2133 = vld [vmem:[%s2132] sm:$0xff]
  %v2134 = vld [vmem:[%s2132 + $0x8] sm:$0xff]
  %v2135 = vld [vmem:[%s2132 + $0x10] sm:$0xff]
  %v2136 = vld [vmem:[%s2132 + $0x18] sm:$0xff]
  %v2137 = vld [vmem:[%s2132 + $0x20] sm:$0xff]
  %v2138 = vld [vmem:[%s2132 + $0x28] sm:$0xff]
  %v2139 = vld [vmem:[%s2132 + $0x30] sm:$0xff]
  %v2140 = vld [vmem:[%s2132 + $0x38] sm:$0xff]
  %v2141 = vld [vmem:[%s2132 + $0x40] sm:$0xff]
  %v2142 = vld [vmem:[%s2132 + $0x48] sm:$0xff]
  %v2143 = vld [vmem:[%s2132 + $0x50] sm:$0xff]
  %v2144 = vld [vmem:[%s2132 + $0x58] sm:$0xff]
  %v2145 = vld [vmem:[%s2132 + $0x60] sm:$0xff]
  %v2146 = vld [vmem:[%s2132 + $0x68] sm:$0xff]
  %v2147 = vld [vmem:[%s2132 + $0x70] sm:$0xff]
  %v2148 = vld [vmem:[%s2132 + $0x78] sm:$0xff]
  %v2149 = vld [vmem:[%s2132 + $0x80] sm:$0xff]
  %v2150 = vld [vmem:[%s2132 + $0x88] sm:$0xff]
  %v2151 = vld [vmem:[%s2132 + $0x90] sm:$0xff]
  %v2152 = vld [vmem:[%s2132 + $0x98] sm:$0xff]
  %v2153 = vld [vmem:[%s2132 + $0xa0] sm:$0xff]
  %v2154 = vld [vmem:[%s2132 + $0xa8] sm:$0xff]
  %v2155 = vld [vmem:[%s2132 + $0xb0] sm:$0xff]
  %v2156 = vld [vmem:[%s2132 + $0xb8] sm:$0xff]
  %v2157 = vld [vmem:[%s2132 + $0xc0] sm:$0xff]
  %v2158 = vld [vmem:[%s2132 + $0xc8] sm:$0xff]
  %v2159 = vld [vmem:[%s2132 + $0xd0] sm:$0xff]
  %v2160 = vld [vmem:[%s2132 + $0xd8] sm:$0xff]
  %v2161 = vld [vmem:[%s2132 + $0xe0] sm:$0xff]
  %v2162 = vld [vmem:[%s2132 + $0xe8] sm:$0xff]
  %v2163 = vld [vmem:[%s2132 + $0xf0] sm:$0xff]
  %v2164 = vld [vmem:[%s2132 + $0xf8] sm:$0xff]
  %2165 = vmatprep.subr.mxu0 %v2164
  %2166 = vmatpush1.msra.mxu0 %v2163
  %2167 = vmatprep.subr.mxu0 %v2162
  %2168 = vmatpush1.msra.mxu0 %v2161
  %2169 = vmatprep.subr.mxu0 %v2160
  %2170 = vmatpush1.msra.mxu0 %v2159
  %2171 = vmatprep.subr.mxu0 %v2158
  %2172 = vmatpush1.msra.mxu0 %v2157
  %2173 = vmatprep.subr.mxu0 %v2156
  %2174 = vmatpush1.msra.mxu0 %v2155
  %2175 = vmatprep.subr.mxu0 %v2154
  %2176 = vmatpush1.msra.mxu0 %v2153
  %2177 = vmatprep.subr.mxu0 %v2152
  %2178 = vmatpush1.msra.mxu0 %v2151
  %2179 = vmatprep.subr.mxu0 %v2150
  %2180 = vmatpush1.msra.mxu0 %v2149
  %2181 = vmatprep.subr.mxu0 %v2148
  %2182 = vmatpush1.msra.mxu0 %v2147
  %2183 = vmatprep.subr.mxu0 %v2146
  %2184 = vmatpush1.msra.mxu0 %v2145
  %2185 = vmatprep.subr.mxu0 %v2144
  %2186 = vmatpush1.msra.mxu0 %v2143
  %2187 = vmatprep.subr.mxu0 %v2142
  %2188 = vmatpush1.msra.mxu0 %v2141
  %2189 = vmatprep.subr.mxu0 %v2140
  %2190 = vmatpush1.msra.mxu0 %v2139
  %2191 = vmatprep.subr.mxu0 %v2138
  %2192 = vmatpush1.msra.mxu0 %v2137
  %2193 = vmatprep.subr.mxu0 %v2136
  %2194 = vmatpush1.msra.mxu0 %v2135
  %2195 = vmatprep.subr.mxu0 %v2134
  %2196 = vmatpush1.msra.mxu0 %v2133
  %2197 = vmatprep.subr.mxu0 0.0
  %2198 = vmatpush2.msra.mxu0 0.0
  %2199 = vmatprep.subr.mxu0 0.0
  %2200 = vmatpush2.msra.mxu0 0.0
  %2201 = vmatprep.subr.mxu0 0.0
  %2202 = vmatpush2.msra.mxu0 0.0
  %2203 = vmatprep.subr.mxu0 0.0
  %2204 = vmatpush2.msra.mxu0 0.0
  %2205 = vmatprep.subr.mxu0 0.0
  %2206 = vmatpush2.msra.mxu0 0.0
  %2207 = vmatprep.subr.mxu0 0.0
  %2208 = vmatpush2.msra.mxu0 0.0
  %2209 = vmatprep.subr.mxu0 0.0
  %2210 = vmatpush2.msra.mxu0 0.0
  %2211 = vmatprep.subr.mxu0 0.0
  %2212 = vmatpush2.msra.mxu0 0.0
  %2213 = vmatprep.subr.mxu0 0.0
  %2214 = vmatpush2.msra.mxu0 0.0
  %2215 = vmatprep.subr.mxu0 0.0
  %2216 = vmatpush2.msra.mxu0 0.0
  %2217 = vmatprep.subr.mxu0 0.0
  %2218 = vmatpush2.msra.mxu0 0.0
  %2219 = vmatprep.subr.mxu0 0.0
  %2220 = vmatpush2.msra.mxu0 0.0
  %2221 = vmatprep.subr.mxu0 0.0
  %2222 = vmatpush2.msra.mxu0 0.0
  %2223 = vmatprep.subr.mxu0 0.0
  %2224 = vmatpush2.msra.mxu0 0.0
  %2225 = vmatprep.subr.mxu0 0.0
  %2226 = vmatpush2.msra.mxu0 0.0
  %2227 = vmatprep.subr.mxu0 0.0
  %2228 = vmatpush2.msra.mxu0 0.0
  %2229 = vmatprep.mubr.f32.mxu0 0.0
  %2230 = vmatmul.mubr.f32.gmra.mxu0 %v1509
  %v2231 = vpop.f32.mrf.mxu0
  %v2232 = vadd.f32 0.0, %v2231
  %v2233 = vpop.f32.mrf.mxu0
  %v2234 = vadd.f32 0.0, %v2233
  %2235 = vmatprep.mubr.f32.mxu0 0.0
  %2236 = vmatmul.mubr.f32.gmra.mxu0 %v1510
  %v2237 = vpop.f32.mrf.mxu0
  %v2238 = vadd.f32 0.0, %v2237
  %v2239 = vpop.f32.mrf.mxu0
  %v2240 = vadd.f32 0.0, %v2239
  %2241 = vmatprep.mubr.f32.mxu0 0.0
  %2242 = vmatmul.mubr.f32.gmra.mxu0 %v1511
  %v2243 = vpop.f32.mrf.mxu0
  %v2244 = vadd.f32 0.0, %v2243
  %v2245 = vpop.f32.mrf.mxu0
  %v2246 = vadd.f32 0.0, %v2245
  %2247 = vmatprep.mubr.f32.mxu0 0.0
  %2248 = vmatmul.mubr.f32.gmra.mxu0 %v1512
  %v2249 = vpop.f32.mrf.mxu0
  %v2250 = vadd.f32 0.0, %v2249
  %v2251 = vpop.f32.mrf.mxu0
  %v2252 = vadd.f32 0.0, %v2251
  %2253 = vmatprep.mubr.f32.mxu0 0.0
  %2254 = vmatmul.mubr.f32.gmra.mxu0 %v1513
  %v2255 = vpop.f32.mrf.mxu0
  %v2256 = vadd.f32 0.0, %v2255
  %v2257 = vpop.f32.mrf.mxu0
  %v2258 = vadd.f32 0.0, %v2257
  %2259 = vmatprep.mubr.f32.mxu0 0.0
  %2260 = vmatmul.mubr.f32.gmra.mxu0 %v1514
  %v2261 = vpop.f32.mrf.mxu0
  %v2262 = vadd.f32 0.0, %v2261
  %v2263 = vpop.f32.mrf.mxu0
  %v2264 = vadd.f32 0.0, %v2263
  %2265 = vmatprep.mubr.f32.mxu0 0.0
  %2266 = vmatmul.mubr.f32.gmra.mxu0 %v1515
  %v2267 = vpop.f32.mrf.mxu0
  %v2268 = vadd.f32 0.0, %v2267
  %v2269 = vpop.f32.mrf.mxu0
  %v2270 = vadd.f32 0.0, %v2269
  %2271 = vmatprep.mubr.f32.mxu0 0.0
  %2272 = vmatmul.mubr.f32.gmra.mxu0 %v1516
  %v2273 = vpop.f32.mrf.mxu0
  %v2274 = vadd.f32 0.0, %v2273
  %v2275 = vpop.f32.mrf.mxu0
  %v2276 = vadd.f32 0.0, %v2275
  %2277 = vdwg.mxu0
  %v2278 = vadd.f32 %v2116, %v2232
  %v2279 = vadd.f32 %v2117, %v2234
  %v2280 = vadd.f32 %v2118, %v2238
  %v2281 = vadd.f32 %v2119, %v2240
  %v2282 = vadd.f32 %v2120, %v2244
  %v2283 = vadd.f32 %v2121, %v2246
  %v2284 = vadd.f32 %v2122, %v2250
  %v2285 = vadd.f32 %v2123, %v2252
  %v2286 = vadd.f32 %v2124, %v2256
  %v2287 = vadd.f32 %v2125, %v2258
  %v2288 = vadd.f32 %v2126, %v2262
  %v2289 = vadd.f32 %v2127, %v2264
  %v2290 = vadd.f32 %v2128, %v2268
  %v2291 = vadd.f32 %v2129, %v2270
  %v2292 = vadd.f32 %v2130, %v2274
  %v2293 = vadd.f32 %v2131, %v2276
  %v2294 = vld [vmem:[%s4] sm:$0x3]
  %v2296 = vlaneseq
  %v2297 = vshrl.u32 %v2296, 7
  %v2298 = vsub.s32 0, %v2297
  %v2299 = vrot.slane %v2294, %v2298
  %v2300 = vlaneseq
  %v2301 = vshrl.u32 %v2300, 7
  %v2302 = vsub.s32 1, %v2301
  %v2303 = vrot.slane %v2294, %v2302
  %v2306 = vadd.f32 %v2278, %v2299
  %v2307 = vadd.f32 %v2279, %v2303
  %v2308 = vadd.f32 %v2280, %v2299
  %v2309 = vadd.f32 %v2281, %v2303
  %v2310 = vadd.f32 %v2282, %v2299
  %v2311 = vadd.f32 %v2283, %v2303
  %v2312 = vadd.f32 %v2284, %v2299
  %v2313 = vadd.f32 %v2285, %v2303
  %v2314 = vadd.f32 %v2286, %v2299
  %v2315 = vadd.f32 %v2287, %v2303
  %v2316 = vadd.f32 %v2288, %v2299
  %v2317 = vadd.f32 %v2289, %v2303
  %v2318 = vadd.f32 %v2290, %v2299
  %v2319 = vadd.f32 %v2291, %v2303
  %v2320 = vadd.f32 %v2292, %v2299
  %v2321 = vadd.f32 %v2293, %v2303
  %v2322 = vmax.f32 %v2306, %v2307
  %v2323 = vmax.f32 %v2308, %v2309
  %v2324 = vmax.f32 %v2310, %v2311
  %v2325 = vmax.f32 %v2312, %v2313
  %v2326 = vmax.f32 %v2314, %v2315
  %v2327 = vmax.f32 %v2316, %v2317
  %v2328 = vmax.f32 %v2318, %v2319
  %v2329 = vmax.f32 %v2320, %v2321
  %v2330 = vmax.f32 %v2322, %v2323
  %v2331 = vmax.f32 %v2324, %v2325
  %v2332 = vmax.f32 %v2326, %v2327
  %v2333 = vmax.f32 %v2328, %v2329
  %v2334 = vmax.f32 %v2330, 0.0
  %v2335 = vmax.f32 %v2331, 0.0
  %v2336 = vmax.f32 %v2332, 0.0
  %v2337 = vmax.f32 %v2333, 0.0
  %v2338 = vld [vmem:[%s5] sm:$0xff]
  %v2339 = vld [vmem:[%s5 + $0x8] sm:$0xff]
  %v2340 = vld [vmem:[%s5 + $0x10] sm:$0xff]
  %v2341 = vld [vmem:[%s5 + $0x18] sm:$0xff]
  %v2342 = vld [vmem:[%s5 + $0x20] sm:$0xff]
  %v2343 = vld [vmem:[%s5 + $0x28] sm:$0xff]
  %v2344 = vld [vmem:[%s5 + $0x30] sm:$0xff]
  %v2345 = vld [vmem:[%s5 + $0x38] sm:$0xff]
  %v2346 = vld [vmem:[%s5 + $0x40] sm:$0xff]
  %v2347 = vld [vmem:[%s5 + $0x48] sm:$0xff]
  %v2348 = vld [vmem:[%s5 + $0x50] sm:$0xff]
  %v2349 = vld [vmem:[%s5 + $0x58] sm:$0xff]
  %v2350 = vld [vmem:[%s5 + $0x60] sm:$0xff]
  %v2351 = vld [vmem:[%s5 + $0x68] sm:$0xff]
  %v2352 = vld [vmem:[%s5 + $0x70] sm:$0xff]
  %v2353 = vld [vmem:[%s5 + $0x78] sm:$0xff]
  %s2354 = scalar_lea.vmem %s5, 128
  %v2355 = vld [vmem:[%s2354] sm:$0xff]
  %v2356 = vld [vmem:[%s2354 + $0x8] sm:$0xff]
  %v2357 = vld [vmem:[%s2354 + $0x10] sm:$0xff]
  %v2358 = vld [vmem:[%s2354 + $0x18] sm:$0xff]
  %v2359 = vld [vmem:[%s2354 + $0x20] sm:$0xff]
  %v2360 = vld [vmem:[%s2354 + $0x28] sm:$0xff]
  %v2361 = vld [vmem:[%s2354 + $0x30] sm:$0xff]
  %v2362 = vld [vmem:[%s2354 + $0x38] sm:$0xff]
  %v2363 = vld [vmem:[%s2354 + $0x40] sm:$0xff]
  %v2364 = vld [vmem:[%s2354 + $0x48] sm:$0xff]
  %v2365 = vld [vmem:[%s2354 + $0x50] sm:$0xff]
  %v2366 = vld [vmem:[%s2354 + $0x58] sm:$0xff]
  %v2367 = vld [vmem:[%s2354 + $0x60] sm:$0xff]
  %v2368 = vld [vmem:[%s2354 + $0x68] sm:$0xff]
  %v2369 = vld [vmem:[%s2354 + $0x70] sm:$0xff]
  %v2370 = vld [vmem:[%s2354 + $0x78] sm:$0xff]
  %2371 = vmatprep.subr.mxu0 0.0
  %2372 = vmatpush1.msra.mxu0 %v2370
  %2373 = vmatprep.subr.mxu0 0.0
  %2374 = vmatpush1.msra.mxu0 %v2369
  %2375 = vmatprep.subr.mxu0 0.0
  %2376 = vmatpush1.msra.mxu0 %v2368
  %2377 = vmatprep.subr.mxu0 0.0
  %2378 = vmatpush1.msra.mxu0 %v2367
  %2379 = vmatprep.subr.mxu0 0.0
  %2380 = vmatpush1.msra.mxu0 %v2366
  %2381 = vmatprep.subr.mxu0 0.0
  %2382 = vmatpush1.msra.mxu0 %v2365
  %2383 = vmatprep.subr.mxu0 0.0
  %2384 = vmatpush1.msra.mxu0 %v2364
  %2385 = vmatprep.subr.mxu0 0.0
  %2386 = vmatpush1.msra.mxu0 %v2363
  %2387 = vmatprep.subr.mxu0 0.0
  %2388 = vmatpush1.msra.mxu0 %v2362
  %2389 = vmatprep.subr.mxu0 0.0
  %2390 = vmatpush1.msra.mxu0 %v2361
  %2391 = vmatprep.subr.mxu0 0.0
  %2392 = vmatpush1.msra.mxu0 %v2360
  %2393 = vmatprep.subr.mxu0 0.0
  %2394 = vmatpush1.msra.mxu0 %v2359
  %2395 = vmatprep.subr.mxu0 0.0
  %2396 = vmatpush1.msra.mxu0 %v2358
  %2397 = vmatprep.subr.mxu0 0.0
  %2398 = vmatpush1.msra.mxu0 %v2357
  %2399 = vmatprep.subr.mxu0 0.0
  %2400 = vmatpush1.msra.mxu0 %v2356
  %2401 = vmatprep.subr.mxu0 0.0
  %2402 = vmatpush1.msra.mxu0 %v2355
  %2403 = vmatprep.subr.mxu0 0.0
  %2404 = vmatpush2.msra.mxu0 0.0
  %2405 = vmatprep.subr.mxu0 0.0
  %2406 = vmatpush2.msra.mxu0 0.0
  %2407 = vmatprep.subr.mxu0 0.0
  %2408 = vmatpush2.msra.mxu0 0.0
  %2409 = vmatprep.subr.mxu0 0.0
  %2410 = vmatpush2.msra.mxu0 0.0
  %2411 = vmatprep.subr.mxu0 0.0
  %2412 = vmatpush2.msra.mxu0 0.0
  %2413 = vmatprep.subr.mxu0 0.0
  %2414 = vmatpush2.msra.mxu0 0.0
  %2415 = vmatprep.subr.mxu0 0.0
  %2416 = vmatpush2.msra.mxu0 0.0
  %2417 = vmatprep.subr.mxu0 0.0
  %2418 = vmatpush2.msra.mxu0 0.0
  %2419 = vmatprep.subr.mxu0 0.0
  %2420 = vmatpush2.msra.mxu0 0.0
  %2421 = vmatprep.subr.mxu0 0.0
  %2422 = vmatpush2.msra.mxu0 0.0
  %2423 = vmatprep.subr.mxu0 0.0
  %2424 = vmatpush2.msra.mxu0 0.0
  %2425 = vmatprep.subr.mxu0 0.0
  %2426 = vmatpush2.msra.mxu0 0.0
  %2427 = vmatprep.subr.mxu0 0.0
  %2428 = vmatpush2.msra.mxu0 0.0
  %2429 = vmatprep.subr.mxu0 0.0
  %2430 = vmatpush2.msra.mxu0 0.0
  %2431 = vmatprep.subr.mxu0 0.0
  %2432 = vmatpush2.msra.mxu0 0.0
  %2433 = vmatprep.subr.mxu0 0.0
  %2434 = vmatpush2.msra.mxu0 0.0
  %2435 = vmatprep.mubr.f32.mxu0 0.0
  %2436 = vmatmul.mubr.f32.gmra.mxu0 %v2335
  %v2437 = vpop.f32.mrf.mxu0
  %v2438 = vadd.f32 0.0, %v2437
  %v2439 = vpop.f32.mrf.mxu0
  %2440 = vdwg.mxu0
  %2441 = vmatprep.subr.mxu0 0.0
  %2442 = vmatpush1.msra.mxu0 %v2353
  %2443 = vmatprep.subr.mxu0 0.0
  %2444 = vmatpush1.msra.mxu0 %v2352
  %2445 = vmatprep.subr.mxu0 0.0
  %2446 = vmatpush1.msra.mxu0 %v2351
  %2447 = vmatprep.subr.mxu0 0.0
  %2448 = vmatpush1.msra.mxu0 %v2350
  %2449 = vmatprep.subr.mxu0 0.0
  %2450 = vmatpush1.msra.mxu0 %v2349
  %2451 = vmatprep.subr.mxu0 0.0
  %2452 = vmatpush1.msra.mxu0 %v2348
  %2453 = vmatprep.subr.mxu0 0.0
  %2454 = vmatpush1.msra.mxu0 %v2347
  %2455 = vmatprep.subr.mxu0 0.0
  %2456 = vmatpush1.msra.mxu0 %v2346
  %2457 = vmatprep.subr.mxu0 0.0
  %2458 = vmatpush1.msra.mxu0 %v2345
  %2459 = vmatprep.subr.mxu0 0.0
  %2460 = vmatpush1.msra.mxu0 %v2344
  %2461 = vmatprep.subr.mxu0 0.0
  %2462 = vmatpush1.msra.mxu0 %v2343
  %2463 = vmatprep.subr.mxu0 0.0
  %2464 = vmatpush1.msra.mxu0 %v2342
  %2465 = vmatprep.subr.mxu0 0.0
  %2466 = vmatpush1.msra.mxu0 %v2341
  %2467 = vmatprep.subr.mxu0 0.0
  %2468 = vmatpush1.msra.mxu0 %v2340
  %2469 = vmatprep.subr.mxu0 0.0
  %2470 = vmatpush1.msra.mxu0 %v2339
  %2471 = vmatprep.subr.mxu0 0.0
  %2472 = vmatpush1.msra.mxu0 %v2338
  %2473 = vmatprep.subr.mxu0 0.0
  %2474 = vmatpush2.msra.mxu0 0.0
  %2475 = vmatprep.subr.mxu0 0.0
  %2476 = vmatpush2.msra.mxu0 0.0
  %2477 = vmatprep.subr.mxu0 0.0
  %2478 = vmatpush2.msra.mxu0 0.0
  %2479 = vmatprep.subr.mxu0 0.0
  %2480 = vmatpush2.msra.mxu0 0.0
  %2481 = vmatprep.subr.mxu0 0.0
  %2482 = vmatpush2.msra.mxu0 0.0
  %2483 = vmatprep.subr.mxu0 0.0
  %2484 = vmatpush2.msra.mxu0 0.0
  %2485 = vmatprep.subr.mxu0 0.0
  %2486 = vmatpush2.msra.mxu0 0.0
  %2487 = vmatprep.subr.mxu0 0.0
  %2488 = vmatpush2.msra.mxu0 0.0
  %2489 = vmatprep.subr.mxu0 0.0
  %2490 = vmatpush2.msra.mxu0 0.0
  %2491 = vmatprep.subr.mxu0 0.0
  %2492 = vmatpush2.msra.mxu0 0.0
  %2493 = vmatprep.subr.mxu0 0.0
  %2494 = vmatpush2.msra.mxu0 0.0
  %2495 = vmatprep.subr.mxu0 0.0
  %2496 = vmatpush2.msra.mxu0 0.0
  %2497 = vmatprep.subr.mxu0 0.0
  %2498 = vmatpush2.msra.mxu0 0.0
  %2499 = vmatprep.subr.mxu0 0.0
  %2500 = vmatpush2.msra.mxu0 0.0
  %2501 = vmatprep.subr.mxu0 0.0
  %2502 = vmatpush2.msra.mxu0 0.0
  %2503 = vmatprep.subr.mxu0 0.0
  %2504 = vmatpush2.msra.mxu0 0.0
  %2505 = vmatprep.mubr.f32.mxu0 0.0
  %2506 = vmatmul.mubr.f32.gmra.mxu0 %v2334
  %v2507 = vpop.f32.mrf.mxu0
  %v2508 = vadd.f32 %v2438, %v2507
  %v2509 = vpop.f32.mrf.mxu0
  %2510 = vdwg.mxu0
  %s2511 = scalar_lea.vmem %s5, 256
  %v2512 = vld [vmem:[%s2511] sm:$0xff]
  %v2513 = vld [vmem:[%s2511 + $0x8] sm:$0xff]
  %v2514 = vld [vmem:[%s2511 + $0x10] sm:$0xff]
  %v2515 = vld [vmem:[%s2511 + $0x18] sm:$0xff]
  %v2516 = vld [vmem:[%s2511 + $0x20] sm:$0xff]
  %v2517 = vld [vmem:[%s2511 + $0x28] sm:$0xff]
  %v2518 = vld [vmem:[%s2511 + $0x30] sm:$0xff]
  %v2519 = vld [vmem:[%s2511 + $0x38] sm:$0xff]
  %v2520 = vld [vmem:[%s2511 + $0x40] sm:$0xff]
  %v2521 = vld [vmem:[%s2511 + $0x48] sm:$0xff]
  %v2522 = vld [vmem:[%s2511 + $0x50] sm:$0xff]
  %v2523 = vld [vmem:[%s2511 + $0x58] sm:$0xff]
  %v2524 = vld [vmem:[%s2511 + $0x60] sm:$0xff]
  %v2525 = vld [vmem:[%s2511 + $0x68] sm:$0xff]
  %v2526 = vld [vmem:[%s2511 + $0x70] sm:$0xff]
  %v2527 = vld [vmem:[%s2511 + $0x78] sm:$0xff]
  %2528 = vmatprep.subr.mxu0 0.0
  %2529 = vmatpush1.msra.mxu0 %v2527
  %2530 = vmatprep.subr.mxu0 0.0
  %2531 = vmatpush1.msra.mxu0 %v2526
  %2532 = vmatprep.subr.mxu0 0.0
  %2533 = vmatpush1.msra.mxu0 %v2525
  %2534 = vmatprep.subr.mxu0 0.0
  %2535 = vmatpush1.msra.mxu0 %v2524
  %2536 = vmatprep.subr.mxu0 0.0
  %2537 = vmatpush1.msra.mxu0 %v2523
  %2538 = vmatprep.subr.mxu0 0.0
  %2539 = vmatpush1.msra.mxu0 %v2522
  %2540 = vmatprep.subr.mxu0 0.0
  %2541 = vmatpush1.msra.mxu0 %v2521
  %2542 = vmatprep.subr.mxu0 0.0
  %2543 = vmatpush1.msra.mxu0 %v2520
  %2544 = vmatprep.subr.mxu0 0.0
  %2545 = vmatpush1.msra.mxu0 %v2519
  %2546 = vmatprep.subr.mxu0 0.0
  %2547 = vmatpush1.msra.mxu0 %v2518
  %2548 = vmatprep.subr.mxu0 0.0
  %2549 = vmatpush1.msra.mxu0 %v2517
  %2550 = vmatprep.subr.mxu0 0.0
  %2551 = vmatpush1.msra.mxu0 %v2516
  %2552 = vmatprep.subr.mxu0 0.0
  %2553 = vmatpush1.msra.mxu0 %v2515
  %2554 = vmatprep.subr.mxu0 0.0
  %2555 = vmatpush1.msra.mxu0 %v2514
  %2556 = vmatprep.subr.mxu0 0.0
  %2557 = vmatpush1.msra.mxu0 %v2513
  %2558 = vmatprep.subr.mxu0 0.0
  %2559 = vmatpush1.msra.mxu0 %v2512
  %2560 = vmatprep.subr.mxu0 0.0
  %2561 = vmatpush2.msra.mxu0 0.0
  %2562 = vmatprep.subr.mxu0 0.0
  %2563 = vmatpush2.msra.mxu0 0.0
  %2564 = vmatprep.subr.mxu0 0.0
  %2565 = vmatpush2.msra.mxu0 0.0
  %2566 = vmatprep.subr.mxu0 0.0
  %2567 = vmatpush2.msra.mxu0 0.0
  %2568 = vmatprep.subr.mxu0 0.0
  %2569 = vmatpush2.msra.mxu0 0.0
  %2570 = vmatprep.subr.mxu0 0.0
  %2571 = vmatpush2.msra.mxu0 0.0
  %2572 = vmatprep.subr.mxu0 0.0
  %2573 = vmatpush2.msra.mxu0 0.0
  %2574 = vmatprep.subr.mxu0 0.0
  %2575 = vmatpush2.msra.mxu0 0.0
  %2576 = vmatprep.subr.mxu0 0.0
  %2577 = vmatpush2.msra.mxu0 0.0
  %2578 = vmatprep.subr.mxu0 0.0
  %2579 = vmatpush2.msra.mxu0 0.0
  %2580 = vmatprep.subr.mxu0 0.0
  %2581 = vmatpush2.msra.mxu0 0.0
  %2582 = vmatprep.subr.mxu0 0.0
  %2583 = vmatpush2.msra.mxu0 0.0
  %2584 = vmatprep.subr.mxu0 0.0
  %2585 = vmatpush2.msra.mxu0 0.0
  %2586 = vmatprep.subr.mxu0 0.0
  %2587 = vmatpush2.msra.mxu0 0.0
  %2588 = vmatprep.subr.mxu0 0.0
  %2589 = vmatpush2.msra.mxu0 0.0
  %2590 = vmatprep.subr.mxu0 0.0
  %2591 = vmatpush2.msra.mxu0 0.0
  %2592 = vmatprep.mubr.f32.mxu0 0.0
  %2593 = vmatmul.mubr.f32.gmra.mxu0 %v2336
  %v2594 = vpop.f32.mrf.mxu0
  %v2595 = vadd.f32 0.0, %v2594
  %v2596 = vpop.f32.mrf.mxu0
  %2597 = vdwg.mxu0
  %v2598 = vadd.f32 %v2508, %v2595
  %s2599 = scalar_lea.vmem %s5, 384
  %v2600 = vld [vmem:[%s2599] sm:$0xff]
  %v2601 = vld [vmem:[%s2599 + $0x8] sm:$0xff]
  %v2602 = vld [vmem:[%s2599 + $0x10] sm:$0xff]
  %v2603 = vld [vmem:[%s2599 + $0x18] sm:$0xff]
  %v2604 = vld [vmem:[%s2599 + $0x20] sm:$0xff]
  %v2605 = vld [vmem:[%s2599 + $0x28] sm:$0xff]
  %v2606 = vld [vmem:[%s2599 + $0x30] sm:$0xff]
  %v2607 = vld [vmem:[%s2599 + $0x38] sm:$0xff]
  %v2608 = vld [vmem:[%s2599 + $0x40] sm:$0xff]
  %v2609 = vld [vmem:[%s2599 + $0x48] sm:$0xff]
  %v2610 = vld [vmem:[%s2599 + $0x50] sm:$0xff]
  %v2611 = vld [vmem:[%s2599 + $0x58] sm:$0xff]
  %v2612 = vld [vmem:[%s2599 + $0x60] sm:$0xff]
  %v2613 = vld [vmem:[%s2599 + $0x68] sm:$0xff]
  %v2614 = vld [vmem:[%s2599 + $0x70] sm:$0xff]
  %v2615 = vld [vmem:[%s2599 + $0x78] sm:$0xff]
  %2616 = vmatprep.subr.mxu0 0.0
  %2617 = vmatpush1.msra.mxu0 %v2615
  %2618 = vmatprep.subr.mxu0 0.0
  %2619 = vmatpush1.msra.mxu0 %v2614
  %2620 = vmatprep.subr.mxu0 0.0
  %2621 = vmatpush1.msra.mxu0 %v2613
  %2622 = vmatprep.subr.mxu0 0.0
  %2623 = vmatpush1.msra.mxu0 %v2612
  %2624 = vmatprep.subr.mxu0 0.0
  %2625 = vmatpush1.msra.mxu0 %v2611
  %2626 = vmatprep.subr.mxu0 0.0
  %2627 = vmatpush1.msra.mxu0 %v2610
  %2628 = vmatprep.subr.mxu0 0.0
  %2629 = vmatpush1.msra.mxu0 %v2609
  %2630 = vmatprep.subr.mxu0 0.0
  %2631 = vmatpush1.msra.mxu0 %v2608
  %2632 = vmatprep.subr.mxu0 0.0
  %2633 = vmatpush1.msra.mxu0 %v2607
  %2634 = vmatprep.subr.mxu0 0.0
  %2635 = vmatpush1.msra.mxu0 %v2606
  %2636 = vmatprep.subr.mxu0 0.0
  %2637 = vmatpush1.msra.mxu0 %v2605
  %2638 = vmatprep.subr.mxu0 0.0
  %2639 = vmatpush1.msra.mxu0 %v2604
  %2640 = vmatprep.subr.mxu0 0.0
  %2641 = vmatpush1.msra.mxu0 %v2603
  %2642 = vmatprep.subr.mxu0 0.0
  %2643 = vmatpush1.msra.mxu0 %v2602
  %2644 = vmatprep.subr.mxu0 0.0
  %2645 = vmatpush1.msra.mxu0 %v2601
  %2646 = vmatprep.subr.mxu0 0.0
  %2647 = vmatpush1.msra.mxu0 %v2600
  %2648 = vmatprep.subr.mxu0 0.0
  %2649 = vmatpush2.msra.mxu0 0.0
  %2650 = vmatprep.subr.mxu0 0.0
  %2651 = vmatpush2.msra.mxu0 0.0
  %2652 = vmatprep.subr.mxu0 0.0
  %2653 = vmatpush2.msra.mxu0 0.0
  %2654 = vmatprep.subr.mxu0 0.0
  %2655 = vmatpush2.msra.mxu0 0.0
  %2656 = vmatprep.subr.mxu0 0.0
  %2657 = vmatpush2.msra.mxu0 0.0
  %2658 = vmatprep.subr.mxu0 0.0
  %2659 = vmatpush2.msra.mxu0 0.0
  %2660 = vmatprep.subr.mxu0 0.0
  %2661 = vmatpush2.msra.mxu0 0.0
  %2662 = vmatprep.subr.mxu0 0.0
  %2663 = vmatpush2.msra.mxu0 0.0
  %2664 = vmatprep.subr.mxu0 0.0
  %2665 = vmatpush2.msra.mxu0 0.0
  %2666 = vmatprep.subr.mxu0 0.0
  %2667 = vmatpush2.msra.mxu0 0.0
  %2668 = vmatprep.subr.mxu0 0.0
  %2669 = vmatpush2.msra.mxu0 0.0
  %2670 = vmatprep.subr.mxu0 0.0
  %2671 = vmatpush2.msra.mxu0 0.0
  %2672 = vmatprep.subr.mxu0 0.0
  %2673 = vmatpush2.msra.mxu0 0.0
  %2674 = vmatprep.subr.mxu0 0.0
  %2675 = vmatpush2.msra.mxu0 0.0
  %2676 = vmatprep.subr.mxu0 0.0
  %2677 = vmatpush2.msra.mxu0 0.0
  %2678 = vmatprep.subr.mxu0 0.0
  %2679 = vmatpush2.msra.mxu0 0.0
  %2680 = vmatprep.mubr.f32.mxu0 0.0
  %2681 = vmatmul.mubr.f32.gmra.mxu0 %v2337
  %v2682 = vpop.f32.mrf.mxu0
  %v2683 = vadd.f32 0.0, %v2682
  %v2684 = vpop.f32.mrf.mxu0
  %2685 = vdwg.mxu0
  %v2686 = vadd.f32 %v2598, %v2683
  %v2687 = vld [vmem:[%s6] sm:$0x1]
  %v2689 = vlaneseq
  %v2690 = vshrl.u32 %v2689, 7
  %v2691 = vsub.s32 0, %v2690
  %v2692 = vrot.slane %v2687, %v2691
  %v2694 = vadd.f32 %v2686, %v2692
  %v2695 = vmax.f32 %v2694, 0.0
  %v2696 = vld [vmem:[%s7] sm:$0xff]
  %v2697 = vld [vmem:[%s7 + $0x8] sm:$0xff]
  %v2698 = vld [vmem:[%s7 + $0x10] sm:$0xff]
  %v2699 = vld [vmem:[%s7 + $0x18] sm:$0xff]
  %v2700 = vld [vmem:[%s7 + $0x20] sm:$0xff]
  %v2701 = vld [vmem:[%s7 + $0x28] sm:$0xff]
  %v2702 = vld [vmem:[%s7 + $0x30] sm:$0xff]
  %v2703 = vld [vmem:[%s7 + $0x38] sm:$0xff]
  %v2704 = vld [vmem:[%s7 + $0x40] sm:$0xff]
  %v2705 = vld [vmem:[%s7 + $0x48] sm:$0xff]
  %v2706 = vld [vmem:[%s7 + $0x50] sm:$0xff]
  %v2707 = vld [vmem:[%s7 + $0x58] sm:$0xff]
  %v2708 = vld [vmem:[%s7 + $0x60] sm:$0xff]
  %v2709 = vld [vmem:[%s7 + $0x68] sm:$0xff]
  %v2710 = vld [vmem:[%s7 + $0x70] sm:$0xff]
  %v2711 = vld [vmem:[%s7 + $0x78] sm:$0xff]
  %v2712 = vld [vmem:[%s8] sm:$0x1]
  %v2714 = vlaneseq
  %v2715 = vshrl.u32 %v2714, 7
  %v2716 = vsub.s32 0, %v2715
  %v2717 = vrot.slane %v2712, %v2716
  %2719 = vmatprep.subr.mxu0 0.0
  %2720 = vmatpush1.msra.mxu0 %v2711
  %2721 = vmatprep.subr.mxu0 0.0
  %2722 = vmatpush1.msra.mxu0 %v2710
  %2723 = vmatprep.subr.mxu0 0.0
  %2724 = vmatpush1.msra.mxu0 %v2709
  %2725 = vmatprep.subr.mxu0 0.0
  %2726 = vmatpush1.msra.mxu0 %v2708
  %2727 = vmatprep.subr.mxu0 0.0
  %2728 = vmatpush1.msra.mxu0 %v2707
  %2729 = vmatprep.subr.mxu0 0.0
  %2730 = vmatpush1.msra.mxu0 %v2706
  %2731 = vmatprep.subr.mxu0 0.0
  %2732 = vmatpush1.msra.mxu0 %v2705
  %2733 = vmatprep.subr.mxu0 0.0
  %2734 = vmatpush1.msra.mxu0 %v2704
  %2735 = vmatprep.subr.mxu0 0.0
  %2736 = vmatpush1.msra.mxu0 %v2703
  %2737 = vmatprep.subr.mxu0 0.0
  %2738 = vmatpush1.msra.mxu0 %v2702
  %2739 = vmatprep.subr.mxu0 0.0
  %2740 = vmatpush1.msra.mxu0 %v2701
  %2741 = vmatprep.subr.mxu0 0.0
  %2742 = vmatpush1.msra.mxu0 %v2700
  %2743 = vmatprep.subr.mxu0 0.0
  %2744 = vmatpush1.msra.mxu0 %v2699
  %2745 = vmatprep.subr.mxu0 0.0
  %2746 = vmatpush1.msra.mxu0 %v2698
  %2747 = vmatprep.subr.mxu0 0.0
  %2748 = vmatpush1.msra.mxu0 %v2697
  %2749 = vmatprep.subr.mxu0 0.0
  %2750 = vmatpush1.msra.mxu0 %v2696
  %2751 = vmatprep.subr.mxu0 0.0
  %2752 = vmatpush2.msra.mxu0 0.0
  %2753 = vmatprep.subr.mxu0 0.0
  %2754 = vmatpush2.msra.mxu0 0.0
  %2755 = vmatprep.subr.mxu0 0.0
  %2756 = vmatpush2.msra.mxu0 0.0
  %2757 = vmatprep.subr.mxu0 0.0
  %2758 = vmatpush2.msra.mxu0 0.0
  %2759 = vmatprep.subr.mxu0 0.0
  %2760 = vmatpush2.msra.mxu0 0.0
  %2761 = vmatprep.subr.mxu0 0.0
  %2762 = vmatpush2.msra.mxu0 0.0
  %2763 = vmatprep.subr.mxu0 0.0
  %2764 = vmatpush2.msra.mxu0 0.0
  %2765 = vmatprep.subr.mxu0 0.0
  %2766 = vmatpush2.msra.mxu0 0.0
  %2767 = vmatprep.subr.mxu0 0.0
  %2768 = vmatpush2.msra.mxu0 0.0
  %2769 = vmatprep.subr.mxu0 0.0
  %2770 = vmatpush2.msra.mxu0 0.0
  %2771 = vmatprep.subr.mxu0 0.0
  %2772 = vmatpush2.msra.mxu0 0.0
  %2773 = vmatprep.subr.mxu0 0.0
  %2774 = vmatpush2.msra.mxu0 0.0
  %2775 = vmatprep.subr.mxu0 0.0
  %2776 = vmatpush2.msra.mxu0 0.0
  %2777 = vmatprep.subr.mxu0 0.0
  %2778 = vmatpush2.msra.mxu0 0.0
  %2779 = vmatprep.subr.mxu0 0.0
  %2780 = vmatpush2.msra.mxu0 0.0
  %2781 = vmatprep.subr.mxu0 0.0
  %2782 = vmatpush2.msra.mxu0 0.0
  %2783 = vmatprep.mubr.f32.mxu0 0.0
  %2784 = vmatmul.mubr.f32.gmra.mxu0 %v2695
  %v2785 = vpop.f32.mrf.mxu0
  %v2786 = vadd.f32 %v2717, %v2785
  %v2787 = vpop.f32.mrf.mxu0
  %2788 = vdwg.mxu0
  %v2789 = vlaneseq
  %v2790 = vand.u32 %v2789, 127
  %vm2791 = vcmp.lt.s32.totalorder %v2790, 10
  %v2792 = vsel %vm2791, %v2786, -1e+30
  %2793 = vmax.xlane.f32.xlu0 %v2792
  %v2794 = vpop.xlane.xlu0 %2793
  %v2795 = vsub.f32 %v2792, %v2794
  %v2796 = vmul.f32 %v2795, 1.442695
  %v2797 = vpow.pop %v2796
  %2798 = vadd.xlane.f32.xlu0 %v2797
  %v2799 = vpop.xlane.xlu0 %2798
  %v2800 = vlog2.pop %v2799
  %v2801 = vmul.f32 %v2800, 0.6931472
  %v2802 = vadd.f32 %v2794, %v2801
  %v2803 = vsub.f32 %v2786, %v2802
  %2804 = vst [vmem:[%s9] sm:$0xff] %v2803
  // Predicated region
  $region38: #{_net_forward_impl.1} parent=0 // pred_check
    _
  $region39: #{_net_forward_impl.1} parent=0 // pred_check_branch
    %2806 = sbr.rel (0) target = $region41
  $region40: #{_net_forward_impl.1} parent=0 // pred_region
    _
  $region41: #{_net_forward_impl.1} parent=0 // pred_fallthru
    _
  // Predicated region
  $region42: #{_net_forward_impl.1} parent=0 // pred_check
    _
  $region43: #{_net_forward_impl.1} parent=0 // pred_check_branch
    %2808 = sbr.rel (0) target = $region45
  $region44: #{_net_forward_impl.1} parent=0 // pred_region
    _
  $region45: #{_net_forward_impl.1} parent=0 // pred_fallthru
    _

</llo_original>
